<compile_context>
chip_gen: v5e
topology: v5e:2x2
jax: 0.10.0
libtpu: 0.0.40
codegen_flags: <defaults>
</compile_context>

<pallas_src>
import jax
import jax.numpy as jnp
from jax.experimental import pallas as pl
from jax.experimental.pallas import tpu as pltpu


def _round_up(n, m):
    return ((n + m - 1) // m) * m


def _lstm_disc_kernel(x_ref, w_ref, b_ref, fcw_ref, fcb_ref,
                      out_ref, h_ref, c_ref, top_ref):
    """One grid step = one block of Tc timesteps.

    x_ref   : (Tc, B, H)   bf16   time-major input block
    w_ref   : (L, 2H, 4H)  bf16   fused [W_ih^T ; W_hh^T] per layer (gates i,f,g,o)
    b_ref   : (L, 1, 4H)   f32    b_ih + b_hh
    fcw_ref : (1, H)       f32    final linear weight (as a row)
    fcb_ref : (1, 1)       f32    final linear bias (SMEM scalar)
    out_ref : (1, Tc, B)   f32    sigmoid(logits) for this block
    h_ref/c_ref : (L, B, H) f32   recurrent state (persists across grid steps)
    top_ref : (Tc, B, H)   f32    top-layer h for each timestep of the block
    """
    tb = pl.program_id(0)

    @pl.when(tb == 0)
    def _():
        h_ref[...] = jnp.zeros_like(h_ref)
        c_ref[...] = jnp.zeros_like(c_ref)

    L = h_ref.shape[0]
    H = h_ref.shape[2]
    Tc = x_ref.shape[0]

    def step(t, carry):
        inp = x_ref[t]                                            # (B, H) bf16
        top = None
        for l in range(L):                                        # static layer loop
            h_prev = h_ref[l]                                     # (B, H) f32
            c_prev = c_ref[l]
            # Fused gate matmul: z = [x_t, h_prev] (B, 2H) bf16, one MXU push.
            z = jnp.concatenate([inp, h_prev.astype(jnp.bfloat16)], axis=-1)
            gates = jnp.dot(z, w_ref[l],
                            preferred_element_type=jnp.float32) + b_ref[l]  # (B, 4H)
            i_g = jax.nn.sigmoid(gates[:, 0 * H:1 * H])
            f_g = jax.nn.sigmoid(gates[:, 1 * H:2 * H])
            g_g = jnp.tanh(gates[:, 2 * H:3 * H])
            o_g = jax.nn.sigmoid(gates[:, 3 * H:4 * H])
            c_new = f_g * c_prev + i_g * g_g
            h_new = o_g * jnp.tanh(c_new)
            c_ref[l] = c_new
            h_ref[l] = h_new
            inp = h_new.astype(jnp.bfloat16)                      # feeds next layer
            top = h_new
        top_ref[t] = top                                          # stash f32 top-layer h
        return carry

    jax.lax.fori_loop(0, Tc, step, 0, unroll=True)

    # Linear(H, 1) + sigmoid for the whole block at once:
    # VPU broadcast-multiply + lane reduction (no N=1 MXU matmul), lane-dense store.
    fc_w = fcw_ref[...]                                           # (1, H)
    logits = jnp.sum(top_ref[...] * fc_w[None, :, :], axis=-1)    # (Tc, B)
    logits = logits + fcb_ref[0, 0]
    out_ref[0] = jax.nn.sigmoid(logits).astype(out_ref.dtype)


def discriminator_forward(x, packed_params, *, time_block=None):
    """x: (B, T, H) batch-first (PyTorch layout). Returns (B, T, 1) float32."""
    w_cat, b_cat, fc_w, fc_b = packed_params
    B, T, H = x.shape
    L = w_cat.shape[0]

    B_pad = _round_up(B, 8)                       # fill vreg sublanes
    Tc = T if time_block is None else max(1, min(time_block, T))
    T_pad = _round_up(T, Tc)
    Tb = T_pad // Tc

    # Time-major, batch/time padded (padding is appended, so the causal recurrence
    # over the real timesteps is unchanged); bf16 MXU operand.
    x_tm = jnp.zeros((T_pad, B_pad, H), jnp.bfloat16)
    x_tm = x_tm.at[:T, :B, :].set(jnp.transpose(x, (1, 0, 2)).astype(jnp.bfloat16))

    out = pl.pallas_call(
        _lstm_disc_kernel,
        out_shape=jax.ShapeDtypeStruct((Tb, Tc, B_pad), jnp.float32),
        grid_spec=pltpu.PrefetchScalarGridSpec(
            num_scalar_prefetch=0,
            grid=(Tb,),
            in_specs=[
                pl.BlockSpec((Tc, B_pad, H), lambda tb: (tb, 0, 0)),      # x block
                pl.BlockSpec((L, 2 * H, 4 * H), lambda tb: (0, 0, 0)),    # fused W
                pl.BlockSpec((L, 1, 4 * H), lambda tb: (0, 0, 0)),        # fused b
                pl.BlockSpec((1, H), lambda tb: (0, 0)),                  # fc weight row
                pl.BlockSpec(memory_space=pltpu.MemorySpace.SMEM),        # fc bias scalar
            ],
            out_specs=pl.BlockSpec((1, Tc, B_pad), lambda tb: (tb, 0, 0)),
            scratch_shapes=[
                pltpu.VMEM((L, B_pad, H), jnp.float32),    # h state
                pltpu.VMEM((L, B_pad, H), jnp.float32),    # c state
                pltpu.VMEM((Tc, B_pad, H), jnp.float32),   # top-layer h per step
            ],
        ),
        compiler_params=pltpu.CompilerParams(
            dimension_semantics=("arbitrary",),            # sequential recurrence
            vmem_limit_bytes=32 * 1024 * 1024,
        ),
    )(x_tm, w_cat, b_cat, fc_w, fc_b)

    # (Tb, Tc, B_pad) -> (B, T, 1)
    out = jnp.transpose(out.reshape(T_pad, B_pad), (1, 0))[:B, :T]
    return out[..., None]


def init_params(key, hidden_dim, num_layers):
    """PyTorch-style LSTM/Linear init: U(-1/sqrt(H), 1/sqrt(H)), raw torch layout."""
    H, L = hidden_dim, num_layers
    k = 1.0 / float(H) ** 0.5
    keys = jax.random.split(key, 6)
    w_ih = jax.random.uniform(keys[0], (L, 4 * H, H), jnp.float32, -k, k)
    w_hh = jax.random.uniform(keys[1], (L, 4 * H, H), jnp.float32, -k, k)
    b_ih = jax.random.uniform(keys[2], (L, 4 * H), jnp.float32, -k, k)
    b_hh = jax.random.uniform(keys[3], (L, 4 * H), jnp.float32, -k, k)
    fc_w = jax.random.uniform(keys[4], (1, H), jnp.float32, -k, k)
    fc_b = jax.random.uniform(keys[5], (1,), jnp.float32, -k, k)
    return w_ih, w_hh, b_ih, b_hh, fc_w, fc_b


def pack_params(raw):
    """Pre-transpose + gate-fuse the torch-layout weights into the kernel layout."""
    w_ih, w_hh, b_ih, b_hh, fc_w, fc_b = raw
    H = w_ih.shape[2]
    # (L, 4H, H) -> (L, H, 4H); stack x-rows over h-rows -> (L, 2H, 4H), bf16 for MXU.
    w_cat = jnp.concatenate(
        [jnp.transpose(w_ih, (0, 2, 1)), jnp.transpose(w_hh, (0, 2, 1))],
        axis=1).astype(jnp.bfloat16)
    b_cat = (b_ih + b_hh)[:, None, :].astype(jnp.float32)          # (L, 1, 4H)
    fc_w_row = fc_w.reshape(1, H).astype(jnp.float32)              # (1, H)
    fc_b_s = fc_b.reshape(1, 1).astype(jnp.float32)                # (1, 1) -> SMEM
    return w_cat, b_cat, fc_w_row, fc_b_s


def discriminator_reference(x, raw):
    """Pure-JAX f32 reference of the same forward pass (torch semantics)."""
    w_ih, w_hh, b_ih, b_hh, fc_w, fc_b = raw
    B, T, H = x.shape
    L = w_ih.shape[0]
    inp = x
    for l in range(L):
        def step(carry, xt):
            h, c = carry
            gates = xt @ w_ih[l].T + h @ w_hh[l].T + b_ih[l] + b_hh[l]
            i = jax.nn.sigmoid(gates[:, 0 * H:1 * H])
            f = jax.nn.sigmoid(gates[:, 1 * H:2 * H])
            g = jnp.tanh(gates[:, 2 * H:3 * H])
            o = jax.nn.sigmoid(gates[:, 3 * H:4 * H])
            c2 = f * c + i * g
            h2 = o * jnp.tanh(c2)
            return (h2, c2), h2
        h0 = jnp.zeros((B, H), jnp.float32)
        c0 = jnp.zeros((B, H), jnp.float32)
        _, ys = jax.lax.scan(step, (h0, c0), jnp.transpose(inp, (1, 0, 2)))
        inp = jnp.transpose(ys, (1, 0, 2))
    return jax.nn.sigmoid(inp @ fc_w.T + fc_b)


if __name__ == "__main__":
    hidden_dim = 32
    num_layers = 2
    B, T = 4, 8

    key = jax.random.PRNGKey(0)
    kx, kp = jax.random.split(key)
    x = jax.random.normal(kx, (B, T, hidden_dim), jnp.float32)
    raw_params = init_params(kp, hidden_dim, num_layers)
    packed = pack_params(raw_params)

    out = jax.block_until_ready(discriminator_forward(x, packed))
    ref = jax.block_until_ready(discriminator_reference(x, raw_params))

    assert out.shape == (B, T, 1), out.shape
    # bf16 MXU operands / f32 accumulation: tolerance covers the precision delta.
    err = float(jnp.max(jnp.abs(out - ref)))
    assert jnp.allclose(out, ref, rtol=2e-2, atol=5e-3), f"mismatch vs reference: {err}"

    print("KERNEL_OK")
</pallas_src>

<mosaic_0001>
module attributes {stable_mosaic.version = 11 : i64} {
  func.func @_lstm_disc_kernel(%arg0: i32, %arg1: memref<8x8x32xbf16, #tpu.memory_space<vmem>>, %arg2: memref<2x64x128xbf16, #tpu.memory_space<vmem>>, %arg3: memref<2x1x128xf32, #tpu.memory_space<vmem>>, %arg4: memref<1x32xf32, #tpu.memory_space<vmem>>, %arg5: memref<1x1xf32, #tpu.memory_space<smem>>, %arg6: memref<1x8x8xf32, #tpu.memory_space<vmem>>, %arg7: memref<2x8x32xf32, #tpu.memory_space<vmem>>, %arg8: memref<2x8x32xf32, #tpu.memory_space<vmem>>, %arg9: memref<8x8x32xf32, #tpu.memory_space<vmem>>) attributes {dimension_semantics = [#tpu.dimension_semantics<arbitrary>], iteration_bounds = array<i64: 1>, scalar_prefetch = 0 : i64, scratch_operands = 3 : i64, tpu.core_type = #tpu.core_type<tc>, window_params = [{transform_indices = @transform_0, window_bounds = array<i64: 8, 8, 32>}, {pipeline_mode = #tpu.pipeline_mode<synchronous>, transform_indices = @transform_1, window_bounds = array<i64: 2, 64, 128>}, {pipeline_mode = #tpu.pipeline_mode<synchronous>, transform_indices = @transform_2, window_bounds = array<i64: 2, 1, 128>}, {pipeline_mode = #tpu.pipeline_mode<synchronous>, transform_indices = @transform_3, window_bounds = array<i64: 1, 32>}, {transform_indices = @transform_4, window_bounds = array<i64: 1, 1>}, {transform_indices = @transform_5, window_bounds = array<i64: 1, 8, 8>}]} {
    %c0_i32 = arith.constant 0 : i32
    %0 = arith.cmpi eq, %arg0, %c0_i32 : i32
    %1 = arith.extui %0 : i1 to i32
    %c0_i32_0 = arith.constant 0 : i32
    %2 = arith.cmpi ne, %1, %c0_i32_0 : i32
    scf.if %2 {
      %cst_395 = arith.constant 0.000000e+00 : f32
      %788 = vector.broadcast %cst_395 : f32 to vector<2x8x32xf32>
      %c0_396 = arith.constant 0 : index
      %c0_397 = arith.constant 0 : index
      %c0_398 = arith.constant 0 : index
      %789 = vector.load %arg7[%c0_396, %c0_397, %c0_398] : memref<2x8x32xf32, #tpu.memory_space<vmem>>, vector<2x8x32xf32>
      tpu.vector_store %arg7[%c0_396, %c0_397, %c0_398], %788 {strides = array<i32>} : memref<2x8x32xf32, #tpu.memory_space<vmem>>, vector<2x8x32xf32>,
      %cst_399 = arith.constant 0.000000e+00 : f32
      %790 = vector.broadcast %cst_399 : f32 to vector<2x8x32xf32>
      %c0_400 = arith.constant 0 : index
      %c0_401 = arith.constant 0 : index
      %c0_402 = arith.constant 0 : index
      %791 = vector.load %arg8[%c0_400, %c0_401, %c0_402] : memref<2x8x32xf32, #tpu.memory_space<vmem>>, vector<2x8x32xf32>
      tpu.vector_store %arg8[%c0_400, %c0_401, %c0_402], %790 {strides = array<i32>} : memref<2x8x32xf32, #tpu.memory_space<vmem>>, vector<2x8x32xf32>,
    } else {
    }
    %c0_i32_1 = arith.constant 0 : i32
    %3 = arith.index_cast %c0_i32_1 : i32 to index
    %c0 = arith.constant 0 : index
    %c0_2 = arith.constant 0 : index
    %4 = vector.load %arg1[%3, %c0, %c0_2] : memref<8x8x32xbf16, #tpu.memory_space<vmem>>, vector<1x8x32xbf16>
    %5 = vector.shape_cast %4 : vector<1x8x32xbf16> to vector<8x32xbf16>
    %c0_3 = arith.constant 0 : index
    %c0_4 = arith.constant 0 : index
    %c0_5 = arith.constant 0 : index
    %6 = vector.load %arg7[%c0_3, %c0_4, %c0_5] : memref<2x8x32xf32, #tpu.memory_space<vmem>>, vector<1x8x32xf32>
    %7 = vector.shape_cast %6 : vector<1x8x32xf32> to vector<8x32xf32>
    %c0_6 = arith.constant 0 : index
    %c0_7 = arith.constant 0 : index
    %c0_8 = arith.constant 0 : index
    %8 = vector.load %arg8[%c0_6, %c0_7, %c0_8] : memref<2x8x32xf32, #tpu.memory_space<vmem>>, vector<1x8x32xf32>
    %9 = vector.shape_cast %8 : vector<1x8x32xf32> to vector<8x32xf32>
    %10 = arith.truncf %7 : vector<8x32xf32> to vector<8x32xbf16>
    %11 = tpu.concatenate %5, %10 in 1 : vector<8x32xbf16>, vector<8x32xbf16> -> vector<8x64xbf16>
    %c0_9 = arith.constant 0 : index
    %c0_10 = arith.constant 0 : index
    %c0_11 = arith.constant 0 : index
    %12 = vector.load %arg2[%c0_9, %c0_10, %c0_11] : memref<2x64x128xbf16, #tpu.memory_space<vmem>>, vector<1x64x128xbf16>
    %13 = vector.shape_cast %12 : vector<1x64x128xbf16> to vector<64x128xbf16>
    %cst = arith.constant dense<0.000000e+00> : vector<8x128xf32>
    %14 = tpu.matmul %11, %13, %cst {dimension_numbers = #tpu.dot_dimension_numbers<[1], [0], [0], [1], [0, 0, 1, 1], [], []>} : vector<8x64xbf16>, vector<64x128xbf16>, vector<8x128xf32> -> vector<8x128xf32>
    %c0_12 = arith.constant 0 : index
    %c0_13 = arith.constant 0 : index
    %c0_14 = arith.constant 0 : index
    %15 = vector.load %arg3[%c0_12, %c0_13, %c0_14] : memref<2x1x128xf32, #tpu.memory_space<vmem>>, vector<1x1x128xf32>
    %16 = vector.shape_cast %15 : vector<1x1x128xf32> to vector<1x128xf32>
    %17 = vector.broadcast %16 : vector<1x128xf32> to vector<8x128xf32>
    %18 = arith.addf %14, %17 : vector<8x128xf32>
    %19 = vector.extract_strided_slice %18 {offsets = [0, 0], sizes = [8, 32], strides = [1, 1]} : vector<8x128xf32> to vector<8x32xf32>
    %20 = arith.negf %19 : vector<8x32xf32>
    %21 = math.exp %20 : vector<8x32xf32>
    %cst_15 = arith.constant 1.000000e+00 : f32
    %22 = vector.broadcast %cst_15 : f32 to vector<8x32xf32>
    %23 = arith.addf %22, %21 : vector<8x32xf32>
    %24 = arith.divf %22, %23 : vector<8x32xf32>
    %25 = vector.extract_strided_slice %18 {offsets = [0, 32], sizes = [8, 32], strides = [1, 1]} : vector<8x128xf32> to vector<8x32xf32>
    %26 = arith.negf %25 : vector<8x32xf32>
    %27 = math.exp %26 : vector<8x32xf32>
    %cst_16 = arith.constant 1.000000e+00 : f32
    %28 = vector.broadcast %cst_16 : f32 to vector<8x32xf32>
    %29 = arith.addf %28, %27 : vector<8x32xf32>
    %30 = arith.divf %28, %29 : vector<8x32xf32>
    %31 = vector.extract_strided_slice %18 {offsets = [0, 64], sizes = [8, 32], strides = [1, 1]} : vector<8x128xf32> to vector<8x32xf32>
    %32 = math.tanh %31 : vector<8x32xf32>
    %33 = vector.extract_strided_slice %18 {offsets = [0, 96], sizes = [8, 32], strides = [1, 1]} : vector<8x128xf32> to vector<8x32xf32>
    %34 = arith.negf %33 : vector<8x32xf32>
    %35 = math.exp %34 : vector<8x32xf32>
    %cst_17 = arith.constant 1.000000e+00 : f32
    %36 = vector.broadcast %cst_17 : f32 to vector<8x32xf32>
    %37 = arith.addf %36, %35 : vector<8x32xf32>
    %38 = arith.divf %36, %37 : vector<8x32xf32>
    %39 = arith.mulf %30, %9 : vector<8x32xf32>
    %40 = arith.mulf %24, %32 : vector<8x32xf32>
    %41 = arith.addf %39, %40 : vector<8x32xf32>
    %42 = math.tanh %41 : vector<8x32xf32>
    %43 = arith.mulf %38, %42 : vector<8x32xf32>
    %c0_18 = arith.constant 0 : index
    %c0_19 = arith.constant 0 : index
    %c0_20 = arith.constant 0 : index
    %44 = vector.load %arg8[%c0_18, %c0_19, %c0_20] : memref<2x8x32xf32, #tpu.memory_space<vmem>>, vector<1x8x32xf32>
    %45 = vector.shape_cast %44 : vector<1x8x32xf32> to vector<8x32xf32>
    %46 = vector.shape_cast %41 : vector<8x32xf32> to vector<1x8x32xf32>
    tpu.vector_store %arg8[%c0_18, %c0_19, %c0_20], %46 {strides = array<i32>} : memref<2x8x32xf32, #tpu.memory_space<vmem>>, vector<1x8x32xf32>,
    %c0_21 = arith.constant 0 : index
    %c0_22 = arith.constant 0 : index
    %c0_23 = arith.constant 0 : index
    %47 = vector.load %arg7[%c0_21, %c0_22, %c0_23] : memref<2x8x32xf32, #tpu.memory_space<vmem>>, vector<1x8x32xf32>
    %48 = vector.shape_cast %47 : vector<1x8x32xf32> to vector<8x32xf32>
    %49 = vector.shape_cast %43 : vector<8x32xf32> to vector<1x8x32xf32>
    tpu.vector_store %arg7[%c0_21, %c0_22, %c0_23], %49 {strides = array<i32>} : memref<2x8x32xf32, #tpu.memory_space<vmem>>, vector<1x8x32xf32>,
    %50 = arith.truncf %43 : vector<8x32xf32> to vector<8x32xbf16>
    %c1 = arith.constant 1 : index
    %c0_24 = arith.constant 0 : index
    %c0_25 = arith.constant 0 : index
    %51 = vector.load %arg7[%c1, %c0_24, %c0_25] : memref<2x8x32xf32, #tpu.memory_space<vmem>>, vector<1x8x32xf32>
    %52 = vector.shape_cast %51 : vector<1x8x32xf32> to vector<8x32xf32>
    %c1_26 = arith.constant 1 : index
    %c0_27 = arith.constant 0 : index
    %c0_28 = arith.constant 0 : index
    %53 = vector.load %arg8[%c1_26, %c0_27, %c0_28] : memref<2x8x32xf32, #tpu.memory_space<vmem>>, vector<1x8x32xf32>
    %54 = vector.shape_cast %53 : vector<1x8x32xf32> to vector<8x32xf32>
    %55 = arith.truncf %52 : vector<8x32xf32> to vector<8x32xbf16>
    %56 = tpu.concatenate %50, %55 in 1 : vector<8x32xbf16>, vector<8x32xbf16> -> vector<8x64xbf16>
    %c1_29 = arith.constant 1 : index
    %c0_30 = arith.constant 0 : index
    %c0_31 = arith.constant 0 : index
    %57 = vector.load %arg2[%c1_29, %c0_30, %c0_31] : memref<2x64x128xbf16, #tpu.memory_space<vmem>>, vector<1x64x128xbf16>
    %58 = vector.shape_cast %57 : vector<1x64x128xbf16> to vector<64x128xbf16>
    %cst_32 = arith.constant dense<0.000000e+00> : vector<8x128xf32>
    %59 = tpu.matmul %56, %58, %cst_32 {dimension_numbers = #tpu.dot_dimension_numbers<[1], [0], [0], [1], [0, 0, 1, 1], [], []>} : vector<8x64xbf16>, vector<64x128xbf16>, vector<8x128xf32> -> vector<8x128xf32>
    %c1_33 = arith.constant 1 : index
    %c0_34 = arith.constant 0 : index
    %c0_35 = arith.constant 0 : index
    %60 = vector.load %arg3[%c1_33, %c0_34, %c0_35] : memref<2x1x128xf32, #tpu.memory_space<vmem>>, vector<1x1x128xf32>
    %61 = vector.shape_cast %60 : vector<1x1x128xf32> to vector<1x128xf32>
    %62 = vector.broadcast %61 : vector<1x128xf32> to vector<8x128xf32>
    %63 = arith.addf %59, %62 : vector<8x128xf32>
    %64 = vector.extract_strided_slice %63 {offsets = [0, 0], sizes = [8, 32], strides = [1, 1]} : vector<8x128xf32> to vector<8x32xf32>
    %65 = arith.negf %64 : vector<8x32xf32>
    %66 = math.exp %65 : vector<8x32xf32>
    %cst_36 = arith.constant 1.000000e+00 : f32
    %67 = vector.broadcast %cst_36 : f32 to vector<8x32xf32>
    %68 = arith.addf %67, %66 : vector<8x32xf32>
    %69 = arith.divf %67, %68 : vector<8x32xf32>
    %70 = vector.extract_strided_slice %63 {offsets = [0, 32], sizes = [8, 32], strides = [1, 1]} : vector<8x128xf32> to vector<8x32xf32>
    %71 = arith.negf %70 : vector<8x32xf32>
    %72 = math.exp %71 : vector<8x32xf32>
    %cst_37 = arith.constant 1.000000e+00 : f32
    %73 = vector.broadcast %cst_37 : f32 to vector<8x32xf32>
    %74 = arith.addf %73, %72 : vector<8x32xf32>
    %75 = arith.divf %73, %74 : vector<8x32xf32>
    %76 = vector.extract_strided_slice %63 {offsets = [0, 64], sizes = [8, 32], strides = [1, 1]} : vector<8x128xf32> to vector<8x32xf32>
    %77 = math.tanh %76 : vector<8x32xf32>
    %78 = vector.extract_strided_slice %63 {offsets = [0, 96], sizes = [8, 32], strides = [1, 1]} : vector<8x128xf32> to vector<8x32xf32>
    %79 = arith.negf %78 : vector<8x32xf32>
    %80 = math.exp %79 : vector<8x32xf32>
    %cst_38 = arith.constant 1.000000e+00 : f32
    %81 = vector.broadcast %cst_38 : f32 to vector<8x32xf32>
    %82 = arith.addf %81, %80 : vector<8x32xf32>
    %83 = arith.divf %81, %82 : vector<8x32xf32>
    %84 = arith.mulf %75, %54 : vector<8x32xf32>
    %85 = arith.mulf %69, %77 : vector<8x32xf32>
    %86 = arith.addf %84, %85 : vector<8x32xf32>
    %87 = math.tanh %86 : vector<8x32xf32>
    %88 = arith.mulf %83, %87 : vector<8x32xf32>
    %c1_39 = arith.constant 1 : index
    %c0_40 = arith.constant 0 : index
    %c0_41 = arith.constant 0 : index
    %89 = vector.load %arg8[%c1_39, %c0_40, %c0_41] : memref<2x8x32xf32, #tpu.memory_space<vmem>>, vector<1x8x32xf32>
    %90 = vector.shape_cast %89 : vector<1x8x32xf32> to vector<8x32xf32>
    %91 = vector.shape_cast %86 : vector<8x32xf32> to vector<1x8x32xf32>
    tpu.vector_store %arg8[%c1_39, %c0_40, %c0_41], %91 {strides = array<i32>} : memref<2x8x32xf32, #tpu.memory_space<vmem>>, vector<1x8x32xf32>,
    %c1_42 = arith.constant 1 : index
    %c0_43 = arith.constant 0 : index
    %c0_44 = arith.constant 0 : index
    %92 = vector.load %arg7[%c1_42, %c0_43, %c0_44] : memref<2x8x32xf32, #tpu.memory_space<vmem>>, vector<1x8x32xf32>
    %93 = vector.shape_cast %92 : vector<1x8x32xf32> to vector<8x32xf32>
    %94 = vector.shape_cast %88 : vector<8x32xf32> to vector<1x8x32xf32>
    tpu.vector_store %arg7[%c1_42, %c0_43, %c0_44], %94 {strides = array<i32>} : memref<2x8x32xf32, #tpu.memory_space<vmem>>, vector<1x8x32xf32>,
    %95 = arith.index_cast %c0_i32_1 : i32 to index
    %c0_45 = arith.constant 0 : index
    %c0_46 = arith.constant 0 : index
    %96 = vector.load %arg9[%95, %c0_45, %c0_46] : memref<8x8x32xf32, #tpu.memory_space<vmem>>, vector<1x8x32xf32>
    %97 = vector.shape_cast %96 : vector<1x8x32xf32> to vector<8x32xf32>
    %98 = vector.shape_cast %88 : vector<8x32xf32> to vector<1x8x32xf32>
    tpu.vector_store %arg9[%95, %c0_45, %c0_46], %98 {strides = array<i32>} : memref<8x8x32xf32, #tpu.memory_space<vmem>>, vector<1x8x32xf32>,
    %c1_i32 = arith.constant 1 : i32
    %99 = arith.index_cast %c1_i32 : i32 to index
    %c0_47 = arith.constant 0 : index
    %c0_48 = arith.constant 0 : index
    %100 = vector.load %arg1[%99, %c0_47, %c0_48] : memref<8x8x32xbf16, #tpu.memory_space<vmem>>, vector<1x8x32xbf16>
    %101 = vector.shape_cast %100 : vector<1x8x32xbf16> to vector<8x32xbf16>
    %c0_49 = arith.constant 0 : index
    %c0_50 = arith.constant 0 : index
    %c0_51 = arith.constant 0 : index
    %102 = vector.load %arg7[%c0_49, %c0_50, %c0_51] : memref<2x8x32xf32, #tpu.memory_space<vmem>>, vector<1x8x32xf32>
    %103 = vector.shape_cast %102 : vector<1x8x32xf32> to vector<8x32xf32>
    %c0_52 = arith.constant 0 : index
    %c0_53 = arith.constant 0 : index
    %c0_54 = arith.constant 0 : index
    %104 = vector.load %arg8[%c0_52, %c0_53, %c0_54] : memref<2x8x32xf32, #tpu.memory_space<vmem>>, vector<1x8x32xf32>
    %105 = vector.shape_cast %104 : vector<1x8x32xf32> to vector<8x32xf32>
    %106 = arith.truncf %103 : vector<8x32xf32> to vector<8x32xbf16>
    %107 = tpu.concatenate %101, %106 in 1 : vector<8x32xbf16>, vector<8x32xbf16> -> vector<8x64xbf16>
    %c0_55 = arith.constant 0 : index
    %c0_56 = arith.constant 0 : index
    %c0_57 = arith.constant 0 : index
    %108 = vector.load %arg2[%c0_55, %c0_56, %c0_57] : memref<2x64x128xbf16, #tpu.memory_space<vmem>>, vector<1x64x128xbf16>
    %109 = vector.shape_cast %108 : vector<1x64x128xbf16> to vector<64x128xbf16>
    %cst_58 = arith.constant dense<0.000000e+00> : vector<8x128xf32>
    %110 = tpu.matmul %107, %109, %cst_58 {dimension_numbers = #tpu.dot_dimension_numbers<[1], [0], [0], [1], [0, 0, 1, 1], [], []>} : vector<8x64xbf16>, vector<64x128xbf16>, vector<8x128xf32> -> vector<8x128xf32>
    %c0_59 = arith.constant 0 : index
    %c0_60 = arith.constant 0 : index
    %c0_61 = arith.constant 0 : index
    %111 = vector.load %arg3[%c0_59, %c0_60, %c0_61] : memref<2x1x128xf32, #tpu.memory_space<vmem>>, vector<1x1x128xf32>
    %112 = vector.shape_cast %111 : vector<1x1x128xf32> to vector<1x128xf32>
    %113 = vector.broadcast %112 : vector<1x128xf32> to vector<8x128xf32>
    %114 = arith.addf %110, %113 : vector<8x128xf32>
    %115 = vector.extract_strided_slice %114 {offsets = [0, 0], sizes = [8, 32], strides = [1, 1]} : vector<8x128xf32> to vector<8x32xf32>
    %116 = arith.negf %115 : vector<8x32xf32>
    %117 = math.exp %116 : vector<8x32xf32>
    %cst_62 = arith.constant 1.000000e+00 : f32
    %118 = vector.broadcast %cst_62 : f32 to vector<8x32xf32>
    %119 = arith.addf %118, %117 : vector<8x32xf32>
    %120 = arith.divf %118, %119 : vector<8x32xf32>
    %121 = vector.extract_strided_slice %114 {offsets = [0, 32], sizes = [8, 32], strides = [1, 1]} : vector<8x128xf32> to vector<8x32xf32>
    %122 = arith.negf %121 : vector<8x32xf32>
    %123 = math.exp %122 : vector<8x32xf32>
    %cst_63 = arith.constant 1.000000e+00 : f32
    %124 = vector.broadcast %cst_63 : f32 to vector<8x32xf32>
    %125 = arith.addf %124, %123 : vector<8x32xf32>
    %126 = arith.divf %124, %125 : vector<8x32xf32>
    %127 = vector.extract_strided_slice %114 {offsets = [0, 64], sizes = [8, 32], strides = [1, 1]} : vector<8x128xf32> to vector<8x32xf32>
    %128 = math.tanh %127 : vector<8x32xf32>
    %129 = vector.extract_strided_slice %114 {offsets = [0, 96], sizes = [8, 32], strides = [1, 1]} : vector<8x128xf32> to vector<8x32xf32>
    %130 = arith.negf %129 : vector<8x32xf32>
    %131 = math.exp %130 : vector<8x32xf32>
    %cst_64 = arith.constant 1.000000e+00 : f32
    %132 = vector.broadcast %cst_64 : f32 to vector<8x32xf32>
    %133 = arith.addf %132, %131 : vector<8x32xf32>
    %134 = arith.divf %132, %133 : vector<8x32xf32>
    %135 = arith.mulf %126, %105 : vector<8x32xf32>
    %136 = arith.mulf %120, %128 : vector<8x32xf32>
    %137 = arith.addf %135, %136 : vector<8x32xf32>
    %138 = math.tanh %137 : vector<8x32xf32>
    %139 = arith.mulf %134, %138 : vector<8x32xf32>
    %c0_65 = arith.constant 0 : index
    %c0_66 = arith.constant 0 : index
    %c0_67 = arith.constant 0 : index
    %140 = vector.load %arg8[%c0_65, %c0_66, %c0_67] : memref<2x8x32xf32, #tpu.memory_space<vmem>>, vector<1x8x32xf32>
    %141 = vector.shape_cast %140 : vector<1x8x32xf32> to vector<8x32xf32>
    %142 = vector.shape_cast %137 : vector<8x32xf32> to vector<1x8x32xf32>
    tpu.vector_store %arg8[%c0_65, %c0_66, %c0_67], %142 {strides = array<i32>} : memref<2x8x32xf32, #tpu.memory_space<vmem>>, vector<1x8x32xf32>,
    %c0_68 = arith.constant 0 : index
    %c0_69 = arith.constant 0 : index
    %c0_70 = arith.constant 0 : index
    %143 = vector.load %arg7[%c0_68, %c0_69, %c0_70] : memref<2x8x32xf32, #tpu.memory_space<vmem>>, vector<1x8x32xf32>
    %144 = vector.shape_cast %143 : vector<1x8x32xf32> to vector<8x32xf32>
    %145 = vector.shape_cast %139 : vector<8x32xf32> to vector<1x8x32xf32>
    tpu.vector_store %arg7[%c0_68, %c0_69, %c0_70], %145 {strides = array<i32>} : memref<2x8x32xf32, #tpu.memory_space<vmem>>, vector<1x8x32xf32>,
    %146 = arith.truncf %139 : vector<8x32xf32> to vector<8x32xbf16>
    %c1_71 = arith.constant 1 : index
    %c0_72 = arith.constant 0 : index
    %c0_73 = arith.constant 0 : index
    %147 = vector.load %arg7[%c1_71, %c0_72, %c0_73] : memref<2x8x32xf32, #tpu.memory_space<vmem>>, vector<1x8x32xf32>
    %148 = vector.shape_cast %147 : vector<1x8x32xf32> to vector<8x32xf32>
    %c1_74 = arith.constant 1 : index
    %c0_75 = arith.constant 0 : index
    %c0_76 = arith.constant 0 : index
    %149 = vector.load %arg8[%c1_74, %c0_75, %c0_76] : memref<2x8x32xf32, #tpu.memory_space<vmem>>, vector<1x8x32xf32>
    %150 = vector.shape_cast %149 : vector<1x8x32xf32> to vector<8x32xf32>
    %151 = arith.truncf %148 : vector<8x32xf32> to vector<8x32xbf16>
    %152 = tpu.concatenate %146, %151 in 1 : vector<8x32xbf16>, vector<8x32xbf16> -> vector<8x64xbf16>
    %c1_77 = arith.constant 1 : index
    %c0_78 = arith.constant 0 : index
    %c0_79 = arith.constant 0 : index
    %153 = vector.load %arg2[%c1_77, %c0_78, %c0_79] : memref<2x64x128xbf16, #tpu.memory_space<vmem>>, vector<1x64x128xbf16>
    %154 = vector.shape_cast %153 : vector<1x64x128xbf16> to vector<64x128xbf16>
    %cst_80 = arith.constant dense<0.000000e+00> : vector<8x128xf32>
    %155 = tpu.matmul %152, %154, %cst_80 {dimension_numbers = #tpu.dot_dimension_numbers<[1], [0], [0], [1], [0, 0, 1, 1], [], []>} : vector<8x64xbf16>, vector<64x128xbf16>, vector<8x128xf32> -> vector<8x128xf32>
    %c1_81 = arith.constant 1 : index
    %c0_82 = arith.constant 0 : index
    %c0_83 = arith.constant 0 : index
    %156 = vector.load %arg3[%c1_81, %c0_82, %c0_83] : memref<2x1x128xf32, #tpu.memory_space<vmem>>, vector<1x1x128xf32>
    %157 = vector.shape_cast %156 : vector<1x1x128xf32> to vector<1x128xf32>
    %158 = vector.broadcast %157 : vector<1x128xf32> to vector<8x128xf32>
    %159 = arith.addf %155, %158 : vector<8x128xf32>
    %160 = vector.extract_strided_slice %159 {offsets = [0, 0], sizes = [8, 32], strides = [1, 1]} : vector<8x128xf32> to vector<8x32xf32>
    %161 = arith.negf %160 : vector<8x32xf32>
    %162 = math.exp %161 : vector<8x32xf32>
    %cst_84 = arith.constant 1.000000e+00 : f32
    %163 = vector.broadcast %cst_84 : f32 to vector<8x32xf32>
    %164 = arith.addf %163, %162 : vector<8x32xf32>
    %165 = arith.divf %163, %164 : vector<8x32xf32>
    %166 = vector.extract_strided_slice %159 {offsets = [0, 32], sizes = [8, 32], strides = [1, 1]} : vector<8x128xf32> to vector<8x32xf32>
    %167 = arith.negf %166 : vector<8x32xf32>
    %168 = math.exp %167 : vector<8x32xf32>
    %cst_85 = arith.constant 1.000000e+00 : f32
    %169 = vector.broadcast %cst_85 : f32 to vector<8x32xf32>
    %170 = arith.addf %169, %168 : vector<8x32xf32>
    %171 = arith.divf %169, %170 : vector<8x32xf32>
    %172 = vector.extract_strided_slice %159 {offsets = [0, 64], sizes = [8, 32], strides = [1, 1]} : vector<8x128xf32> to vector<8x32xf32>
    %173 = math.tanh %172 : vector<8x32xf32>
    %174 = vector.extract_strided_slice %159 {offsets = [0, 96], sizes = [8, 32], strides = [1, 1]} : vector<8x128xf32> to vector<8x32xf32>
    %175 = arith.negf %174 : vector<8x32xf32>
    %176 = math.exp %175 : vector<8x32xf32>
    %cst_86 = arith.constant 1.000000e+00 : f32
    %177 = vector.broadcast %cst_86 : f32 to vector<8x32xf32>
    %178 = arith.addf %177, %176 : vector<8x32xf32>
    %179 = arith.divf %177, %178 : vector<8x32xf32>
    %180 = arith.mulf %171, %150 : vector<8x32xf32>
    %181 = arith.mulf %165, %173 : vector<8x32xf32>
    %182 = arith.addf %180, %181 : vector<8x32xf32>
    %183 = math.tanh %182 : vector<8x32xf32>
    %184 = arith.mulf %179, %183 : vector<8x32xf32>
    %c1_87 = arith.constant 1 : index
    %c0_88 = arith.constant 0 : index
    %c0_89 = arith.constant 0 : index
    %185 = vector.load %arg8[%c1_87, %c0_88, %c0_89] : memref<2x8x32xf32, #tpu.memory_space<vmem>>, vector<1x8x32xf32>
    %186 = vector.shape_cast %185 : vector<1x8x32xf32> to vector<8x32xf32>
    %187 = vector.shape_cast %182 : vector<8x32xf32> to vector<1x8x32xf32>
    tpu.vector_store %arg8[%c1_87, %c0_88, %c0_89], %187 {strides = array<i32>} : memref<2x8x32xf32, #tpu.memory_space<vmem>>, vector<1x8x32xf32>,
    %c1_90 = arith.constant 1 : index
    %c0_91 = arith.constant 0 : index
    %c0_92 = arith.constant 0 : index
    %188 = vector.load %arg7[%c1_90, %c0_91, %c0_92] : memref<2x8x32xf32, #tpu.memory_space<vmem>>, vector<1x8x32xf32>
    %189 = vector.shape_cast %188 : vector<1x8x32xf32> to vector<8x32xf32>
    %190 = vector.shape_cast %184 : vector<8x32xf32> to vector<1x8x32xf32>
    tpu.vector_store %arg7[%c1_90, %c0_91, %c0_92], %190 {strides = array<i32>} : memref<2x8x32xf32, #tpu.memory_space<vmem>>, vector<1x8x32xf32>,
    %191 = arith.index_cast %c1_i32 : i32 to index
    %c0_93 = arith.constant 0 : index
    %c0_94 = arith.constant 0 : index
    %192 = vector.load %arg9[%191, %c0_93, %c0_94] : memref<8x8x32xf32, #tpu.memory_space<vmem>>, vector<1x8x32xf32>
    %193 = vector.shape_cast %192 : vector<1x8x32xf32> to vector<8x32xf32>
    %194 = vector.shape_cast %184 : vector<8x32xf32> to vector<1x8x32xf32>
    tpu.vector_store %arg9[%191, %c0_93, %c0_94], %194 {strides = array<i32>} : memref<8x8x32xf32, #tpu.memory_space<vmem>>, vector<1x8x32xf32>,
    %c2_i32 = arith.constant 2 : i32
    %195 = arith.index_cast %c2_i32 : i32 to index
    %c0_95 = arith.constant 0 : index
    %c0_96 = arith.constant 0 : index
    %196 = vector.load %arg1[%195, %c0_95, %c0_96] : memref<8x8x32xbf16, #tpu.memory_space<vmem>>, vector<1x8x32xbf16>
    %197 = vector.shape_cast %196 : vector<1x8x32xbf16> to vector<8x32xbf16>
    %c0_97 = arith.constant 0 : index
    %c0_98 = arith.constant 0 : index
    %c0_99 = arith.constant 0 : index
    %198 = vector.load %arg7[%c0_97, %c0_98, %c0_99] : memref<2x8x32xf32, #tpu.memory_space<vmem>>, vector<1x8x32xf32>
    %199 = vector.shape_cast %198 : vector<1x8x32xf32> to vector<8x32xf32>
    %c0_100 = arith.constant 0 : index
    %c0_101 = arith.constant 0 : index
    %c0_102 = arith.constant 0 : index
    %200 = vector.load %arg8[%c0_100, %c0_101, %c0_102] : memref<2x8x32xf32, #tpu.memory_space<vmem>>, vector<1x8x32xf32>
    %201 = vector.shape_cast %200 : vector<1x8x32xf32> to vector<8x32xf32>
    %202 = arith.truncf %199 : vector<8x32xf32> to vector<8x32xbf16>
    %203 = tpu.concatenate %197, %202 in 1 : vector<8x32xbf16>, vector<8x32xbf16> -> vector<8x64xbf16>
    %c0_103 = arith.constant 0 : index
    %c0_104 = arith.constant 0 : index
    %c0_105 = arith.constant 0 : index
    %204 = vector.load %arg2[%c0_103, %c0_104, %c0_105] : memref<2x64x128xbf16, #tpu.memory_space<vmem>>, vector<1x64x128xbf16>
    %205 = vector.shape_cast %204 : vector<1x64x128xbf16> to vector<64x128xbf16>
    %cst_106 = arith.constant dense<0.000000e+00> : vector<8x128xf32>
    %206 = tpu.matmul %203, %205, %cst_106 {dimension_numbers = #tpu.dot_dimension_numbers<[1], [0], [0], [1], [0, 0, 1, 1], [], []>} : vector<8x64xbf16>, vector<64x128xbf16>, vector<8x128xf32> -> vector<8x128xf32>
    %c0_107 = arith.constant 0 : index
    %c0_108 = arith.constant 0 : index
    %c0_109 = arith.constant 0 : index
    %207 = vector.load %arg3[%c0_107, %c0_108, %c0_109] : memref<2x1x128xf32, #tpu.memory_space<vmem>>, vector<1x1x128xf32>
    %208 = vector.shape_cast %207 : vector<1x1x128xf32> to vector<1x128xf32>
    %209 = vector.broadcast %208 : vector<1x128xf32> to vector<8x128xf32>
    %210 = arith.addf %206, %209 : vector<8x128xf32>
    %211 = vector.extract_strided_slice %210 {offsets = [0, 0], sizes = [8, 32], strides = [1, 1]} : vector<8x128xf32> to vector<8x32xf32>
    %212 = arith.negf %211 : vector<8x32xf32>
    %213 = math.exp %212 : vector<8x32xf32>
    %cst_110 = arith.constant 1.000000e+00 : f32
    %214 = vector.broadcast %cst_110 : f32 to vector<8x32xf32>
    %215 = arith.addf %214, %213 : vector<8x32xf32>
    %216 = arith.divf %214, %215 : vector<8x32xf32>
    %217 = vector.extract_strided_slice %210 {offsets = [0, 32], sizes = [8, 32], strides = [1, 1]} : vector<8x128xf32> to vector<8x32xf32>
    %218 = arith.negf %217 : vector<8x32xf32>
    %219 = math.exp %218 : vector<8x32xf32>
    %cst_111 = arith.constant 1.000000e+00 : f32
    %220 = vector.broadcast %cst_111 : f32 to vector<8x32xf32>
    %221 = arith.addf %220, %219 : vector<8x32xf32>
    %222 = arith.divf %220, %221 : vector<8x32xf32>
    %223 = vector.extract_strided_slice %210 {offsets = [0, 64], sizes = [8, 32], strides = [1, 1]} : vector<8x128xf32> to vector<8x32xf32>
    %224 = math.tanh %223 : vector<8x32xf32>
    %225 = vector.extract_strided_slice %210 {offsets = [0, 96], sizes = [8, 32], strides = [1, 1]} : vector<8x128xf32> to vector<8x32xf32>
    %226 = arith.negf %225 : vector<8x32xf32>
    %227 = math.exp %226 : vector<8x32xf32>
    %cst_112 = arith.constant 1.000000e+00 : f32
    %228 = vector.broadcast %cst_112 : f32 to vector<8x32xf32>
    %229 = arith.addf %228, %227 : vector<8x32xf32>
    %230 = arith.divf %228, %229 : vector<8x32xf32>
    %231 = arith.mulf %222, %201 : vector<8x32xf32>
    %232 = arith.mulf %216, %224 : vector<8x32xf32>
    %233 = arith.addf %231, %232 : vector<8x32xf32>
    %234 = math.tanh %233 : vector<8x32xf32>
    %235 = arith.mulf %230, %234 : vector<8x32xf32>
    %c0_113 = arith.constant 0 : index
    %c0_114 = arith.constant 0 : index
    %c0_115 = arith.constant 0 : index
    %236 = vector.load %arg8[%c0_113, %c0_114, %c0_115] : memref<2x8x32xf32, #tpu.memory_space<vmem>>, vector<1x8x32xf32>
    %237 = vector.shape_cast %236 : vector<1x8x32xf32> to vector<8x32xf32>
    %238 = vector.shape_cast %233 : vector<8x32xf32> to vector<1x8x32xf32>
    tpu.vector_store %arg8[%c0_113, %c0_114, %c0_115], %238 {strides = array<i32>} : memref<2x8x32xf32, #tpu.memory_space<vmem>>, vector<1x8x32xf32>,
    %c0_116 = arith.constant 0 : index
    %c0_117 = arith.constant 0 : index
    %c0_118 = arith.constant 0 : index
    %239 = vector.load %arg7[%c0_116, %c0_117, %c0_118] : memref<2x8x32xf32, #tpu.memory_space<vmem>>, vector<1x8x32xf32>
    %240 = vector.shape_cast %239 : vector<1x8x32xf32> to vector<8x32xf32>
    %241 = vector.shape_cast %235 : vector<8x32xf32> to vector<1x8x32xf32>
    tpu.vector_store %arg7[%c0_116, %c0_117, %c0_118], %241 {strides = array<i32>} : memref<2x8x32xf32, #tpu.memory_space<vmem>>, vector<1x8x32xf32>,
    %242 = arith.truncf %235 : vector<8x32xf32> to vector<8x32xbf16>
    %c1_119 = arith.constant 1 : index
    %c0_120 = arith.constant 0 : index
    %c0_121 = arith.constant 0 : index
    %243 = vector.load %arg7[%c1_119, %c0_120, %c0_121] : memref<2x8x32xf32, #tpu.memory_space<vmem>>, vector<1x8x32xf32>
    %244 = vector.shape_cast %243 : vector<1x8x32xf32> to vector<8x32xf32>
    %c1_122 = arith.constant 1 : index
    %c0_123 = arith.constant 0 : index
    %c0_124 = arith.constant 0 : index
    %245 = vector.load %arg8[%c1_122, %c0_123, %c0_124] : memref<2x8x32xf32, #tpu.memory_space<vmem>>, vector<1x8x32xf32>
    %246 = vector.shape_cast %245 : vector<1x8x32xf32> to vector<8x32xf32>
    %247 = arith.truncf %244 : vector<8x32xf32> to vector<8x32xbf16>
    %248 = tpu.concatenate %242, %247 in 1 : vector<8x32xbf16>, vector<8x32xbf16> -> vector<8x64xbf16>
    %c1_125 = arith.constant 1 : index
    %c0_126 = arith.constant 0 : index
    %c0_127 = arith.constant 0 : index
    %249 = vector.load %arg2[%c1_125, %c0_126, %c0_127] : memref<2x64x128xbf16, #tpu.memory_space<vmem>>, vector<1x64x128xbf16>
    %250 = vector.shape_cast %249 : vector<1x64x128xbf16> to vector<64x128xbf16>
    %cst_128 = arith.constant dense<0.000000e+00> : vector<8x128xf32>
    %251 = tpu.matmul %248, %250, %cst_128 {dimension_numbers = #tpu.dot_dimension_numbers<[1], [0], [0], [1], [0, 0, 1, 1], [], []>} : vector<8x64xbf16>, vector<64x128xbf16>, vector<8x128xf32> -> vector<8x128xf32>
    %c1_129 = arith.constant 1 : index
    %c0_130 = arith.constant 0 : index
    %c0_131 = arith.constant 0 : index
    %252 = vector.load %arg3[%c1_129, %c0_130, %c0_131] : memref<2x1x128xf32, #tpu.memory_space<vmem>>, vector<1x1x128xf32>
    %253 = vector.shape_cast %252 : vector<1x1x128xf32> to vector<1x128xf32>
    %254 = vector.broadcast %253 : vector<1x128xf32> to vector<8x128xf32>
    %255 = arith.addf %251, %254 : vector<8x128xf32>
    %256 = vector.extract_strided_slice %255 {offsets = [0, 0], sizes = [8, 32], strides = [1, 1]} : vector<8x128xf32> to vector<8x32xf32>
    %257 = arith.negf %256 : vector<8x32xf32>
    %258 = math.exp %257 : vector<8x32xf32>
    %cst_132 = arith.constant 1.000000e+00 : f32
    %259 = vector.broadcast %cst_132 : f32 to vector<8x32xf32>
    %260 = arith.addf %259, %258 : vector<8x32xf32>
    %261 = arith.divf %259, %260 : vector<8x32xf32>
    %262 = vector.extract_strided_slice %255 {offsets = [0, 32], sizes = [8, 32], strides = [1, 1]} : vector<8x128xf32> to vector<8x32xf32>
    %263 = arith.negf %262 : vector<8x32xf32>
    %264 = math.exp %263 : vector<8x32xf32>
    %cst_133 = arith.constant 1.000000e+00 : f32
    %265 = vector.broadcast %cst_133 : f32 to vector<8x32xf32>
    %266 = arith.addf %265, %264 : vector<8x32xf32>
    %267 = arith.divf %265, %266 : vector<8x32xf32>
    %268 = vector.extract_strided_slice %255 {offsets = [0, 64], sizes = [8, 32], strides = [1, 1]} : vector<8x128xf32> to vector<8x32xf32>
    %269 = math.tanh %268 : vector<8x32xf32>
    %270 = vector.extract_strided_slice %255 {offsets = [0, 96], sizes = [8, 32], strides = [1, 1]} : vector<8x128xf32> to vector<8x32xf32>
    %271 = arith.negf %270 : vector<8x32xf32>
    %272 = math.exp %271 : vector<8x32xf32>
    %cst_134 = arith.constant 1.000000e+00 : f32
    %273 = vector.broadcast %cst_134 : f32 to vector<8x32xf32>
    %274 = arith.addf %273, %272 : vector<8x32xf32>
    %275 = arith.divf %273, %274 : vector<8x32xf32>
    %276 = arith.mulf %267, %246 : vector<8x32xf32>
    %277 = arith.mulf %261, %269 : vector<8x32xf32>
    %278 = arith.addf %276, %277 : vector<8x32xf32>
    %279 = math.tanh %278 : vector<8x32xf32>
    %280 = arith.mulf %275, %279 : vector<8x32xf32>
    %c1_135 = arith.constant 1 : index
    %c0_136 = arith.constant 0 : index
    %c0_137 = arith.constant 0 : index
    %281 = vector.load %arg8[%c1_135, %c0_136, %c0_137] : memref<2x8x32xf32, #tpu.memory_space<vmem>>, vector<1x8x32xf32>
    %282 = vector.shape_cast %281 : vector<1x8x32xf32> to vector<8x32xf32>
    %283 = vector.shape_cast %278 : vector<8x32xf32> to vector<1x8x32xf32>
    tpu.vector_store %arg8[%c1_135, %c0_136, %c0_137], %283 {strides = array<i32>} : memref<2x8x32xf32, #tpu.memory_space<vmem>>, vector<1x8x32xf32>,
    %c1_138 = arith.constant 1 : index
    %c0_139 = arith.constant 0 : index
    %c0_140 = arith.constant 0 : index
    %284 = vector.load %arg7[%c1_138, %c0_139, %c0_140] : memref<2x8x32xf32, #tpu.memory_space<vmem>>, vector<1x8x32xf32>
    %285 = vector.shape_cast %284 : vector<1x8x32xf32> to vector<8x32xf32>
    %286 = vector.shape_cast %280 : vector<8x32xf32> to vector<1x8x32xf32>
    tpu.vector_store %arg7[%c1_138, %c0_139, %c0_140], %286 {strides = array<i32>} : memref<2x8x32xf32, #tpu.memory_space<vmem>>, vector<1x8x32xf32>,
    %287 = arith.index_cast %c2_i32 : i32 to index
    %c0_141 = arith.constant 0 : index
    %c0_142 = arith.constant 0 : index
    %288 = vector.load %arg9[%287, %c0_141, %c0_142] : memref<8x8x32xf32, #tpu.memory_space<vmem>>, vector<1x8x32xf32>
    %289 = vector.shape_cast %288 : vector<1x8x32xf32> to vector<8x32xf32>
    %290 = vector.shape_cast %280 : vector<8x32xf32> to vector<1x8x32xf32>
    tpu.vector_store %arg9[%287, %c0_141, %c0_142], %290 {strides = array<i32>} : memref<8x8x32xf32, #tpu.memory_space<vmem>>, vector<1x8x32xf32>,
    %c3_i32 = arith.constant 3 : i32
    %291 = arith.index_cast %c3_i32 : i32 to index
    %c0_143 = arith.constant 0 : index
    %c0_144 = arith.constant 0 : index
    %292 = vector.load %arg1[%291, %c0_143, %c0_144] : memref<8x8x32xbf16, #tpu.memory_space<vmem>>, vector<1x8x32xbf16>
    %293 = vector.shape_cast %292 : vector<1x8x32xbf16> to vector<8x32xbf16>
    %c0_145 = arith.constant 0 : index
    %c0_146 = arith.constant 0 : index
    %c0_147 = arith.constant 0 : index
    %294 = vector.load %arg7[%c0_145, %c0_146, %c0_147] : memref<2x8x32xf32, #tpu.memory_space<vmem>>, vector<1x8x32xf32>
    %295 = vector.shape_cast %294 : vector<1x8x32xf32> to vector<8x32xf32>
    %c0_148 = arith.constant 0 : index
    %c0_149 = arith.constant 0 : index
    %c0_150 = arith.constant 0 : index
    %296 = vector.load %arg8[%c0_148, %c0_149, %c0_150] : memref<2x8x32xf32, #tpu.memory_space<vmem>>, vector<1x8x32xf32>
    %297 = vector.shape_cast %296 : vector<1x8x32xf32> to vector<8x32xf32>
    %298 = arith.truncf %295 : vector<8x32xf32> to vector<8x32xbf16>
    %299 = tpu.concatenate %293, %298 in 1 : vector<8x32xbf16>, vector<8x32xbf16> -> vector<8x64xbf16>
    %c0_151 = arith.constant 0 : index
    %c0_152 = arith.constant 0 : index
    %c0_153 = arith.constant 0 : index
    %300 = vector.load %arg2[%c0_151, %c0_152, %c0_153] : memref<2x64x128xbf16, #tpu.memory_space<vmem>>, vector<1x64x128xbf16>
    %301 = vector.shape_cast %300 : vector<1x64x128xbf16> to vector<64x128xbf16>
    %cst_154 = arith.constant dense<0.000000e+00> : vector<8x128xf32>
    %302 = tpu.matmul %299, %301, %cst_154 {dimension_numbers = #tpu.dot_dimension_numbers<[1], [0], [0], [1], [0, 0, 1, 1], [], []>} : vector<8x64xbf16>, vector<64x128xbf16>, vector<8x128xf32> -> vector<8x128xf32>
    %c0_155 = arith.constant 0 : index
    %c0_156 = arith.constant 0 : index
    %c0_157 = arith.constant 0 : index
    %303 = vector.load %arg3[%c0_155, %c0_156, %c0_157] : memref<2x1x128xf32, #tpu.memory_space<vmem>>, vector<1x1x128xf32>
    %304 = vector.shape_cast %303 : vector<1x1x128xf32> to vector<1x128xf32>
    %305 = vector.broadcast %304 : vector<1x128xf32> to vector<8x128xf32>
    %306 = arith.addf %302, %305 : vector<8x128xf32>
    %307 = vector.extract_strided_slice %306 {offsets = [0, 0], sizes = [8, 32], strides = [1, 1]} : vector<8x128xf32> to vector<8x32xf32>
    %308 = arith.negf %307 : vector<8x32xf32>
    %309 = math.exp %308 : vector<8x32xf32>
    %cst_158 = arith.constant 1.000000e+00 : f32
    %310 = vector.broadcast %cst_158 : f32 to vector<8x32xf32>
    %311 = arith.addf %310, %309 : vector<8x32xf32>
    %312 = arith.divf %310, %311 : vector<8x32xf32>
    %313 = vector.extract_strided_slice %306 {offsets = [0, 32], sizes = [8, 32], strides = [1, 1]} : vector<8x128xf32> to vector<8x32xf32>
    %314 = arith.negf %313 : vector<8x32xf32>
    %315 = math.exp %314 : vector<8x32xf32>
    %cst_159 = arith.constant 1.000000e+00 : f32
    %316 = vector.broadcast %cst_159 : f32 to vector<8x32xf32>
    %317 = arith.addf %316, %315 : vector<8x32xf32>
    %318 = arith.divf %316, %317 : vector<8x32xf32>
    %319 = vector.extract_strided_slice %306 {offsets = [0, 64], sizes = [8, 32], strides = [1, 1]} : vector<8x128xf32> to vector<8x32xf32>
    %320 = math.tanh %319 : vector<8x32xf32>
    %321 = vector.extract_strided_slice %306 {offsets = [0, 96], sizes = [8, 32], strides = [1, 1]} : vector<8x128xf32> to vector<8x32xf32>
    %322 = arith.negf %321 : vector<8x32xf32>
    %323 = math.exp %322 : vector<8x32xf32>
    %cst_160 = arith.constant 1.000000e+00 : f32
    %324 = vector.broadcast %cst_160 : f32 to vector<8x32xf32>
    %325 = arith.addf %324, %323 : vector<8x32xf32>
    %326 = arith.divf %324, %325 : vector<8x32xf32>
    %327 = arith.mulf %318, %297 : vector<8x32xf32>
    %328 = arith.mulf %312, %320 : vector<8x32xf32>
    %329 = arith.addf %327, %328 : vector<8x32xf32>
    %330 = math.tanh %329 : vector<8x32xf32>
    %331 = arith.mulf %326, %330 : vector<8x32xf32>
    %c0_161 = arith.constant 0 : index
    %c0_162 = arith.constant 0 : index
    %c0_163 = arith.constant 0 : index
    %332 = vector.load %arg8[%c0_161, %c0_162, %c0_163] : memref<2x8x32xf32, #tpu.memory_space<vmem>>, vector<1x8x32xf32>
    %333 = vector.shape_cast %332 : vector<1x8x32xf32> to vector<8x32xf32>
    %334 = vector.shape_cast %329 : vector<8x32xf32> to vector<1x8x32xf32>
    tpu.vector_store %arg8[%c0_161, %c0_162, %c0_163], %334 {strides = array<i32>} : memref<2x8x32xf32, #tpu.memory_space<vmem>>, vector<1x8x32xf32>,
    %c0_164 = arith.constant 0 : index
    %c0_165 = arith.constant 0 : index
    %c0_166 = arith.constant 0 : index
    %335 = vector.load %arg7[%c0_164, %c0_165, %c0_166] : memref<2x8x32xf32, #tpu.memory_space<vmem>>, vector<1x8x32xf32>
    %336 = vector.shape_cast %335 : vector<1x8x32xf32> to vector<8x32xf32>
    %337 = vector.shape_cast %331 : vector<8x32xf32> to vector<1x8x32xf32>
    tpu.vector_store %arg7[%c0_164, %c0_165, %c0_166], %337 {strides = array<i32>} : memref<2x8x32xf32, #tpu.memory_space<vmem>>, vector<1x8x32xf32>,
    %338 = arith.truncf %331 : vector<8x32xf32> to vector<8x32xbf16>
    %c1_167 = arith.constant 1 : index
    %c0_168 = arith.constant 0 : index
    %c0_169 = arith.constant 0 : index
    %339 = vector.load %arg7[%c1_167, %c0_168, %c0_169] : memref<2x8x32xf32, #tpu.memory_space<vmem>>, vector<1x8x32xf32>
    %340 = vector.shape_cast %339 : vector<1x8x32xf32> to vector<8x32xf32>
    %c1_170 = arith.constant 1 : index
    %c0_171 = arith.constant 0 : index
    %c0_172 = arith.constant 0 : index
    %341 = vector.load %arg8[%c1_170, %c0_171, %c0_172] : memref<2x8x32xf32, #tpu.memory_space<vmem>>, vector<1x8x32xf32>
    %342 = vector.shape_cast %341 : vector<1x8x32xf32> to vector<8x32xf32>
    %343 = arith.truncf %340 : vector<8x32xf32> to vector<8x32xbf16>
    %344 = tpu.concatenate %338, %343 in 1 : vector<8x32xbf16>, vector<8x32xbf16> -> vector<8x64xbf16>
    %c1_173 = arith.constant 1 : index
    %c0_174 = arith.constant 0 : index
    %c0_175 = arith.constant 0 : index
    %345 = vector.load %arg2[%c1_173, %c0_174, %c0_175] : memref<2x64x128xbf16, #tpu.memory_space<vmem>>, vector<1x64x128xbf16>
    %346 = vector.shape_cast %345 : vector<1x64x128xbf16> to vector<64x128xbf16>
    %cst_176 = arith.constant dense<0.000000e+00> : vector<8x128xf32>
    %347 = tpu.matmul %344, %346, %cst_176 {dimension_numbers = #tpu.dot_dimension_numbers<[1], [0], [0], [1], [0, 0, 1, 1], [], []>} : vector<8x64xbf16>, vector<64x128xbf16>, vector<8x128xf32> -> vector<8x128xf32>
    %c1_177 = arith.constant 1 : index
    %c0_178 = arith.constant 0 : index
    %c0_179 = arith.constant 0 : index
    %348 = vector.load %arg3[%c1_177, %c0_178, %c0_179] : memref<2x1x128xf32, #tpu.memory_space<vmem>>, vector<1x1x128xf32>
    %349 = vector.shape_cast %348 : vector<1x1x128xf32> to vector<1x128xf32>
    %350 = vector.broadcast %349 : vector<1x128xf32> to vector<8x128xf32>
    %351 = arith.addf %347, %350 : vector<8x128xf32>
    %352 = vector.extract_strided_slice %351 {offsets = [0, 0], sizes = [8, 32], strides = [1, 1]} : vector<8x128xf32> to vector<8x32xf32>
    %353 = arith.negf %352 : vector<8x32xf32>
    %354 = math.exp %353 : vector<8x32xf32>
    %cst_180 = arith.constant 1.000000e+00 : f32
    %355 = vector.broadcast %cst_180 : f32 to vector<8x32xf32>
    %356 = arith.addf %355, %354 : vector<8x32xf32>
    %357 = arith.divf %355, %356 : vector<8x32xf32>
    %358 = vector.extract_strided_slice %351 {offsets = [0, 32], sizes = [8, 32], strides = [1, 1]} : vector<8x128xf32> to vector<8x32xf32>
    %359 = arith.negf %358 : vector<8x32xf32>
    %360 = math.exp %359 : vector<8x32xf32>
    %cst_181 = arith.constant 1.000000e+00 : f32
    %361 = vector.broadcast %cst_181 : f32 to vector<8x32xf32>
    %362 = arith.addf %361, %360 : vector<8x32xf32>
    %363 = arith.divf %361, %362 : vector<8x32xf32>
    %364 = vector.extract_strided_slice %351 {offsets = [0, 64], sizes = [8, 32], strides = [1, 1]} : vector<8x128xf32> to vector<8x32xf32>
    %365 = math.tanh %364 : vector<8x32xf32>
    %366 = vector.extract_strided_slice %351 {offsets = [0, 96], sizes = [8, 32], strides = [1, 1]} : vector<8x128xf32> to vector<8x32xf32>
    %367 = arith.negf %366 : vector<8x32xf32>
    %368 = math.exp %367 : vector<8x32xf32>
    %cst_182 = arith.constant 1.000000e+00 : f32
    %369 = vector.broadcast %cst_182 : f32 to vector<8x32xf32>
    %370 = arith.addf %369, %368 : vector<8x32xf32>
    %371 = arith.divf %369, %370 : vector<8x32xf32>
    %372 = arith.mulf %363, %342 : vector<8x32xf32>
    %373 = arith.mulf %357, %365 : vector<8x32xf32>
    %374 = arith.addf %372, %373 : vector<8x32xf32>
    %375 = math.tanh %374 : vector<8x32xf32>
    %376 = arith.mulf %371, %375 : vector<8x32xf32>
    %c1_183 = arith.constant 1 : index
    %c0_184 = arith.constant 0 : index
    %c0_185 = arith.constant 0 : index
    %377 = vector.load %arg8[%c1_183, %c0_184, %c0_185] : memref<2x8x32xf32, #tpu.memory_space<vmem>>, vector<1x8x32xf32>
    %378 = vector.shape_cast %377 : vector<1x8x32xf32> to vector<8x32xf32>
    %379 = vector.shape_cast %374 : vector<8x32xf32> to vector<1x8x32xf32>
    tpu.vector_store %arg8[%c1_183, %c0_184, %c0_185], %379 {strides = array<i32>} : memref<2x8x32xf32, #tpu.memory_space<vmem>>, vector<1x8x32xf32>,
    %c1_186 = arith.constant 1 : index
    %c0_187 = arith.constant 0 : index
    %c0_188 = arith.constant 0 : index
    %380 = vector.load %arg7[%c1_186, %c0_187, %c0_188] : memref<2x8x32xf32, #tpu.memory_space<vmem>>, vector<1x8x32xf32>
    %381 = vector.shape_cast %380 : vector<1x8x32xf32> to vector<8x32xf32>
    %382 = vector.shape_cast %376 : vector<8x32xf32> to vector<1x8x32xf32>
    tpu.vector_store %arg7[%c1_186, %c0_187, %c0_188], %382 {strides = array<i32>} : memref<2x8x32xf32, #tpu.memory_space<vmem>>, vector<1x8x32xf32>,
    %383 = arith.index_cast %c3_i32 : i32 to index
    %c0_189 = arith.constant 0 : index
    %c0_190 = arith.constant 0 : index
    %384 = vector.load %arg9[%383, %c0_189, %c0_190] : memref<8x8x32xf32, #tpu.memory_space<vmem>>, vector<1x8x32xf32>
    %385 = vector.shape_cast %384 : vector<1x8x32xf32> to vector<8x32xf32>
    %386 = vector.shape_cast %376 : vector<8x32xf32> to vector<1x8x32xf32>
    tpu.vector_store %arg9[%383, %c0_189, %c0_190], %386 {strides = array<i32>} : memref<8x8x32xf32, #tpu.memory_space<vmem>>, vector<1x8x32xf32>,
    %c4_i32 = arith.constant 4 : i32
    %387 = arith.index_cast %c4_i32 : i32 to index
    %c0_191 = arith.constant 0 : index
    %c0_192 = arith.constant 0 : index
    %388 = vector.load %arg1[%387, %c0_191, %c0_192] : memref<8x8x32xbf16, #tpu.memory_space<vmem>>, vector<1x8x32xbf16>
    %389 = vector.shape_cast %388 : vector<1x8x32xbf16> to vector<8x32xbf16>
    %c0_193 = arith.constant 0 : index
    %c0_194 = arith.constant 0 : index
    %c0_195 = arith.constant 0 : index
    %390 = vector.load %arg7[%c0_193, %c0_194, %c0_195] : memref<2x8x32xf32, #tpu.memory_space<vmem>>, vector<1x8x32xf32>
    %391 = vector.shape_cast %390 : vector<1x8x32xf32> to vector<8x32xf32>
    %c0_196 = arith.constant 0 : index
    %c0_197 = arith.constant 0 : index
    %c0_198 = arith.constant 0 : index
    %392 = vector.load %arg8[%c0_196, %c0_197, %c0_198] : memref<2x8x32xf32, #tpu.memory_space<vmem>>, vector<1x8x32xf32>
    %393 = vector.shape_cast %392 : vector<1x8x32xf32> to vector<8x32xf32>
    %394 = arith.truncf %391 : vector<8x32xf32> to vector<8x32xbf16>
    %395 = tpu.concatenate %389, %394 in 1 : vector<8x32xbf16>, vector<8x32xbf16> -> vector<8x64xbf16>
    %c0_199 = arith.constant 0 : index
    %c0_200 = arith.constant 0 : index
    %c0_201 = arith.constant 0 : index
    %396 = vector.load %arg2[%c0_199, %c0_200, %c0_201] : memref<2x64x128xbf16, #tpu.memory_space<vmem>>, vector<1x64x128xbf16>
    %397 = vector.shape_cast %396 : vector<1x64x128xbf16> to vector<64x128xbf16>
    %cst_202 = arith.constant dense<0.000000e+00> : vector<8x128xf32>
    %398 = tpu.matmul %395, %397, %cst_202 {dimension_numbers = #tpu.dot_dimension_numbers<[1], [0], [0], [1], [0, 0, 1, 1], [], []>} : vector<8x64xbf16>, vector<64x128xbf16>, vector<8x128xf32> -> vector<8x128xf32>
    %c0_203 = arith.constant 0 : index
    %c0_204 = arith.constant 0 : index
    %c0_205 = arith.constant 0 : index
    %399 = vector.load %arg3[%c0_203, %c0_204, %c0_205] : memref<2x1x128xf32, #tpu.memory_space<vmem>>, vector<1x1x128xf32>
    %400 = vector.shape_cast %399 : vector<1x1x128xf32> to vector<1x128xf32>
    %401 = vector.broadcast %400 : vector<1x128xf32> to vector<8x128xf32>
    %402 = arith.addf %398, %401 : vector<8x128xf32>
    %403 = vector.extract_strided_slice %402 {offsets = [0, 0], sizes = [8, 32], strides = [1, 1]} : vector<8x128xf32> to vector<8x32xf32>
    %404 = arith.negf %403 : vector<8x32xf32>
    %405 = math.exp %404 : vector<8x32xf32>
    %cst_206 = arith.constant 1.000000e+00 : f32
    %406 = vector.broadcast %cst_206 : f32 to vector<8x32xf32>
    %407 = arith.addf %406, %405 : vector<8x32xf32>
    %408 = arith.divf %406, %407 : vector<8x32xf32>
    %409 = vector.extract_strided_slice %402 {offsets = [0, 32], sizes = [8, 32], strides = [1, 1]} : vector<8x128xf32> to vector<8x32xf32>
    %410 = arith.negf %409 : vector<8x32xf32>
    %411 = math.exp %410 : vector<8x32xf32>
    %cst_207 = arith.constant 1.000000e+00 : f32
    %412 = vector.broadcast %cst_207 : f32 to vector<8x32xf32>
    %413 = arith.addf %412, %411 : vector<8x32xf32>
    %414 = arith.divf %412, %413 : vector<8x32xf32>
    %415 = vector.extract_strided_slice %402 {offsets = [0, 64], sizes = [8, 32], strides = [1, 1]} : vector<8x128xf32> to vector<8x32xf32>
    %416 = math.tanh %415 : vector<8x32xf32>
    %417 = vector.extract_strided_slice %402 {offsets = [0, 96], sizes = [8, 32], strides = [1, 1]} : vector<8x128xf32> to vector<8x32xf32>
    %418 = arith.negf %417 : vector<8x32xf32>
    %419 = math.exp %418 : vector<8x32xf32>
    %cst_208 = arith.constant 1.000000e+00 : f32
    %420 = vector.broadcast %cst_208 : f32 to vector<8x32xf32>
    %421 = arith.addf %420, %419 : vector<8x32xf32>
    %422 = arith.divf %420, %421 : vector<8x32xf32>
    %423 = arith.mulf %414, %393 : vector<8x32xf32>
    %424 = arith.mulf %408, %416 : vector<8x32xf32>
    %425 = arith.addf %423, %424 : vector<8x32xf32>
    %426 = math.tanh %425 : vector<8x32xf32>
    %427 = arith.mulf %422, %426 : vector<8x32xf32>
    %c0_209 = arith.constant 0 : index
    %c0_210 = arith.constant 0 : index
    %c0_211 = arith.constant 0 : index
    %428 = vector.load %arg8[%c0_209, %c0_210, %c0_211] : memref<2x8x32xf32, #tpu.memory_space<vmem>>, vector<1x8x32xf32>
    %429 = vector.shape_cast %428 : vector<1x8x32xf32> to vector<8x32xf32>
    %430 = vector.shape_cast %425 : vector<8x32xf32> to vector<1x8x32xf32>
    tpu.vector_store %arg8[%c0_209, %c0_210, %c0_211], %430 {strides = array<i32>} : memref<2x8x32xf32, #tpu.memory_space<vmem>>, vector<1x8x32xf32>,
    %c0_212 = arith.constant 0 : index
    %c0_213 = arith.constant 0 : index
    %c0_214 = arith.constant 0 : index
    %431 = vector.load %arg7[%c0_212, %c0_213, %c0_214] : memref<2x8x32xf32, #tpu.memory_space<vmem>>, vector<1x8x32xf32>
    %432 = vector.shape_cast %431 : vector<1x8x32xf32> to vector<8x32xf32>
    %433 = vector.shape_cast %427 : vector<8x32xf32> to vector<1x8x32xf32>
    tpu.vector_store %arg7[%c0_212, %c0_213, %c0_214], %433 {strides = array<i32>} : memref<2x8x32xf32, #tpu.memory_space<vmem>>, vector<1x8x32xf32>,
    %434 = arith.truncf %427 : vector<8x32xf32> to vector<8x32xbf16>
    %c1_215 = arith.constant 1 : index
    %c0_216 = arith.constant 0 : index
    %c0_217 = arith.constant 0 : index
    %435 = vector.load %arg7[%c1_215, %c0_216, %c0_217] : memref<2x8x32xf32, #tpu.memory_space<vmem>>, vector<1x8x32xf32>
    %436 = vector.shape_cast %435 : vector<1x8x32xf32> to vector<8x32xf32>
    %c1_218 = arith.constant 1 : index
    %c0_219 = arith.constant 0 : index
    %c0_220 = arith.constant 0 : index
    %437 = vector.load %arg8[%c1_218, %c0_219, %c0_220] : memref<2x8x32xf32, #tpu.memory_space<vmem>>, vector<1x8x32xf32>
    %438 = vector.shape_cast %437 : vector<1x8x32xf32> to vector<8x32xf32>
    %439 = arith.truncf %436 : vector<8x32xf32> to vector<8x32xbf16>
    %440 = tpu.concatenate %434, %439 in 1 : vector<8x32xbf16>, vector<8x32xbf16> -> vector<8x64xbf16>
    %c1_221 = arith.constant 1 : index
    %c0_222 = arith.constant 0 : index
    %c0_223 = arith.constant 0 : index
    %441 = vector.load %arg2[%c1_221, %c0_222, %c0_223] : memref<2x64x128xbf16, #tpu.memory_space<vmem>>, vector<1x64x128xbf16>
    %442 = vector.shape_cast %441 : vector<1x64x128xbf16> to vector<64x128xbf16>
    %cst_224 = arith.constant dense<0.000000e+00> : vector<8x128xf32>
    %443 = tpu.matmul %440, %442, %cst_224 {dimension_numbers = #tpu.dot_dimension_numbers<[1], [0], [0], [1], [0, 0, 1, 1], [], []>} : vector<8x64xbf16>, vector<64x128xbf16>, vector<8x128xf32> -> vector<8x128xf32>
    %c1_225 = arith.constant 1 : index
    %c0_226 = arith.constant 0 : index
    %c0_227 = arith.constant 0 : index
    %444 = vector.load %arg3[%c1_225, %c0_226, %c0_227] : memref<2x1x128xf32, #tpu.memory_space<vmem>>, vector<1x1x128xf32>
    %445 = vector.shape_cast %444 : vector<1x1x128xf32> to vector<1x128xf32>
    %446 = vector.broadcast %445 : vector<1x128xf32> to vector<8x128xf32>
    %447 = arith.addf %443, %446 : vector<8x128xf32>
    %448 = vector.extract_strided_slice %447 {offsets = [0, 0], sizes = [8, 32], strides = [1, 1]} : vector<8x128xf32> to vector<8x32xf32>
    %449 = arith.negf %448 : vector<8x32xf32>
    %450 = math.exp %449 : vector<8x32xf32>
    %cst_228 = arith.constant 1.000000e+00 : f32
    %451 = vector.broadcast %cst_228 : f32 to vector<8x32xf32>
    %452 = arith.addf %451, %450 : vector<8x32xf32>
    %453 = arith.divf %451, %452 : vector<8x32xf32>
    %454 = vector.extract_strided_slice %447 {offsets = [0, 32], sizes = [8, 32], strides = [1, 1]} : vector<8x128xf32> to vector<8x32xf32>
    %455 = arith.negf %454 : vector<8x32xf32>
    %456 = math.exp %455 : vector<8x32xf32>
    %cst_229 = arith.constant 1.000000e+00 : f32
    %457 = vector.broadcast %cst_229 : f32 to vector<8x32xf32>
    %458 = arith.addf %457, %456 : vector<8x32xf32>
    %459 = arith.divf %457, %458 : vector<8x32xf32>
    %460 = vector.extract_strided_slice %447 {offsets = [0, 64], sizes = [8, 32], strides = [1, 1]} : vector<8x128xf32> to vector<8x32xf32>
    %461 = math.tanh %460 : vector<8x32xf32>
    %462 = vector.extract_strided_slice %447 {offsets = [0, 96], sizes = [8, 32], strides = [1, 1]} : vector<8x128xf32> to vector<8x32xf32>
    %463 = arith.negf %462 : vector<8x32xf32>
    %464 = math.exp %463 : vector<8x32xf32>
    %cst_230 = arith.constant 1.000000e+00 : f32
    %465 = vector.broadcast %cst_230 : f32 to vector<8x32xf32>
    %466 = arith.addf %465, %464 : vector<8x32xf32>
    %467 = arith.divf %465, %466 : vector<8x32xf32>
    %468 = arith.mulf %459, %438 : vector<8x32xf32>
    %469 = arith.mulf %453, %461 : vector<8x32xf32>
    %470 = arith.addf %468, %469 : vector<8x32xf32>
    %471 = math.tanh %470 : vector<8x32xf32>
    %472 = arith.mulf %467, %471 : vector<8x32xf32>
    %c1_231 = arith.constant 1 : index
    %c0_232 = arith.constant 0 : index
    %c0_233 = arith.constant 0 : index
    %473 = vector.load %arg8[%c1_231, %c0_232, %c0_233] : memref<2x8x32xf32, #tpu.memory_space<vmem>>, vector<1x8x32xf32>
    %474 = vector.shape_cast %473 : vector<1x8x32xf32> to vector<8x32xf32>
    %475 = vector.shape_cast %470 : vector<8x32xf32> to vector<1x8x32xf32>
    tpu.vector_store %arg8[%c1_231, %c0_232, %c0_233], %475 {strides = array<i32>} : memref<2x8x32xf32, #tpu.memory_space<vmem>>, vector<1x8x32xf32>,
    %c1_234 = arith.constant 1 : index
    %c0_235 = arith.constant 0 : index
    %c0_236 = arith.constant 0 : index
    %476 = vector.load %arg7[%c1_234, %c0_235, %c0_236] : memref<2x8x32xf32, #tpu.memory_space<vmem>>, vector<1x8x32xf32>
    %477 = vector.shape_cast %476 : vector<1x8x32xf32> to vector<8x32xf32>
    %478 = vector.shape_cast %472 : vector<8x32xf32> to vector<1x8x32xf32>
    tpu.vector_store %arg7[%c1_234, %c0_235, %c0_236], %478 {strides = array<i32>} : memref<2x8x32xf32, #tpu.memory_space<vmem>>, vector<1x8x32xf32>,
    %479 = arith.index_cast %c4_i32 : i32 to index
    %c0_237 = arith.constant 0 : index
    %c0_238 = arith.constant 0 : index
    %480 = vector.load %arg9[%479, %c0_237, %c0_238] : memref<8x8x32xf32, #tpu.memory_space<vmem>>, vector<1x8x32xf32>
    %481 = vector.shape_cast %480 : vector<1x8x32xf32> to vector<8x32xf32>
    %482 = vector.shape_cast %472 : vector<8x32xf32> to vector<1x8x32xf32>
    tpu.vector_store %arg9[%479, %c0_237, %c0_238], %482 {strides = array<i32>} : memref<8x8x32xf32, #tpu.memory_space<vmem>>, vector<1x8x32xf32>,
    %c5_i32 = arith.constant 5 : i32
    %483 = arith.index_cast %c5_i32 : i32 to index
    %c0_239 = arith.constant 0 : index
    %c0_240 = arith.constant 0 : index
    %484 = vector.load %arg1[%483, %c0_239, %c0_240] : memref<8x8x32xbf16, #tpu.memory_space<vmem>>, vector<1x8x32xbf16>
    %485 = vector.shape_cast %484 : vector<1x8x32xbf16> to vector<8x32xbf16>
    %c0_241 = arith.constant 0 : index
    %c0_242 = arith.constant 0 : index
    %c0_243 = arith.constant 0 : index
    %486 = vector.load %arg7[%c0_241, %c0_242, %c0_243] : memref<2x8x32xf32, #tpu.memory_space<vmem>>, vector<1x8x32xf32>
    %487 = vector.shape_cast %486 : vector<1x8x32xf32> to vector<8x32xf32>
    %c0_244 = arith.constant 0 : index
    %c0_245 = arith.constant 0 : index
    %c0_246 = arith.constant 0 : index
    %488 = vector.load %arg8[%c0_244, %c0_245, %c0_246] : memref<2x8x32xf32, #tpu.memory_space<vmem>>, vector<1x8x32xf32>
    %489 = vector.shape_cast %488 : vector<1x8x32xf32> to vector<8x32xf32>
    %490 = arith.truncf %487 : vector<8x32xf32> to vector<8x32xbf16>
    %491 = tpu.concatenate %485, %490 in 1 : vector<8x32xbf16>, vector<8x32xbf16> -> vector<8x64xbf16>
    %c0_247 = arith.constant 0 : index
    %c0_248 = arith.constant 0 : index
    %c0_249 = arith.constant 0 : index
    %492 = vector.load %arg2[%c0_247, %c0_248, %c0_249] : memref<2x64x128xbf16, #tpu.memory_space<vmem>>, vector<1x64x128xbf16>
    %493 = vector.shape_cast %492 : vector<1x64x128xbf16> to vector<64x128xbf16>
    %cst_250 = arith.constant dense<0.000000e+00> : vector<8x128xf32>
    %494 = tpu.matmul %491, %493, %cst_250 {dimension_numbers = #tpu.dot_dimension_numbers<[1], [0], [0], [1], [0, 0, 1, 1], [], []>} : vector<8x64xbf16>, vector<64x128xbf16>, vector<8x128xf32> -> vector<8x128xf32>
    %c0_251 = arith.constant 0 : index
    %c0_252 = arith.constant 0 : index
    %c0_253 = arith.constant 0 : index
    %495 = vector.load %arg3[%c0_251, %c0_252, %c0_253] : memref<2x1x128xf32, #tpu.memory_space<vmem>>, vector<1x1x128xf32>
    %496 = vector.shape_cast %495 : vector<1x1x128xf32> to vector<1x128xf32>
    %497 = vector.broadcast %496 : vector<1x128xf32> to vector<8x128xf32>
    %498 = arith.addf %494, %497 : vector<8x128xf32>
    %499 = vector.extract_strided_slice %498 {offsets = [0, 0], sizes = [8, 32], strides = [1, 1]} : vector<8x128xf32> to vector<8x32xf32>
    %500 = arith.negf %499 : vector<8x32xf32>
    %501 = math.exp %500 : vector<8x32xf32>
    %cst_254 = arith.constant 1.000000e+00 : f32
    %502 = vector.broadcast %cst_254 : f32 to vector<8x32xf32>
    %503 = arith.addf %502, %501 : vector<8x32xf32>
    %504 = arith.divf %502, %503 : vector<8x32xf32>
    %505 = vector.extract_strided_slice %498 {offsets = [0, 32], sizes = [8, 32], strides = [1, 1]} : vector<8x128xf32> to vector<8x32xf32>
    %506 = arith.negf %505 : vector<8x32xf32>
    %507 = math.exp %506 : vector<8x32xf32>
    %cst_255 = arith.constant 1.000000e+00 : f32
    %508 = vector.broadcast %cst_255 : f32 to vector<8x32xf32>
    %509 = arith.addf %508, %507 : vector<8x32xf32>
    %510 = arith.divf %508, %509 : vector<8x32xf32>
    %511 = vector.extract_strided_slice %498 {offsets = [0, 64], sizes = [8, 32], strides = [1, 1]} : vector<8x128xf32> to vector<8x32xf32>
    %512 = math.tanh %511 : vector<8x32xf32>
    %513 = vector.extract_strided_slice %498 {offsets = [0, 96], sizes = [8, 32], strides = [1, 1]} : vector<8x128xf32> to vector<8x32xf32>
    %514 = arith.negf %513 : vector<8x32xf32>
    %515 = math.exp %514 : vector<8x32xf32>
    %cst_256 = arith.constant 1.000000e+00 : f32
    %516 = vector.broadcast %cst_256 : f32 to vector<8x32xf32>
    %517 = arith.addf %516, %515 : vector<8x32xf32>
    %518 = arith.divf %516, %517 : vector<8x32xf32>
    %519 = arith.mulf %510, %489 : vector<8x32xf32>
    %520 = arith.mulf %504, %512 : vector<8x32xf32>
    %521 = arith.addf %519, %520 : vector<8x32xf32>
    %522 = math.tanh %521 : vector<8x32xf32>
    %523 = arith.mulf %518, %522 : vector<8x32xf32>
    %c0_257 = arith.constant 0 : index
    %c0_258 = arith.constant 0 : index
    %c0_259 = arith.constant 0 : index
    %524 = vector.load %arg8[%c0_257, %c0_258, %c0_259] : memref<2x8x32xf32, #tpu.memory_space<vmem>>, vector<1x8x32xf32>
    %525 = vector.shape_cast %524 : vector<1x8x32xf32> to vector<8x32xf32>
    %526 = vector.shape_cast %521 : vector<8x32xf32> to vector<1x8x32xf32>
    tpu.vector_store %arg8[%c0_257, %c0_258, %c0_259], %526 {strides = array<i32>} : memref<2x8x32xf32, #tpu.memory_space<vmem>>, vector<1x8x32xf32>,
    %c0_260 = arith.constant 0 : index
    %c0_261 = arith.constant 0 : index
    %c0_262 = arith.constant 0 : index
    %527 = vector.load %arg7[%c0_260, %c0_261, %c0_262] : memref<2x8x32xf32, #tpu.memory_space<vmem>>, vector<1x8x32xf32>
    %528 = vector.shape_cast %527 : vector<1x8x32xf32> to vector<8x32xf32>
    %529 = vector.shape_cast %523 : vector<8x32xf32> to vector<1x8x32xf32>
    tpu.vector_store %arg7[%c0_260, %c0_261, %c0_262], %529 {strides = array<i32>} : memref<2x8x32xf32, #tpu.memory_space<vmem>>, vector<1x8x32xf32>,
    %530 = arith.truncf %523 : vector<8x32xf32> to vector<8x32xbf16>
    %c1_263 = arith.constant 1 : index
    %c0_264 = arith.constant 0 : index
    %c0_265 = arith.constant 0 : index
    %531 = vector.load %arg7[%c1_263, %c0_264, %c0_265] : memref<2x8x32xf32, #tpu.memory_space<vmem>>, vector<1x8x32xf32>
    %532 = vector.shape_cast %531 : vector<1x8x32xf32> to vector<8x32xf32>
    %c1_266 = arith.constant 1 : index
    %c0_267 = arith.constant 0 : index
    %c0_268 = arith.constant 0 : index
    %533 = vector.load %arg8[%c1_266, %c0_267, %c0_268] : memref<2x8x32xf32, #tpu.memory_space<vmem>>, vector<1x8x32xf32>
    %534 = vector.shape_cast %533 : vector<1x8x32xf32> to vector<8x32xf32>
    %535 = arith.truncf %532 : vector<8x32xf32> to vector<8x32xbf16>
    %536 = tpu.concatenate %530, %535 in 1 : vector<8x32xbf16>, vector<8x32xbf16> -> vector<8x64xbf16>
    %c1_269 = arith.constant 1 : index
    %c0_270 = arith.constant 0 : index
    %c0_271 = arith.constant 0 : index
    %537 = vector.load %arg2[%c1_269, %c0_270, %c0_271] : memref<2x64x128xbf16, #tpu.memory_space<vmem>>, vector<1x64x128xbf16>
    %538 = vector.shape_cast %537 : vector<1x64x128xbf16> to vector<64x128xbf16>
    %cst_272 = arith.constant dense<0.000000e+00> : vector<8x128xf32>
    %539 = tpu.matmul %536, %538, %cst_272 {dimension_numbers = #tpu.dot_dimension_numbers<[1], [0], [0], [1], [0, 0, 1, 1], [], []>} : vector<8x64xbf16>, vector<64x128xbf16>, vector<8x128xf32> -> vector<8x128xf32>
    %c1_273 = arith.constant 1 : index
    %c0_274 = arith.constant 0 : index
    %c0_275 = arith.constant 0 : index
    %540 = vector.load %arg3[%c1_273, %c0_274, %c0_275] : memref<2x1x128xf32, #tpu.memory_space<vmem>>, vector<1x1x128xf32>
    %541 = vector.shape_cast %540 : vector<1x1x128xf32> to vector<1x128xf32>
    %542 = vector.broadcast %541 : vector<1x128xf32> to vector<8x128xf32>
    %543 = arith.addf %539, %542 : vector<8x128xf32>
    %544 = vector.extract_strided_slice %543 {offsets = [0, 0], sizes = [8, 32], strides = [1, 1]} : vector<8x128xf32> to vector<8x32xf32>
    %545 = arith.negf %544 : vector<8x32xf32>
    %546 = math.exp %545 : vector<8x32xf32>
    %cst_276 = arith.constant 1.000000e+00 : f32
    %547 = vector.broadcast %cst_276 : f32 to vector<8x32xf32>
    %548 = arith.addf %547, %546 : vector<8x32xf32>
    %549 = arith.divf %547, %548 : vector<8x32xf32>
    %550 = vector.extract_strided_slice %543 {offsets = [0, 32], sizes = [8, 32], strides = [1, 1]} : vector<8x128xf32> to vector<8x32xf32>
    %551 = arith.negf %550 : vector<8x32xf32>
    %552 = math.exp %551 : vector<8x32xf32>
    %cst_277 = arith.constant 1.000000e+00 : f32
    %553 = vector.broadcast %cst_277 : f32 to vector<8x32xf32>
    %554 = arith.addf %553, %552 : vector<8x32xf32>
    %555 = arith.divf %553, %554 : vector<8x32xf32>
    %556 = vector.extract_strided_slice %543 {offsets = [0, 64], sizes = [8, 32], strides = [1, 1]} : vector<8x128xf32> to vector<8x32xf32>
    %557 = math.tanh %556 : vector<8x32xf32>
    %558 = vector.extract_strided_slice %543 {offsets = [0, 96], sizes = [8, 32], strides = [1, 1]} : vector<8x128xf32> to vector<8x32xf32>
    %559 = arith.negf %558 : vector<8x32xf32>
    %560 = math.exp %559 : vector<8x32xf32>
    %cst_278 = arith.constant 1.000000e+00 : f32
    %561 = vector.broadcast %cst_278 : f32 to vector<8x32xf32>
    %562 = arith.addf %561, %560 : vector<8x32xf32>
    %563 = arith.divf %561, %562 : vector<8x32xf32>
    %564 = arith.mulf %555, %534 : vector<8x32xf32>
    %565 = arith.mulf %549, %557 : vector<8x32xf32>
    %566 = arith.addf %564, %565 : vector<8x32xf32>
    %567 = math.tanh %566 : vector<8x32xf32>
    %568 = arith.mulf %563, %567 : vector<8x32xf32>
    %c1_279 = arith.constant 1 : index
    %c0_280 = arith.constant 0 : index
    %c0_281 = arith.constant 0 : index
    %569 = vector.load %arg8[%c1_279, %c0_280, %c0_281] : memref<2x8x32xf32, #tpu.memory_space<vmem>>, vector<1x8x32xf32>
    %570 = vector.shape_cast %569 : vector<1x8x32xf32> to vector<8x32xf32>
    %571 = vector.shape_cast %566 : vector<8x32xf32> to vector<1x8x32xf32>
    tpu.vector_store %arg8[%c1_279, %c0_280, %c0_281], %571 {strides = array<i32>} : memref<2x8x32xf32, #tpu.memory_space<vmem>>, vector<1x8x32xf32>,
    %c1_282 = arith.constant 1 : index
    %c0_283 = arith.constant 0 : index
    %c0_284 = arith.constant 0 : index
    %572 = vector.load %arg7[%c1_282, %c0_283, %c0_284] : memref<2x8x32xf32, #tpu.memory_space<vmem>>, vector<1x8x32xf32>
    %573 = vector.shape_cast %572 : vector<1x8x32xf32> to vector<8x32xf32>
    %574 = vector.shape_cast %568 : vector<8x32xf32> to vector<1x8x32xf32>
    tpu.vector_store %arg7[%c1_282, %c0_283, %c0_284], %574 {strides = array<i32>} : memref<2x8x32xf32, #tpu.memory_space<vmem>>, vector<1x8x32xf32>,
    %575 = arith.index_cast %c5_i32 : i32 to index
    %c0_285 = arith.constant 0 : index
    %c0_286 = arith.constant 0 : index
    %576 = vector.load %arg9[%575, %c0_285, %c0_286] : memref<8x8x32xf32, #tpu.memory_space<vmem>>, vector<1x8x32xf32>
    %577 = vector.shape_cast %576 : vector<1x8x32xf32> to vector<8x32xf32>
    %578 = vector.shape_cast %568 : vector<8x32xf32> to vector<1x8x32xf32>
    tpu.vector_store %arg9[%575, %c0_285, %c0_286], %578 {strides = array<i32>} : memref<8x8x32xf32, #tpu.memory_space<vmem>>, vector<1x8x32xf32>,
    %c6_i32 = arith.constant 6 : i32
    %579 = arith.index_cast %c6_i32 : i32 to index
    %c0_287 = arith.constant 0 : index
    %c0_288 = arith.constant 0 : index
    %580 = vector.load %arg1[%579, %c0_287, %c0_288] : memref<8x8x32xbf16, #tpu.memory_space<vmem>>, vector<1x8x32xbf16>
    %581 = vector.shape_cast %580 : vector<1x8x32xbf16> to vector<8x32xbf16>
    %c0_289 = arith.constant 0 : index
    %c0_290 = arith.constant 0 : index
    %c0_291 = arith.constant 0 : index
    %582 = vector.load %arg7[%c0_289, %c0_290, %c0_291] : memref<2x8x32xf32, #tpu.memory_space<vmem>>, vector<1x8x32xf32>
    %583 = vector.shape_cast %582 : vector<1x8x32xf32> to vector<8x32xf32>
    %c0_292 = arith.constant 0 : index
    %c0_293 = arith.constant 0 : index
    %c0_294 = arith.constant 0 : index
    %584 = vector.load %arg8[%c0_292, %c0_293, %c0_294] : memref<2x8x32xf32, #tpu.memory_space<vmem>>, vector<1x8x32xf32>
    %585 = vector.shape_cast %584 : vector<1x8x32xf32> to vector<8x32xf32>
    %586 = arith.truncf %583 : vector<8x32xf32> to vector<8x32xbf16>
    %587 = tpu.concatenate %581, %586 in 1 : vector<8x32xbf16>, vector<8x32xbf16> -> vector<8x64xbf16>
    %c0_295 = arith.constant 0 : index
    %c0_296 = arith.constant 0 : index
    %c0_297 = arith.constant 0 : index
    %588 = vector.load %arg2[%c0_295, %c0_296, %c0_297] : memref<2x64x128xbf16, #tpu.memory_space<vmem>>, vector<1x64x128xbf16>
    %589 = vector.shape_cast %588 : vector<1x64x128xbf16> to vector<64x128xbf16>
    %cst_298 = arith.constant dense<0.000000e+00> : vector<8x128xf32>
    %590 = tpu.matmul %587, %589, %cst_298 {dimension_numbers = #tpu.dot_dimension_numbers<[1], [0], [0], [1], [0, 0, 1, 1], [], []>} : vector<8x64xbf16>, vector<64x128xbf16>, vector<8x128xf32> -> vector<8x128xf32>
    %c0_299 = arith.constant 0 : index
    %c0_300 = arith.constant 0 : index
    %c0_301 = arith.constant 0 : index
    %591 = vector.load %arg3[%c0_299, %c0_300, %c0_301] : memref<2x1x128xf32, #tpu.memory_space<vmem>>, vector<1x1x128xf32>
    %592 = vector.shape_cast %591 : vector<1x1x128xf32> to vector<1x128xf32>
    %593 = vector.broadcast %592 : vector<1x128xf32> to vector<8x128xf32>
    %594 = arith.addf %590, %593 : vector<8x128xf32>
    %595 = vector.extract_strided_slice %594 {offsets = [0, 0], sizes = [8, 32], strides = [1, 1]} : vector<8x128xf32> to vector<8x32xf32>
    %596 = arith.negf %595 : vector<8x32xf32>
    %597 = math.exp %596 : vector<8x32xf32>
    %cst_302 = arith.constant 1.000000e+00 : f32
    %598 = vector.broadcast %cst_302 : f32 to vector<8x32xf32>
    %599 = arith.addf %598, %597 : vector<8x32xf32>
    %600 = arith.divf %598, %599 : vector<8x32xf32>
    %601 = vector.extract_strided_slice %594 {offsets = [0, 32], sizes = [8, 32], strides = [1, 1]} : vector<8x128xf32> to vector<8x32xf32>
    %602 = arith.negf %601 : vector<8x32xf32>
    %603 = math.exp %602 : vector<8x32xf32>
    %cst_303 = arith.constant 1.000000e+00 : f32
    %604 = vector.broadcast %cst_303 : f32 to vector<8x32xf32>
    %605 = arith.addf %604, %603 : vector<8x32xf32>
    %606 = arith.divf %604, %605 : vector<8x32xf32>
    %607 = vector.extract_strided_slice %594 {offsets = [0, 64], sizes = [8, 32], strides = [1, 1]} : vector<8x128xf32> to vector<8x32xf32>
    %608 = math.tanh %607 : vector<8x32xf32>
    %609 = vector.extract_strided_slice %594 {offsets = [0, 96], sizes = [8, 32], strides = [1, 1]} : vector<8x128xf32> to vector<8x32xf32>
    %610 = arith.negf %609 : vector<8x32xf32>
    %611 = math.exp %610 : vector<8x32xf32>
    %cst_304 = arith.constant 1.000000e+00 : f32
    %612 = vector.broadcast %cst_304 : f32 to vector<8x32xf32>
    %613 = arith.addf %612, %611 : vector<8x32xf32>
    %614 = arith.divf %612, %613 : vector<8x32xf32>
    %615 = arith.mulf %606, %585 : vector<8x32xf32>
    %616 = arith.mulf %600, %608 : vector<8x32xf32>
    %617 = arith.addf %615, %616 : vector<8x32xf32>
    %618 = math.tanh %617 : vector<8x32xf32>
    %619 = arith.mulf %614, %618 : vector<8x32xf32>
    %c0_305 = arith.constant 0 : index
    %c0_306 = arith.constant 0 : index
    %c0_307 = arith.constant 0 : index
    %620 = vector.load %arg8[%c0_305, %c0_306, %c0_307] : memref<2x8x32xf32, #tpu.memory_space<vmem>>, vector<1x8x32xf32>
    %621 = vector.shape_cast %620 : vector<1x8x32xf32> to vector<8x32xf32>
    %622 = vector.shape_cast %617 : vector<8x32xf32> to vector<1x8x32xf32>
    tpu.vector_store %arg8[%c0_305, %c0_306, %c0_307], %622 {strides = array<i32>} : memref<2x8x32xf32, #tpu.memory_space<vmem>>, vector<1x8x32xf32>,
    %c0_308 = arith.constant 0 : index
    %c0_309 = arith.constant 0 : index
    %c0_310 = arith.constant 0 : index
    %623 = vector.load %arg7[%c0_308, %c0_309, %c0_310] : memref<2x8x32xf32, #tpu.memory_space<vmem>>, vector<1x8x32xf32>
    %624 = vector.shape_cast %623 : vector<1x8x32xf32> to vector<8x32xf32>
    %625 = vector.shape_cast %619 : vector<8x32xf32> to vector<1x8x32xf32>
    tpu.vector_store %arg7[%c0_308, %c0_309, %c0_310], %625 {strides = array<i32>} : memref<2x8x32xf32, #tpu.memory_space<vmem>>, vector<1x8x32xf32>,
    %626 = arith.truncf %619 : vector<8x32xf32> to vector<8x32xbf16>
    %c1_311 = arith.constant 1 : index
    %c0_312 = arith.constant 0 : index
    %c0_313 = arith.constant 0 : index
    %627 = vector.load %arg7[%c1_311, %c0_312, %c0_313] : memref<2x8x32xf32, #tpu.memory_space<vmem>>, vector<1x8x32xf32>
    %628 = vector.shape_cast %627 : vector<1x8x32xf32> to vector<8x32xf32>
    %c1_314 = arith.constant 1 : index
    %c0_315 = arith.constant 0 : index
    %c0_316 = arith.constant 0 : index
    %629 = vector.load %arg8[%c1_314, %c0_315, %c0_316] : memref<2x8x32xf32, #tpu.memory_space<vmem>>, vector<1x8x32xf32>
    %630 = vector.shape_cast %629 : vector<1x8x32xf32> to vector<8x32xf32>
    %631 = arith.truncf %628 : vector<8x32xf32> to vector<8x32xbf16>
    %632 = tpu.concatenate %626, %631 in 1 : vector<8x32xbf16>, vector<8x32xbf16> -> vector<8x64xbf16>
    %c1_317 = arith.constant 1 : index
    %c0_318 = arith.constant 0 : index
    %c0_319 = arith.constant 0 : index
    %633 = vector.load %arg2[%c1_317, %c0_318, %c0_319] : memref<2x64x128xbf16, #tpu.memory_space<vmem>>, vector<1x64x128xbf16>
    %634 = vector.shape_cast %633 : vector<1x64x128xbf16> to vector<64x128xbf16>
    %cst_320 = arith.constant dense<0.000000e+00> : vector<8x128xf32>
    %635 = tpu.matmul %632, %634, %cst_320 {dimension_numbers = #tpu.dot_dimension_numbers<[1], [0], [0], [1], [0, 0, 1, 1], [], []>} : vector<8x64xbf16>, vector<64x128xbf16>, vector<8x128xf32> -> vector<8x128xf32>
    %c1_321 = arith.constant 1 : index
    %c0_322 = arith.constant 0 : index
    %c0_323 = arith.constant 0 : index
    %636 = vector.load %arg3[%c1_321, %c0_322, %c0_323] : memref<2x1x128xf32, #tpu.memory_space<vmem>>, vector<1x1x128xf32>
    %637 = vector.shape_cast %636 : vector<1x1x128xf32> to vector<1x128xf32>
    %638 = vector.broadcast %637 : vector<1x128xf32> to vector<8x128xf32>
    %639 = arith.addf %635, %638 : vector<8x128xf32>
    %640 = vector.extract_strided_slice %639 {offsets = [0, 0], sizes = [8, 32], strides = [1, 1]} : vector<8x128xf32> to vector<8x32xf32>
    %641 = arith.negf %640 : vector<8x32xf32>
    %642 = math.exp %641 : vector<8x32xf32>
    %cst_324 = arith.constant 1.000000e+00 : f32
    %643 = vector.broadcast %cst_324 : f32 to vector<8x32xf32>
    %644 = arith.addf %643, %642 : vector<8x32xf32>
    %645 = arith.divf %643, %644 : vector<8x32xf32>
    %646 = vector.extract_strided_slice %639 {offsets = [0, 32], sizes = [8, 32], strides = [1, 1]} : vector<8x128xf32> to vector<8x32xf32>
    %647 = arith.negf %646 : vector<8x32xf32>
    %648 = math.exp %647 : vector<8x32xf32>
    %cst_325 = arith.constant 1.000000e+00 : f32
    %649 = vector.broadcast %cst_325 : f32 to vector<8x32xf32>
    %650 = arith.addf %649, %648 : vector<8x32xf32>
    %651 = arith.divf %649, %650 : vector<8x32xf32>
    %652 = vector.extract_strided_slice %639 {offsets = [0, 64], sizes = [8, 32], strides = [1, 1]} : vector<8x128xf32> to vector<8x32xf32>
    %653 = math.tanh %652 : vector<8x32xf32>
    %654 = vector.extract_strided_slice %639 {offsets = [0, 96], sizes = [8, 32], strides = [1, 1]} : vector<8x128xf32> to vector<8x32xf32>
    %655 = arith.negf %654 : vector<8x32xf32>
    %656 = math.exp %655 : vector<8x32xf32>
    %cst_326 = arith.constant 1.000000e+00 : f32
    %657 = vector.broadcast %cst_326 : f32 to vector<8x32xf32>
    %658 = arith.addf %657, %656 : vector<8x32xf32>
    %659 = arith.divf %657, %658 : vector<8x32xf32>
    %660 = arith.mulf %651, %630 : vector<8x32xf32>
    %661 = arith.mulf %645, %653 : vector<8x32xf32>
    %662 = arith.addf %660, %661 : vector<8x32xf32>
    %663 = math.tanh %662 : vector<8x32xf32>
    %664 = arith.mulf %659, %663 : vector<8x32xf32>
    %c1_327 = arith.constant 1 : index
    %c0_328 = arith.constant 0 : index
    %c0_329 = arith.constant 0 : index
    %665 = vector.load %arg8[%c1_327, %c0_328, %c0_329] : memref<2x8x32xf32, #tpu.memory_space<vmem>>, vector<1x8x32xf32>
    %666 = vector.shape_cast %665 : vector<1x8x32xf32> to vector<8x32xf32>
    %667 = vector.shape_cast %662 : vector<8x32xf32> to vector<1x8x32xf32>
    tpu.vector_store %arg8[%c1_327, %c0_328, %c0_329], %667 {strides = array<i32>} : memref<2x8x32xf32, #tpu.memory_space<vmem>>, vector<1x8x32xf32>,
    %c1_330 = arith.constant 1 : index
    %c0_331 = arith.constant 0 : index
    %c0_332 = arith.constant 0 : index
    %668 = vector.load %arg7[%c1_330, %c0_331, %c0_332] : memref<2x8x32xf32, #tpu.memory_space<vmem>>, vector<1x8x32xf32>
    %669 = vector.shape_cast %668 : vector<1x8x32xf32> to vector<8x32xf32>
    %670 = vector.shape_cast %664 : vector<8x32xf32> to vector<1x8x32xf32>
    tpu.vector_store %arg7[%c1_330, %c0_331, %c0_332], %670 {strides = array<i32>} : memref<2x8x32xf32, #tpu.memory_space<vmem>>, vector<1x8x32xf32>,
    %671 = arith.index_cast %c6_i32 : i32 to index
    %c0_333 = arith.constant 0 : index
    %c0_334 = arith.constant 0 : index
    %672 = vector.load %arg9[%671, %c0_333, %c0_334] : memref<8x8x32xf32, #tpu.memory_space<vmem>>, vector<1x8x32xf32>
    %673 = vector.shape_cast %672 : vector<1x8x32xf32> to vector<8x32xf32>
    %674 = vector.shape_cast %664 : vector<8x32xf32> to vector<1x8x32xf32>
    tpu.vector_store %arg9[%671, %c0_333, %c0_334], %674 {strides = array<i32>} : memref<8x8x32xf32, #tpu.memory_space<vmem>>, vector<1x8x32xf32>,
    %c7_i32 = arith.constant 7 : i32
    %675 = arith.index_cast %c7_i32 : i32 to index
    %c0_335 = arith.constant 0 : index
    %c0_336 = arith.constant 0 : index
    %676 = vector.load %arg1[%675, %c0_335, %c0_336] : memref<8x8x32xbf16, #tpu.memory_space<vmem>>, vector<1x8x32xbf16>
    %677 = vector.shape_cast %676 : vector<1x8x32xbf16> to vector<8x32xbf16>
    %c0_337 = arith.constant 0 : index
    %c0_338 = arith.constant 0 : index
    %c0_339 = arith.constant 0 : index
    %678 = vector.load %arg7[%c0_337, %c0_338, %c0_339] : memref<2x8x32xf32, #tpu.memory_space<vmem>>, vector<1x8x32xf32>
    %679 = vector.shape_cast %678 : vector<1x8x32xf32> to vector<8x32xf32>
    %c0_340 = arith.constant 0 : index
    %c0_341 = arith.constant 0 : index
    %c0_342 = arith.constant 0 : index
    %680 = vector.load %arg8[%c0_340, %c0_341, %c0_342] : memref<2x8x32xf32, #tpu.memory_space<vmem>>, vector<1x8x32xf32>
    %681 = vector.shape_cast %680 : vector<1x8x32xf32> to vector<8x32xf32>
    %682 = arith.truncf %679 : vector<8x32xf32> to vector<8x32xbf16>
    %683 = tpu.concatenate %677, %682 in 1 : vector<8x32xbf16>, vector<8x32xbf16> -> vector<8x64xbf16>
    %c0_343 = arith.constant 0 : index
    %c0_344 = arith.constant 0 : index
    %c0_345 = arith.constant 0 : index
    %684 = vector.load %arg2[%c0_343, %c0_344, %c0_345] : memref<2x64x128xbf16, #tpu.memory_space<vmem>>, vector<1x64x128xbf16>
    %685 = vector.shape_cast %684 : vector<1x64x128xbf16> to vector<64x128xbf16>
    %cst_346 = arith.constant dense<0.000000e+00> : vector<8x128xf32>
    %686 = tpu.matmul %683, %685, %cst_346 {dimension_numbers = #tpu.dot_dimension_numbers<[1], [0], [0], [1], [0, 0, 1, 1], [], []>} : vector<8x64xbf16>, vector<64x128xbf16>, vector<8x128xf32> -> vector<8x128xf32>
    %c0_347 = arith.constant 0 : index
    %c0_348 = arith.constant 0 : index
    %c0_349 = arith.constant 0 : index
    %687 = vector.load %arg3[%c0_347, %c0_348, %c0_349] : memref<2x1x128xf32, #tpu.memory_space<vmem>>, vector<1x1x128xf32>
    %688 = vector.shape_cast %687 : vector<1x1x128xf32> to vector<1x128xf32>
    %689 = vector.broadcast %688 : vector<1x128xf32> to vector<8x128xf32>
    %690 = arith.addf %686, %689 : vector<8x128xf32>
    %691 = vector.extract_strided_slice %690 {offsets = [0, 0], sizes = [8, 32], strides = [1, 1]} : vector<8x128xf32> to vector<8x32xf32>
    %692 = arith.negf %691 : vector<8x32xf32>
    %693 = math.exp %692 : vector<8x32xf32>
    %cst_350 = arith.constant 1.000000e+00 : f32
    %694 = vector.broadcast %cst_350 : f32 to vector<8x32xf32>
    %695 = arith.addf %694, %693 : vector<8x32xf32>
    %696 = arith.divf %694, %695 : vector<8x32xf32>
    %697 = vector.extract_strided_slice %690 {offsets = [0, 32], sizes = [8, 32], strides = [1, 1]} : vector<8x128xf32> to vector<8x32xf32>
    %698 = arith.negf %697 : vector<8x32xf32>
    %699 = math.exp %698 : vector<8x32xf32>
    %cst_351 = arith.constant 1.000000e+00 : f32
    %700 = vector.broadcast %cst_351 : f32 to vector<8x32xf32>
    %701 = arith.addf %700, %699 : vector<8x32xf32>
    %702 = arith.divf %700, %701 : vector<8x32xf32>
    %703 = vector.extract_strided_slice %690 {offsets = [0, 64], sizes = [8, 32], strides = [1, 1]} : vector<8x128xf32> to vector<8x32xf32>
    %704 = math.tanh %703 : vector<8x32xf32>
    %705 = vector.extract_strided_slice %690 {offsets = [0, 96], sizes = [8, 32], strides = [1, 1]} : vector<8x128xf32> to vector<8x32xf32>
    %706 = arith.negf %705 : vector<8x32xf32>
    %707 = math.exp %706 : vector<8x32xf32>
    %cst_352 = arith.constant 1.000000e+00 : f32
    %708 = vector.broadcast %cst_352 : f32 to vector<8x32xf32>
    %709 = arith.addf %708, %707 : vector<8x32xf32>
    %710 = arith.divf %708, %709 : vector<8x32xf32>
    %711 = arith.mulf %702, %681 : vector<8x32xf32>
    %712 = arith.mulf %696, %704 : vector<8x32xf32>
    %713 = arith.addf %711, %712 : vector<8x32xf32>
    %714 = math.tanh %713 : vector<8x32xf32>
    %715 = arith.mulf %710, %714 : vector<8x32xf32>
    %c0_353 = arith.constant 0 : index
    %c0_354 = arith.constant 0 : index
    %c0_355 = arith.constant 0 : index
    %716 = vector.load %arg8[%c0_353, %c0_354, %c0_355] : memref<2x8x32xf32, #tpu.memory_space<vmem>>, vector<1x8x32xf32>
    %717 = vector.shape_cast %716 : vector<1x8x32xf32> to vector<8x32xf32>
    %718 = vector.shape_cast %713 : vector<8x32xf32> to vector<1x8x32xf32>
    tpu.vector_store %arg8[%c0_353, %c0_354, %c0_355], %718 {strides = array<i32>} : memref<2x8x32xf32, #tpu.memory_space<vmem>>, vector<1x8x32xf32>,
    %c0_356 = arith.constant 0 : index
    %c0_357 = arith.constant 0 : index
    %c0_358 = arith.constant 0 : index
    %719 = vector.load %arg7[%c0_356, %c0_357, %c0_358] : memref<2x8x32xf32, #tpu.memory_space<vmem>>, vector<1x8x32xf32>
    %720 = vector.shape_cast %719 : vector<1x8x32xf32> to vector<8x32xf32>
    %721 = vector.shape_cast %715 : vector<8x32xf32> to vector<1x8x32xf32>
    tpu.vector_store %arg7[%c0_356, %c0_357, %c0_358], %721 {strides = array<i32>} : memref<2x8x32xf32, #tpu.memory_space<vmem>>, vector<1x8x32xf32>,
    %722 = arith.truncf %715 : vector<8x32xf32> to vector<8x32xbf16>
    %c1_359 = arith.constant 1 : index
    %c0_360 = arith.constant 0 : index
    %c0_361 = arith.constant 0 : index
    %723 = vector.load %arg7[%c1_359, %c0_360, %c0_361] : memref<2x8x32xf32, #tpu.memory_space<vmem>>, vector<1x8x32xf32>
    %724 = vector.shape_cast %723 : vector<1x8x32xf32> to vector<8x32xf32>
    %c1_362 = arith.constant 1 : index
    %c0_363 = arith.constant 0 : index
    %c0_364 = arith.constant 0 : index
    %725 = vector.load %arg8[%c1_362, %c0_363, %c0_364] : memref<2x8x32xf32, #tpu.memory_space<vmem>>, vector<1x8x32xf32>
    %726 = vector.shape_cast %725 : vector<1x8x32xf32> to vector<8x32xf32>
    %727 = arith.truncf %724 : vector<8x32xf32> to vector<8x32xbf16>
    %728 = tpu.concatenate %722, %727 in 1 : vector<8x32xbf16>, vector<8x32xbf16> -> vector<8x64xbf16>
    %c1_365 = arith.constant 1 : index
    %c0_366 = arith.constant 0 : index
    %c0_367 = arith.constant 0 : index
    %729 = vector.load %arg2[%c1_365, %c0_366, %c0_367] : memref<2x64x128xbf16, #tpu.memory_space<vmem>>, vector<1x64x128xbf16>
    %730 = vector.shape_cast %729 : vector<1x64x128xbf16> to vector<64x128xbf16>
    %cst_368 = arith.constant dense<0.000000e+00> : vector<8x128xf32>
    %731 = tpu.matmul %728, %730, %cst_368 {dimension_numbers = #tpu.dot_dimension_numbers<[1], [0], [0], [1], [0, 0, 1, 1], [], []>} : vector<8x64xbf16>, vector<64x128xbf16>, vector<8x128xf32> -> vector<8x128xf32>
    %c1_369 = arith.constant 1 : index
    %c0_370 = arith.constant 0 : index
    %c0_371 = arith.constant 0 : index
    %732 = vector.load %arg3[%c1_369, %c0_370, %c0_371] : memref<2x1x128xf32, #tpu.memory_space<vmem>>, vector<1x1x128xf32>
    %733 = vector.shape_cast %732 : vector<1x1x128xf32> to vector<1x128xf32>
    %734 = vector.broadcast %733 : vector<1x128xf32> to vector<8x128xf32>
    %735 = arith.addf %731, %734 : vector<8x128xf32>
    %736 = vector.extract_strided_slice %735 {offsets = [0, 0], sizes = [8, 32], strides = [1, 1]} : vector<8x128xf32> to vector<8x32xf32>
    %737 = arith.negf %736 : vector<8x32xf32>
    %738 = math.exp %737 : vector<8x32xf32>
    %cst_372 = arith.constant 1.000000e+00 : f32
    %739 = vector.broadcast %cst_372 : f32 to vector<8x32xf32>
    %740 = arith.addf %739, %738 : vector<8x32xf32>
    %741 = arith.divf %739, %740 : vector<8x32xf32>
    %742 = vector.extract_strided_slice %735 {offsets = [0, 32], sizes = [8, 32], strides = [1, 1]} : vector<8x128xf32> to vector<8x32xf32>
    %743 = arith.negf %742 : vector<8x32xf32>
    %744 = math.exp %743 : vector<8x32xf32>
    %cst_373 = arith.constant 1.000000e+00 : f32
    %745 = vector.broadcast %cst_373 : f32 to vector<8x32xf32>
    %746 = arith.addf %745, %744 : vector<8x32xf32>
    %747 = arith.divf %745, %746 : vector<8x32xf32>
    %748 = vector.extract_strided_slice %735 {offsets = [0, 64], sizes = [8, 32], strides = [1, 1]} : vector<8x128xf32> to vector<8x32xf32>
    %749 = math.tanh %748 : vector<8x32xf32>
    %750 = vector.extract_strided_slice %735 {offsets = [0, 96], sizes = [8, 32], strides = [1, 1]} : vector<8x128xf32> to vector<8x32xf32>
    %751 = arith.negf %750 : vector<8x32xf32>
    %752 = math.exp %751 : vector<8x32xf32>
    %cst_374 = arith.constant 1.000000e+00 : f32
    %753 = vector.broadcast %cst_374 : f32 to vector<8x32xf32>
    %754 = arith.addf %753, %752 : vector<8x32xf32>
    %755 = arith.divf %753, %754 : vector<8x32xf32>
    %756 = arith.mulf %747, %726 : vector<8x32xf32>
    %757 = arith.mulf %741, %749 : vector<8x32xf32>
    %758 = arith.addf %756, %757 : vector<8x32xf32>
    %759 = math.tanh %758 : vector<8x32xf32>
    %760 = arith.mulf %755, %759 : vector<8x32xf32>
    %c1_375 = arith.constant 1 : index
    %c0_376 = arith.constant 0 : index
    %c0_377 = arith.constant 0 : index
    %761 = vector.load %arg8[%c1_375, %c0_376, %c0_377] : memref<2x8x32xf32, #tpu.memory_space<vmem>>, vector<1x8x32xf32>
    %762 = vector.shape_cast %761 : vector<1x8x32xf32> to vector<8x32xf32>
    %763 = vector.shape_cast %758 : vector<8x32xf32> to vector<1x8x32xf32>
    tpu.vector_store %arg8[%c1_375, %c0_376, %c0_377], %763 {strides = array<i32>} : memref<2x8x32xf32, #tpu.memory_space<vmem>>, vector<1x8x32xf32>,
    %c1_378 = arith.constant 1 : index
    %c0_379 = arith.constant 0 : index
    %c0_380 = arith.constant 0 : index
    %764 = vector.load %arg7[%c1_378, %c0_379, %c0_380] : memref<2x8x32xf32, #tpu.memory_space<vmem>>, vector<1x8x32xf32>
    %765 = vector.shape_cast %764 : vector<1x8x32xf32> to vector<8x32xf32>
    %766 = vector.shape_cast %760 : vector<8x32xf32> to vector<1x8x32xf32>
    tpu.vector_store %arg7[%c1_378, %c0_379, %c0_380], %766 {strides = array<i32>} : memref<2x8x32xf32, #tpu.memory_space<vmem>>, vector<1x8x32xf32>,
    %767 = arith.index_cast %c7_i32 : i32 to index
    %c0_381 = arith.constant 0 : index
    %c0_382 = arith.constant 0 : index
    %768 = vector.load %arg9[%767, %c0_381, %c0_382] : memref<8x8x32xf32, #tpu.memory_space<vmem>>, vector<1x8x32xf32>
    %769 = vector.shape_cast %768 : vector<1x8x32xf32> to vector<8x32xf32>
    %770 = vector.shape_cast %760 : vector<8x32xf32> to vector<1x8x32xf32>
    tpu.vector_store %arg9[%767, %c0_381, %c0_382], %770 {strides = array<i32>} : memref<8x8x32xf32, #tpu.memory_space<vmem>>, vector<1x8x32xf32>,
    %c8_i32 = arith.constant 8 : i32
    %c0_383 = arith.constant 0 : index
    %c0_384 = arith.constant 0 : index
    %771 = vector.load %arg4[%c0_383, %c0_384] : memref<1x32xf32, #tpu.memory_space<vmem>>, vector<1x32xf32>
    %c0_385 = arith.constant 0 : index
    %c0_386 = arith.constant 0 : index
    %c0_387 = arith.constant 0 : index
    %772 = vector.load %arg9[%c0_385, %c0_386, %c0_387] : memref<8x8x32xf32, #tpu.memory_space<vmem>>, vector<8x8x32xf32>
    %773 = vector.shape_cast %771 : vector<1x32xf32> to vector<1x1x32xf32>
    %774 = vector.broadcast %773 : vector<1x1x32xf32> to vector<8x8x32xf32>
    %775 = arith.mulf %772, %774 : vector<8x8x32xf32>
    %cst_388 = arith.constant dense<0.000000e+00> : vector<8x8xf32>
    %776 = vector.multi_reduction <add>, %775, %cst_388 [2] : vector<8x8x32xf32> to vector<8x8xf32>
    %c0_389 = arith.constant 0 : index
    %c0_390 = arith.constant 0 : index
    %777 = memref.load %arg5[%c0_389, %c0_390] : memref<1x1xf32, #tpu.memory_space<smem>>
    %778 = vector.broadcast %777 : f32 to vector<8x8xf32>
    %779 = arith.addf %776, %778 : vector<8x8xf32>
    %780 = arith.negf %779 : vector<8x8xf32>
    %781 = math.exp %780 : vector<8x8xf32>
    %cst_391 = arith.constant 1.000000e+00 : f32
    %782 = vector.broadcast %cst_391 : f32 to vector<8x8xf32>
    %783 = arith.addf %782, %781 : vector<8x8xf32>
    %784 = arith.divf %782, %783 : vector<8x8xf32>
    %c0_392 = arith.constant 0 : index
    %c0_393 = arith.constant 0 : index
    %c0_394 = arith.constant 0 : index
    %785 = vector.load %arg6[%c0_392, %c0_393, %c0_394] : memref<1x8x8xf32, #tpu.memory_space<vmem>>, vector<1x8x8xf32>
    %786 = vector.shape_cast %785 : vector<1x8x8xf32> to vector<8x8xf32>
    %787 = vector.shape_cast %784 : vector<8x8xf32> to vector<1x8x8xf32>
    tpu.vector_store %arg6[%c0_392, %c0_393, %c0_394], %787 {strides = array<i32>} : memref<1x8x8xf32, #tpu.memory_space<vmem>>, vector<1x8x8xf32>,
    return
  }
  func.func @transform_0(%arg0: i32) -> (i32, i32, i32) {
    %c0_i32 = arith.constant 0 : i32
    %c0_i32_0 = arith.constant 0 : i32
    %c0_i32_1 = arith.constant 0 : i32
    return %arg0, %c0_i32, %c0_i32_0 : i32, i32, i32
  }
  func.func @transform_1(%arg0: i32) -> (i32, i32, i32) {
    %c0_i32 = arith.constant 0 : i32
    %c0_i32_0 = arith.constant 0 : i32
    %c0_i32_1 = arith.constant 0 : i32
    %c0_i32_2 = arith.constant 0 : i32
    return %c0_i32, %c0_i32_0, %c0_i32_1 : i32, i32, i32
  }
  func.func @transform_2(%arg0: i32) -> (i32, i32, i32) {
    %c0_i32 = arith.constant 0 : i32
    %c0_i32_0 = arith.constant 0 : i32
    %c0_i32_1 = arith.constant 0 : i32
    %c0_i32_2 = arith.constant 0 : i32
    return %c0_i32, %c0_i32_0, %c0_i32_1 : i32, i32, i32
  }
  func.func @transform_3(%arg0: i32) -> (i32, i32) {
    %c0_i32 = arith.constant 0 : i32
    %c0_i32_0 = arith.constant 0 : i32
    %c0_i32_1 = arith.constant 0 : i32
    return %c0_i32, %c0_i32_0 : i32, i32
  }
  func.func @transform_4(%arg0: i32) -> (i32, i32) {
    %c0_i32 = arith.constant 0 : i32
    %c0_i32_0 = arith.constant 0 : i32
    %c0_i32_1 = arith.constant 0 : i32
    return %c0_i32, %c0_i32_0 : i32, i32
  }
  func.func @transform_5(%arg0: i32) -> (i32, i32, i32) {
    %c0_i32 = arith.constant 0 : i32
    %c0_i32_0 = arith.constant 0 : i32
    %c0_i32_1 = arith.constant 0 : i32
    return %arg0, %c0_i32, %c0_i32_0 : i32, i32, i32
  }
}

</mosaic_0001>

<llo_original>
// kernel: tpu_custom_call.1
$region0: #{tpu_custom_call.1}
  #allocation0 [shape = 'u32[]', space=smem, size = 0x4, offset = 0x4, fixed_abs, tag = 'smem constant byte address 0x4 - core index']
  #allocation1 [shape = 'u32[72,128]{1,0:T(1,128)}', space=vmem, size = 0x9000, scoped, tag = 'internal scratch']
  #allocation2 [shape = 'f32[2,8,32]{2,1,0:T(8,128)}', space=vmem, size = 0x2000, scoped, tag = 'scratch operand']
  #allocation3 [shape = 'f32[2,8,32]{2,1,0:T(8,128)}', space=vmem, size = 0x2000, scoped, tag = 'scratch operand']
  #allocation4 [shape = 'f32[8,8,32]{2,1,0:T(8,128)}', space=vmem, size = 0x8000, scoped, tag = 'scratch operand']
  #allocation5 [shape = 'f32[1,1]{1,0:T(1,128)S(6)}', space=smem, size = 0x200, scoped, tag = 'scoped memory for tpu_custom_call.1']
  %s0 = inlined_call_operand.hbm [shape: bf16[8,8,32], index: 0, kind: input, shape index: {}]
  %s1 = inlined_call_operand.hbm [shape: bf16[2,64,128], index: 1, kind: input, shape index: {}]
  %s2 = inlined_call_operand.vmem [shape: f32[2,1,128], index: 2, kind: input, shape index: {}]
  %s3 = inlined_call_operand.vmem [shape: f32[1,32], index: 3, kind: input, shape index: {}]
  %s4 = inlined_call_operand.<no memory space> [shape: f32[1,1], index: 4, kind: input, shape index: {}]
  %s5 = inlined_call_operand.hbm [shape: f32[1,8,8], index: 5, kind: output, shape index: {}]
  %s6 = sld [smem:[#allocation0]]
  $region42: #{tpu_custom_call.1} parent=0
    _
  %s8 = ssub.s32 1, %s6
  %s9 = scalar_select 0, %s8, %s6
  %10 = sst [smem:[#allocation5]] %s4
  $region1: #{tpu_custom_call.1} parent=0
    #allocation6 [shape = 'u8[16384]{0}', space=vmem, size = 0x4000, scoped, tag = 'input window, operand 0, single buffered']
    #allocation7 [shape = 's32[1]{0}', space=sflag, size = 0x4, scoped, tag = 'scoped memory for tpu_custom_call.1']
    #allocation8 [shape = 's32[1]{0}', space=sflag, size = 0x4, scoped, tag = 'scoped memory for tpu_custom_call.1']
    #allocation9 [shape = 'u8[32768]{0}', space=vmem, size = 0x8000, scoped, tag = 'input window, operand 1, single buffered']
    #allocation10 [shape = 's32[1]{0}', space=sflag, size = 0x4, scoped, tag = 'scoped memory for tpu_custom_call.1']
    #allocation11 [shape = 'u8[4096]{0}', space=vmem, size = 0x1000, scoped, tag = 'output window, operand 0, single buffered']
    %11 = vsyncpa [#allocation7], 0
    %12 = vsyncpa [#allocation10], 0
    %13 = vsyncpa [#allocation8], 0
    // Predicated region
    $region2: #{tpu_custom_call.1} parent=1 // pred_check
      _
    $region3: #{tpu_custom_call.1} parent=1 // pred_check_branch
      %15 = sbr.rel (0) target = $region5
    $region4: #{tpu_custom_call.1} parent=1 // pred_region
      %17 = vsyncadd [#allocation7], 0
      %s18 = sshll.u32 %s0, 4
      %s19 = int_to_ptr.hbm [resolvable:$true] %s18
      %s20 = sshll.u32 [#allocation6], 4
      %s21 = int_to_ptr.vmem [resolvable:$true] %s20
      %26 = dma.hbm_to_vmem [thread:$0]  %s19, 512, %s21, [#allocation7], 64, 64, 4
    $region5: #{tpu_custom_call.1} parent=1 // pred_fallthru
      _
    // Predicated region
    $region6: #{tpu_custom_call.1} parent=1 // pred_check
      _
    $region7: #{tpu_custom_call.1} parent=1 // pred_check_branch
      %28 = sbr.rel (0) target = $region9
    $region8: #{tpu_custom_call.1} parent=1 // pred_region
      %30 = vsyncadd [#allocation10], 0
      %s31 = sshll.u32 %s1, 4
      %s32 = int_to_ptr.hbm [resolvable:$true] %s31
      %s33 = sshll.u32 [#allocation9], 4
      %s34 = int_to_ptr.vmem [resolvable:$true] %s33
      %39 = dma.hbm_to_vmem [thread:$0]  %s32, 1024, %s34, [#allocation10], 64, 64, 4
    $region9: #{tpu_custom_call.1} parent=1 // pred_fallthru
      _
    // Predicated region
    $region10: #{tpu_custom_call.1} parent=1 // pred_check
      _
    $region11: #{tpu_custom_call.1} parent=1 // pred_check_branch
      %41 = sbr.rel (0) target = $region13
    $region12: #{tpu_custom_call.1} parent=1 // pred_region
      _
    $region13: #{tpu_custom_call.1} parent=1 // pred_fallthru
      _
    // Predicated region
    $region14: #{tpu_custom_call.1} parent=1 // pred_check
      _
    $region15: #{tpu_custom_call.1} parent=1 // pred_check_branch
      %43 = sbr.rel (0) target = $region17
    $region16: #{tpu_custom_call.1} parent=1 // pred_region
      _
    $region17: #{tpu_custom_call.1} parent=1 // pred_fallthru
      _
    // Predicated region
    $region18: #{tpu_custom_call.1} parent=1 // pred_check
      _
    $region19: #{tpu_custom_call.1} parent=1 // pred_check_branch
      %45 = sbr.rel (0) target = $region21
    $region20: #{tpu_custom_call.1} parent=1 // pred_region
      _
    $region21: #{tpu_custom_call.1} parent=1 // pred_fallthru
      _
    // Predicated region
    $region22: #{tpu_custom_call.1} parent=1 // pred_check
      _
    $region23: #{tpu_custom_call.1} parent=1 // pred_check_branch
      %47 = sbr.rel (0) target = $region25
    $region24: #{tpu_custom_call.1} parent=1 // pred_region
      %49 = dma.done [#allocation7], 512
    $region25: #{tpu_custom_call.1} parent=1 // pred_fallthru
      _
    // Predicated region
    $region26: #{tpu_custom_call.1} parent=1 // pred_check
      _
    $region27: #{tpu_custom_call.1} parent=1 // pred_check_branch
      %51 = sbr.rel (0) target = $region29
    $region28: #{tpu_custom_call.1} parent=1 // pred_region
      %53 = dma.done [#allocation10], 1024
    $region29: #{tpu_custom_call.1} parent=1 // pred_fallthru
      _
    %p55 = scmp.eq.s32.totalorder 0, 0
    // Predicated region
    $region30: #{tpu_custom_call.1} parent=1 // pred_check
      %p56 = pneg %p55
    $region31: #{tpu_custom_call.1} parent=1 // pred_check_branch
      %58 = sbr.rel (%p56) target = $region33
    $region32: #{tpu_custom_call.1} parent=1 // pred_region
      %vm59 = vcmask 261120
      %60 = vst.msk [vmem:[#allocation2] sm:$0xff] %vm59, 0.0
      %61 = vst.msk [vmem:[#allocation2 + $0x8] sm:$0xff] %vm59, 0.0
      %62 = vst.msk [vmem:[#allocation3] sm:$0xff] %vm59, 0.0
      %63 = vst.msk [vmem:[#allocation3 + $0x8] sm:$0xff] %vm59, 0.0
    $region33: #{tpu_custom_call.1} parent=1 // pred_fallthru
      _
    %v64 = vld [vmem:[#allocation6] sm:$0xf]
    %v65 = vld [vmem:[#allocation2] sm:$0xff]
    %v66 = vld [vmem:[#allocation3] sm:$0xff]
    %v67 = vpack.c.bf16 %v65, %v65
    %v69 = vunpack.c.l.b16 %v67
    %v70 = vpack.c.b16 %v69, %v69
    %71 = vrot.lane.b32.xlu0 %v70, 32
    %v72 = vpop.permute.xlu0 %71
    %vm73 = vcmask 261120
    %v76 = vsel %vm73, %v64, %v72
    %v77 = vld [vmem:[#allocation9] sm:$0xf]
    %v78 = vld [vmem:[#allocation9 + $0x4] sm:$0xf]
    %v79 = vld [vmem:[#allocation9 + $0x8] sm:$0xf]
    %v80 = vld [vmem:[#allocation9 + $0xc] sm:$0xf]
    %v81 = vld [vmem:[#allocation9 + $0x10] sm:$0xf]
    %v82 = vld [vmem:[#allocation9 + $0x14] sm:$0xf]
    %v83 = vld [vmem:[#allocation9 + $0x18] sm:$0xf]
    %v84 = vld [vmem:[#allocation9 + $0x1c] sm:$0xf]
    %v85 = vld [vmem:[%s2] sm:$0x1]
    %v87 = vperm.slane %v85, 0
    %v97 = vunpack.c.l.b16 %v77
    %v98 = vunpack.c.l.b16 %v78
    %v99 = vunpack.c.l.b16 %v79
    %v100 = vunpack.c.l.b16 %v80
    %v101 = vunpack.c.l.b16 %v81
    %v102 = vunpack.c.l.b16 %v82
    %v103 = vunpack.c.l.b16 %v83
    %v104 = vunpack.c.l.b16 %v84
    %v105 = vpack.c.b16 %v98, %v97
    %v106 = vpack.c.b16 %v100, %v99
    %v107 = vpack.c.b16 %v102, %v101
    %v108 = vpack.c.b16 %v104, %v103
    %vm113 = vcmask 523264
    %v114 = vsel %vm113, %v76, 0
    %116 = vmatpush.bf16.msra.mxu0 0
    %117 = vmatpush.bf16.msra.mxu0 0
    %118 = vmatpush.bf16.msra.mxu0 0
    %119 = vmatpush.bf16.msra.mxu0 0
    %120 = vmatpush.bf16.msra.mxu0 %v108
    %121 = vmatpush.bf16.msra.mxu0 %v107
    %122 = vmatpush.bf16.msra.mxu0 %v106
    %123 = vmatpush.bf16.msra.mxu0 %v105
    %124 = vmatmul.bf16.gmra.mxu0 %v114
    %v125 = vpop.f32.mrf.mxu0
    %v126 = vadd.f32 %v87, %v125
    %v127 = vpop.f32.mrf.mxu0
    %128 = vdwg.mxu0
    %v129 = vxor.u32 %v126, 2147483648
    %v130 = vmul.f32 %v129, 1.442695
    %v131 = vpow.pop %v130
    %v132 = vadd.f32 %v131, 1.0
    %v133 = vrcp.pop %v132
    %v134 = vmul.f32 %v132, %v133
    %v135 = vsub.f32 1.0, %v134
    %v136 = vmul.f32 %v133, %v135
    %v137 = vadd.f32 %v133, %v136
    %vm138 = vweird.f32 %v132
    %vm139 = vweird.f32 %v133
    %vm140 = vmor %vm138, %vm139
    %v141 = vsel %vm140, %v133, %v137
    %v142 = vand.u32 2147483647, %v132
    %vm143 = vcmp.eq.f32.partialorder %v142, 8.507059e+37
    %v144 = vand.u32 %v132, 2147483648
    %v145 = vor.u32 1.1754944e-38, %v144
    %v146 = vsel %vm143, %v145, %v141
    %v147 = vmul.f32 1.0, %v146
    %v148 = vtanh.pop %v126
    %150 = vrot.lane.b32.xlu0 %v66, 32
    %v151 = vpop.permute.xlu0 %150
    %v153 = vmul.f32 %v147, %v151
    %155 = vrot.lane.b32.xlu0 %v148, 64
    %v156 = vpop.permute.xlu0 %155
    %v158 = vmul.f32 %v147, %v156
    %160 = vrot.lane.b32.xlu0 %v158, 32
    %v161 = vpop.permute.xlu0 %160
    %v163 = vadd.f32 %v153, %v161
    %v164 = vtanh.pop %v163
    %166 = vrot.lane.b32.xlu0 %v164, 64
    %v167 = vpop.permute.xlu0 %166
    %v169 = vmul.f32 %v147, %v167
    %171 = vrot.lane.b32.xlu0 %v163, 96
    %v172 = vpop.permute.xlu0 %171
    %174 = vst.msk [vmem:[#allocation3] sm:$0xff] %vm73, %v172
    %176 = vrot.lane.b32.xlu0 %v169, 32
    %v177 = vpop.permute.xlu0 %176
    %179 = vst.msk [vmem:[#allocation2] sm:$0xff] %vm73, %v177
    %v180 = vpack.c.bf16 %v169, %v169
    %s181 = scalar_lea.vmem [#allocation2], 8
    %v182 = vld [vmem:[%s181] sm:$0xff]
    %s183 = scalar_lea.vmem [#allocation3], 8
    %v184 = vld [vmem:[%s183] sm:$0xff]
    %v185 = vpack.c.bf16 %v182, %v182
    %v187 = vunpack.c.l.b16 %v180
    %v188 = vpack.c.b16 %v187, %v187
    %189 = vrot.lane.b32.xlu0 %v188, 32
    %v190 = vpop.permute.xlu0 %189
    %v192 = vunpack.c.l.b16 %v185
    %v193 = vpack.c.b16 %v192, %v192
    %194 = vrot.lane.b32.xlu0 %v193, 32
    %v195 = vpop.permute.xlu0 %194
    %v198 = vsel %vm73, %v190, %v195
    %s199 = scalar_lea.vmem [#allocation9], 32
    %v200 = vld [vmem:[%s199] sm:$0xf]
    %v201 = vld [vmem:[%s199 + $0x4] sm:$0xf]
    %v202 = vld [vmem:[%s199 + $0x8] sm:$0xf]
    %v203 = vld [vmem:[%s199 + $0xc] sm:$0xf]
    %v204 = vld [vmem:[%s199 + $0x10] sm:$0xf]
    %v205 = vld [vmem:[%s199 + $0x14] sm:$0xf]
    %v206 = vld [vmem:[%s199 + $0x18] sm:$0xf]
    %v207 = vld [vmem:[%s199 + $0x1c] sm:$0xf]
    %s208 = scalar_lea.vmem %s2, 1
    %v209 = vld [vmem:[%s208] sm:$0x1]
    %v211 = vperm.slane %v209, 0
    %v221 = vunpack.c.l.b16 %v200
    %v222 = vunpack.c.l.b16 %v201
    %v223 = vunpack.c.l.b16 %v202
    %v224 = vunpack.c.l.b16 %v203
    %v225 = vunpack.c.l.b16 %v204
    %v226 = vunpack.c.l.b16 %v205
    %v227 = vunpack.c.l.b16 %v206
    %v228 = vunpack.c.l.b16 %v207
    %v229 = vpack.c.b16 %v222, %v221
    %v230 = vpack.c.b16 %v224, %v223
    %v231 = vpack.c.b16 %v226, %v225
    %v232 = vpack.c.b16 %v228, %v227
    %v237 = vsel %vm113, %v198, 0
    %239 = vmatpush.bf16.msra.mxu0 0
    %240 = vmatpush.bf16.msra.mxu0 0
    %241 = vmatpush.bf16.msra.mxu0 0
    %242 = vmatpush.bf16.msra.mxu0 0
    %243 = vmatpush.bf16.msra.mxu0 %v232
    %244 = vmatpush.bf16.msra.mxu0 %v231
    %245 = vmatpush.bf16.msra.mxu0 %v230
    %246 = vmatpush.bf16.msra.mxu0 %v229
    %247 = vmatmul.bf16.gmra.mxu0 %v237
    %v248 = vpop.f32.mrf.mxu0
    %v249 = vadd.f32 %v211, %v248
    %v250 = vpop.f32.mrf.mxu0
    %251 = vdwg.mxu0
    %v252 = vxor.u32 %v249, 2147483648
    %v253 = vmul.f32 %v252, 1.442695
    %v254 = vpow.pop %v253
    %v255 = vadd.f32 %v254, 1.0
    %v256 = vrcp.pop %v255
    %v257 = vmul.f32 %v255, %v256
    %v258 = vsub.f32 1.0, %v257
    %v259 = vmul.f32 %v256, %v258
    %v260 = vadd.f32 %v256, %v259
    %vm261 = vweird.f32 %v255
    %vm262 = vweird.f32 %v256
    %vm263 = vmor %vm261, %vm262
    %v264 = vsel %vm263, %v256, %v260
    %v265 = vand.u32 2147483647, %v255
    %vm266 = vcmp.eq.f32.partialorder %v265, 8.507059e+37
    %v267 = vand.u32 %v255, 2147483648
    %v268 = vor.u32 1.1754944e-38, %v267
    %v269 = vsel %vm266, %v268, %v264
    %v270 = vmul.f32 1.0, %v269
    %v271 = vtanh.pop %v249
    %273 = vrot.lane.b32.xlu0 %v184, 32
    %v274 = vpop.permute.xlu0 %273
    %v276 = vmul.f32 %v270, %v274
    %278 = vrot.lane.b32.xlu0 %v271, 64
    %v279 = vpop.permute.xlu0 %278
    %v281 = vmul.f32 %v270, %v279
    %283 = vrot.lane.b32.xlu0 %v281, 32
    %v284 = vpop.permute.xlu0 %283
    %v286 = vadd.f32 %v276, %v284
    %v287 = vtanh.pop %v286
    %289 = vrot.lane.b32.xlu0 %v287, 64
    %v290 = vpop.permute.xlu0 %289
    %v292 = vmul.f32 %v270, %v290
    %294 = vrot.lane.b32.xlu0 %v286, 96
    %v295 = vpop.permute.xlu0 %294
    %297 = vst.msk [vmem:[%s183] sm:$0xff] %vm73, %v295
    %299 = vrot.lane.b32.xlu0 %v292, 32
    %v300 = vpop.permute.xlu0 %299
    %302 = vst.msk [vmem:[%s181] sm:$0xff] %vm73, %v300
    %303 = vst.msk [vmem:[#allocation4] sm:$0xff] %vm73, %v300
    %s304 = scalar_lea.vmem [#allocation6], 4
    %v305 = vld [vmem:[%s304] sm:$0xf]
    %v306 = vld [vmem:[#allocation2] sm:$0xff]
    %v307 = vld [vmem:[#allocation3] sm:$0xff]
    %v308 = vpack.c.bf16 %v306, %v306
    %v310 = vunpack.c.l.b16 %v308
    %v311 = vpack.c.b16 %v310, %v310
    %312 = vrot.lane.b32.xlu0 %v311, 32
    %v313 = vpop.permute.xlu0 %312
    %v316 = vsel %vm73, %v305, %v313
    %v317 = vld [vmem:[#allocation9] sm:$0xf]
    %v318 = vld [vmem:[#allocation9 + $0x4] sm:$0xf]
    %v319 = vld [vmem:[#allocation9 + $0x8] sm:$0xf]
    %v320 = vld [vmem:[#allocation9 + $0xc] sm:$0xf]
    %v321 = vld [vmem:[#allocation9 + $0x10] sm:$0xf]
    %v322 = vld [vmem:[#allocation9 + $0x14] sm:$0xf]
    %v323 = vld [vmem:[#allocation9 + $0x18] sm:$0xf]
    %v324 = vld [vmem:[#allocation9 + $0x1c] sm:$0xf]
    %v325 = vld [vmem:[%s2] sm:$0x1]
    %v327 = vperm.slane %v325, 0
    %v337 = vunpack.c.l.b16 %v317
    %v338 = vunpack.c.l.b16 %v318
    %v339 = vunpack.c.l.b16 %v319
    %v340 = vunpack.c.l.b16 %v320
    %v341 = vunpack.c.l.b16 %v321
    %v342 = vunpack.c.l.b16 %v322
    %v343 = vunpack.c.l.b16 %v323
    %v344 = vunpack.c.l.b16 %v324
    %v345 = vpack.c.b16 %v338, %v337
    %v346 = vpack.c.b16 %v340, %v339
    %v347 = vpack.c.b16 %v342, %v341
    %v348 = vpack.c.b16 %v344, %v343
    %v353 = vsel %vm113, %v316, 0
    %355 = vmatpush.bf16.msra.mxu0 0
    %356 = vmatpush.bf16.msra.mxu0 0
    %357 = vmatpush.bf16.msra.mxu0 0
    %358 = vmatpush.bf16.msra.mxu0 0
    %359 = vmatpush.bf16.msra.mxu0 %v348
    %360 = vmatpush.bf16.msra.mxu0 %v347
    %361 = vmatpush.bf16.msra.mxu0 %v346
    %362 = vmatpush.bf16.msra.mxu0 %v345
    %363 = vmatmul.bf16.gmra.mxu0 %v353
    %v364 = vpop.f32.mrf.mxu0
    %v365 = vadd.f32 %v327, %v364
    %v366 = vpop.f32.mrf.mxu0
    %367 = vdwg.mxu0
    %v368 = vxor.u32 %v365, 2147483648
    %v369 = vmul.f32 %v368, 1.442695
    %v370 = vpow.pop %v369
    %v371 = vadd.f32 %v370, 1.0
    %v372 = vrcp.pop %v371
    %v373 = vmul.f32 %v371, %v372
    %v374 = vsub.f32 1.0, %v373
    %v375 = vmul.f32 %v372, %v374
    %v376 = vadd.f32 %v372, %v375
    %vm377 = vweird.f32 %v371
    %vm378 = vweird.f32 %v372
    %vm379 = vmor %vm377, %vm378
    %v380 = vsel %vm379, %v372, %v376
    %v381 = vand.u32 2147483647, %v371
    %vm382 = vcmp.eq.f32.partialorder %v381, 8.507059e+37
    %v383 = vand.u32 %v371, 2147483648
    %v384 = vor.u32 1.1754944e-38, %v383
    %v385 = vsel %vm382, %v384, %v380
    %v386 = vmul.f32 1.0, %v385
    %v387 = vtanh.pop %v365
    %389 = vrot.lane.b32.xlu0 %v307, 32
    %v390 = vpop.permute.xlu0 %389
    %v392 = vmul.f32 %v386, %v390
    %394 = vrot.lane.b32.xlu0 %v387, 64
    %v395 = vpop.permute.xlu0 %394
    %v397 = vmul.f32 %v386, %v395
    %399 = vrot.lane.b32.xlu0 %v397, 32
    %v400 = vpop.permute.xlu0 %399
    %v402 = vadd.f32 %v392, %v400
    %v403 = vtanh.pop %v402
    %405 = vrot.lane.b32.xlu0 %v403, 64
    %v406 = vpop.permute.xlu0 %405
    %v408 = vmul.f32 %v386, %v406
    %410 = vrot.lane.b32.xlu0 %v402, 96
    %v411 = vpop.permute.xlu0 %410
    %413 = vst.msk [vmem:[#allocation3] sm:$0xff] %vm73, %v411
    %415 = vrot.lane.b32.xlu0 %v408, 32
    %v416 = vpop.permute.xlu0 %415
    %418 = vst.msk [vmem:[#allocation2] sm:$0xff] %vm73, %v416
    %v419 = vpack.c.bf16 %v408, %v408
    %v420 = vld [vmem:[%s181] sm:$0xff]
    %v421 = vld [vmem:[%s183] sm:$0xff]
    %v422 = vpack.c.bf16 %v420, %v420
    %v424 = vunpack.c.l.b16 %v419
    %v425 = vpack.c.b16 %v424, %v424
    %426 = vrot.lane.b32.xlu0 %v425, 32
    %v427 = vpop.permute.xlu0 %426
    %v429 = vunpack.c.l.b16 %v422
    %v430 = vpack.c.b16 %v429, %v429
    %431 = vrot.lane.b32.xlu0 %v430, 32
    %v432 = vpop.permute.xlu0 %431
    %v435 = vsel %vm73, %v427, %v432
    %v436 = vld [vmem:[%s199] sm:$0xf]
    %v437 = vld [vmem:[%s199 + $0x4] sm:$0xf]
    %v438 = vld [vmem:[%s199 + $0x8] sm:$0xf]
    %v439 = vld [vmem:[%s199 + $0xc] sm:$0xf]
    %v440 = vld [vmem:[%s199 + $0x10] sm:$0xf]
    %v441 = vld [vmem:[%s199 + $0x14] sm:$0xf]
    %v442 = vld [vmem:[%s199 + $0x18] sm:$0xf]
    %v443 = vld [vmem:[%s199 + $0x1c] sm:$0xf]
    %v444 = vld [vmem:[%s208] sm:$0x1]
    %v446 = vperm.slane %v444, 0
    %v456 = vunpack.c.l.b16 %v436
    %v457 = vunpack.c.l.b16 %v437
    %v458 = vunpack.c.l.b16 %v438
    %v459 = vunpack.c.l.b16 %v439
    %v460 = vunpack.c.l.b16 %v440
    %v461 = vunpack.c.l.b16 %v441
    %v462 = vunpack.c.l.b16 %v442
    %v463 = vunpack.c.l.b16 %v443
    %v464 = vpack.c.b16 %v457, %v456
    %v465 = vpack.c.b16 %v459, %v458
    %v466 = vpack.c.b16 %v461, %v460
    %v467 = vpack.c.b16 %v463, %v462
    %v472 = vsel %vm113, %v435, 0
    %474 = vmatpush.bf16.msra.mxu0 0
    %475 = vmatpush.bf16.msra.mxu0 0
    %476 = vmatpush.bf16.msra.mxu0 0
    %477 = vmatpush.bf16.msra.mxu0 0
    %478 = vmatpush.bf16.msra.mxu0 %v467
    %479 = vmatpush.bf16.msra.mxu0 %v466
    %480 = vmatpush.bf16.msra.mxu0 %v465
    %481 = vmatpush.bf16.msra.mxu0 %v464
    %482 = vmatmul.bf16.gmra.mxu0 %v472
    %v483 = vpop.f32.mrf.mxu0
    %v484 = vadd.f32 %v446, %v483
    %v485 = vpop.f32.mrf.mxu0
    %486 = vdwg.mxu0
    %v487 = vxor.u32 %v484, 2147483648
    %v488 = vmul.f32 %v487, 1.442695
    %v489 = vpow.pop %v488
    %v490 = vadd.f32 %v489, 1.0
    %v491 = vrcp.pop %v490
    %v492 = vmul.f32 %v490, %v491
    %v493 = vsub.f32 1.0, %v492
    %v494 = vmul.f32 %v491, %v493
    %v495 = vadd.f32 %v491, %v494
    %vm496 = vweird.f32 %v490
    %vm497 = vweird.f32 %v491
    %vm498 = vmor %vm496, %vm497
    %v499 = vsel %vm498, %v491, %v495
    %v500 = vand.u32 2147483647, %v490
    %vm501 = vcmp.eq.f32.partialorder %v500, 8.507059e+37
    %v502 = vand.u32 %v490, 2147483648
    %v503 = vor.u32 1.1754944e-38, %v502
    %v504 = vsel %vm501, %v503, %v499
    %v505 = vmul.f32 1.0, %v504
    %v506 = vtanh.pop %v484
    %508 = vrot.lane.b32.xlu0 %v421, 32
    %v509 = vpop.permute.xlu0 %508
    %v511 = vmul.f32 %v505, %v509
    %513 = vrot.lane.b32.xlu0 %v506, 64
    %v514 = vpop.permute.xlu0 %513
    %v516 = vmul.f32 %v505, %v514
    %518 = vrot.lane.b32.xlu0 %v516, 32
    %v519 = vpop.permute.xlu0 %518
    %v521 = vadd.f32 %v511, %v519
    %v522 = vtanh.pop %v521
    %524 = vrot.lane.b32.xlu0 %v522, 64
    %v525 = vpop.permute.xlu0 %524
    %v527 = vmul.f32 %v505, %v525
    %529 = vrot.lane.b32.xlu0 %v521, 96
    %v530 = vpop.permute.xlu0 %529
    %532 = vst.msk [vmem:[%s183] sm:$0xff] %vm73, %v530
    %534 = vrot.lane.b32.xlu0 %v527, 32
    %v535 = vpop.permute.xlu0 %534
    %537 = vst.msk [vmem:[%s181] sm:$0xff] %vm73, %v535
    %s538 = scalar_lea.vmem [#allocation4], 8
    %539 = vst.msk [vmem:[%s538] sm:$0xff] %vm73, %v535
    %s540 = scalar_lea.vmem [#allocation6], 8
    %v541 = vld [vmem:[%s540] sm:$0xf]
    %v542 = vld [vmem:[#allocation2] sm:$0xff]
    %v543 = vld [vmem:[#allocation3] sm:$0xff]
    %v544 = vpack.c.bf16 %v542, %v542
    %v546 = vunpack.c.l.b16 %v544
    %v547 = vpack.c.b16 %v546, %v546
    %548 = vrot.lane.b32.xlu0 %v547, 32
    %v549 = vpop.permute.xlu0 %548
    %v552 = vsel %vm73, %v541, %v549
    %v553 = vld [vmem:[#allocation9] sm:$0xf]
    %v554 = vld [vmem:[#allocation9 + $0x4] sm:$0xf]
    %v555 = vld [vmem:[#allocation9 + $0x8] sm:$0xf]
    %v556 = vld [vmem:[#allocation9 + $0xc] sm:$0xf]
    %v557 = vld [vmem:[#allocation9 + $0x10] sm:$0xf]
    %v558 = vld [vmem:[#allocation9 + $0x14] sm:$0xf]
    %v559 = vld [vmem:[#allocation9 + $0x18] sm:$0xf]
    %v560 = vld [vmem:[#allocation9 + $0x1c] sm:$0xf]
    %v561 = vld [vmem:[%s2] sm:$0x1]
    %v563 = vperm.slane %v561, 0
    %v573 = vunpack.c.l.b16 %v553
    %v574 = vunpack.c.l.b16 %v554
    %v575 = vunpack.c.l.b16 %v555
    %v576 = vunpack.c.l.b16 %v556
    %v577 = vunpack.c.l.b16 %v557
    %v578 = vunpack.c.l.b16 %v558
    %v579 = vunpack.c.l.b16 %v559
    %v580 = vunpack.c.l.b16 %v560
    %v581 = vpack.c.b16 %v574, %v573
    %v582 = vpack.c.b16 %v576, %v575
    %v583 = vpack.c.b16 %v578, %v577
    %v584 = vpack.c.b16 %v580, %v579
    %v589 = vsel %vm113, %v552, 0
    %591 = vmatpush.bf16.msra.mxu0 0
    %592 = vmatpush.bf16.msra.mxu0 0
    %593 = vmatpush.bf16.msra.mxu0 0
    %594 = vmatpush.bf16.msra.mxu0 0
    %595 = vmatpush.bf16.msra.mxu0 %v584
    %596 = vmatpush.bf16.msra.mxu0 %v583
    %597 = vmatpush.bf16.msra.mxu0 %v582
    %598 = vmatpush.bf16.msra.mxu0 %v581
    %599 = vmatmul.bf16.gmra.mxu0 %v589
    %v600 = vpop.f32.mrf.mxu0
    %v601 = vadd.f32 %v563, %v600
    %v602 = vpop.f32.mrf.mxu0
    %603 = vdwg.mxu0
    %v604 = vxor.u32 %v601, 2147483648
    %v605 = vmul.f32 %v604, 1.442695
    %v606 = vpow.pop %v605
    %v607 = vadd.f32 %v606, 1.0
    %v608 = vrcp.pop %v607
    %v609 = vmul.f32 %v607, %v608
    %v610 = vsub.f32 1.0, %v609
    %v611 = vmul.f32 %v608, %v610
    %v612 = vadd.f32 %v608, %v611
    %vm613 = vweird.f32 %v607
    %vm614 = vweird.f32 %v608
    %vm615 = vmor %vm613, %vm614
    %v616 = vsel %vm615, %v608, %v612
    %v617 = vand.u32 2147483647, %v607
    %vm618 = vcmp.eq.f32.partialorder %v617, 8.507059e+37
    %v619 = vand.u32 %v607, 2147483648
    %v620 = vor.u32 1.1754944e-38, %v619
    %v621 = vsel %vm618, %v620, %v616
    %v622 = vmul.f32 1.0, %v621
    %v623 = vtanh.pop %v601
    %625 = vrot.lane.b32.xlu0 %v543, 32
    %v626 = vpop.permute.xlu0 %625
    %v628 = vmul.f32 %v622, %v626
    %630 = vrot.lane.b32.xlu0 %v623, 64
    %v631 = vpop.permute.xlu0 %630
    %v633 = vmul.f32 %v622, %v631
    %635 = vrot.lane.b32.xlu0 %v633, 32
    %v636 = vpop.permute.xlu0 %635
    %v638 = vadd.f32 %v628, %v636
    %v639 = vtanh.pop %v638
    %641 = vrot.lane.b32.xlu0 %v639, 64
    %v642 = vpop.permute.xlu0 %641
    %v644 = vmul.f32 %v622, %v642
    %646 = vrot.lane.b32.xlu0 %v638, 96
    %v647 = vpop.permute.xlu0 %646
    %649 = vst.msk [vmem:[#allocation3] sm:$0xff] %vm73, %v647
    %651 = vrot.lane.b32.xlu0 %v644, 32
    %v652 = vpop.permute.xlu0 %651
    %654 = vst.msk [vmem:[#allocation2] sm:$0xff] %vm73, %v652
    %v655 = vpack.c.bf16 %v644, %v644
    %v656 = vld [vmem:[%s181] sm:$0xff]
    %v657 = vld [vmem:[%s183] sm:$0xff]
    %v658 = vpack.c.bf16 %v656, %v656
    %v660 = vunpack.c.l.b16 %v655
    %v661 = vpack.c.b16 %v660, %v660
    %662 = vrot.lane.b32.xlu0 %v661, 32
    %v663 = vpop.permute.xlu0 %662
    %v665 = vunpack.c.l.b16 %v658
    %v666 = vpack.c.b16 %v665, %v665
    %667 = vrot.lane.b32.xlu0 %v666, 32
    %v668 = vpop.permute.xlu0 %667
    %v671 = vsel %vm73, %v663, %v668
    %v672 = vld [vmem:[%s199] sm:$0xf]
    %v673 = vld [vmem:[%s199 + $0x4] sm:$0xf]
    %v674 = vld [vmem:[%s199 + $0x8] sm:$0xf]
    %v675 = vld [vmem:[%s199 + $0xc] sm:$0xf]
    %v676 = vld [vmem:[%s199 + $0x10] sm:$0xf]
    %v677 = vld [vmem:[%s199 + $0x14] sm:$0xf]
    %v678 = vld [vmem:[%s199 + $0x18] sm:$0xf]
    %v679 = vld [vmem:[%s199 + $0x1c] sm:$0xf]
    %v680 = vld [vmem:[%s208] sm:$0x1]
    %v682 = vperm.slane %v680, 0
    %v692 = vunpack.c.l.b16 %v672
    %v693 = vunpack.c.l.b16 %v673
    %v694 = vunpack.c.l.b16 %v674
    %v695 = vunpack.c.l.b16 %v675
    %v696 = vunpack.c.l.b16 %v676
    %v697 = vunpack.c.l.b16 %v677
    %v698 = vunpack.c.l.b16 %v678
    %v699 = vunpack.c.l.b16 %v679
    %v700 = vpack.c.b16 %v693, %v692
    %v701 = vpack.c.b16 %v695, %v694
    %v702 = vpack.c.b16 %v697, %v696
    %v703 = vpack.c.b16 %v699, %v698
    %v708 = vsel %vm113, %v671, 0
    %710 = vmatpush.bf16.msra.mxu0 0
    %711 = vmatpush.bf16.msra.mxu0 0
    %712 = vmatpush.bf16.msra.mxu0 0
    %713 = vmatpush.bf16.msra.mxu0 0
    %714 = vmatpush.bf16.msra.mxu0 %v703
    %715 = vmatpush.bf16.msra.mxu0 %v702
    %716 = vmatpush.bf16.msra.mxu0 %v701
    %717 = vmatpush.bf16.msra.mxu0 %v700
    %718 = vmatmul.bf16.gmra.mxu0 %v708
    %v719 = vpop.f32.mrf.mxu0
    %v720 = vadd.f32 %v682, %v719
    %v721 = vpop.f32.mrf.mxu0
    %722 = vdwg.mxu0
    %v723 = vxor.u32 %v720, 2147483648
    %v724 = vmul.f32 %v723, 1.442695
    %v725 = vpow.pop %v724
    %v726 = vadd.f32 %v725, 1.0
    %v727 = vrcp.pop %v726
    %v728 = vmul.f32 %v726, %v727
    %v729 = vsub.f32 1.0, %v728
    %v730 = vmul.f32 %v727, %v729
    %v731 = vadd.f32 %v727, %v730
    %vm732 = vweird.f32 %v726
    %vm733 = vweird.f32 %v727
    %vm734 = vmor %vm732, %vm733
    %v735 = vsel %vm734, %v727, %v731
    %v736 = vand.u32 2147483647, %v726
    %vm737 = vcmp.eq.f32.partialorder %v736, 8.507059e+37
    %v738 = vand.u32 %v726, 2147483648
    %v739 = vor.u32 1.1754944e-38, %v738
    %v740 = vsel %vm737, %v739, %v735
    %v741 = vmul.f32 1.0, %v740
    %v742 = vtanh.pop %v720
    %744 = vrot.lane.b32.xlu0 %v657, 32
    %v745 = vpop.permute.xlu0 %744
    %v747 = vmul.f32 %v741, %v745
    %749 = vrot.lane.b32.xlu0 %v742, 64
    %v750 = vpop.permute.xlu0 %749
    %v752 = vmul.f32 %v741, %v750
    %754 = vrot.lane.b32.xlu0 %v752, 32
    %v755 = vpop.permute.xlu0 %754
    %v757 = vadd.f32 %v747, %v755
    %v758 = vtanh.pop %v757
    %760 = vrot.lane.b32.xlu0 %v758, 64
    %v761 = vpop.permute.xlu0 %760
    %v763 = vmul.f32 %v741, %v761
    %765 = vrot.lane.b32.xlu0 %v757, 96
    %v766 = vpop.permute.xlu0 %765
    %768 = vst.msk [vmem:[%s183] sm:$0xff] %vm73, %v766
    %770 = vrot.lane.b32.xlu0 %v763, 32
    %v771 = vpop.permute.xlu0 %770
    %773 = vst.msk [vmem:[%s181] sm:$0xff] %vm73, %v771
    %s774 = scalar_lea.vmem [#allocation4], 16
    %775 = vst.msk [vmem:[%s774] sm:$0xff] %vm73, %v771
    %s776 = scalar_lea.vmem [#allocation6], 12
    %v777 = vld [vmem:[%s776] sm:$0xf]
    %v778 = vld [vmem:[#allocation2] sm:$0xff]
    %v779 = vld [vmem:[#allocation3] sm:$0xff]
    %v780 = vpack.c.bf16 %v778, %v778
    %v782 = vunpack.c.l.b16 %v780
    %v783 = vpack.c.b16 %v782, %v782
    %784 = vrot.lane.b32.xlu0 %v783, 32
    %v785 = vpop.permute.xlu0 %784
    %v788 = vsel %vm73, %v777, %v785
    %v789 = vld [vmem:[#allocation9] sm:$0xf]
    %v790 = vld [vmem:[#allocation9 + $0x4] sm:$0xf]
    %v791 = vld [vmem:[#allocation9 + $0x8] sm:$0xf]
    %v792 = vld [vmem:[#allocation9 + $0xc] sm:$0xf]
    %v793 = vld [vmem:[#allocation9 + $0x10] sm:$0xf]
    %v794 = vld [vmem:[#allocation9 + $0x14] sm:$0xf]
    %v795 = vld [vmem:[#allocation9 + $0x18] sm:$0xf]
    %v796 = vld [vmem:[#allocation9 + $0x1c] sm:$0xf]
    %v797 = vld [vmem:[%s2] sm:$0x1]
    %v799 = vperm.slane %v797, 0
    %v809 = vunpack.c.l.b16 %v789
    %v810 = vunpack.c.l.b16 %v790
    %v811 = vunpack.c.l.b16 %v791
    %v812 = vunpack.c.l.b16 %v792
    %v813 = vunpack.c.l.b16 %v793
    %v814 = vunpack.c.l.b16 %v794
    %v815 = vunpack.c.l.b16 %v795
    %v816 = vunpack.c.l.b16 %v796
    %v817 = vpack.c.b16 %v810, %v809
    %v818 = vpack.c.b16 %v812, %v811
    %v819 = vpack.c.b16 %v814, %v813
    %v820 = vpack.c.b16 %v816, %v815
    %v825 = vsel %vm113, %v788, 0
    %827 = vmatpush.bf16.msra.mxu0 0
    %828 = vmatpush.bf16.msra.mxu0 0
    %829 = vmatpush.bf16.msra.mxu0 0
    %830 = vmatpush.bf16.msra.mxu0 0
    %831 = vmatpush.bf16.msra.mxu0 %v820
    %832 = vmatpush.bf16.msra.mxu0 %v819
    %833 = vmatpush.bf16.msra.mxu0 %v818
    %834 = vmatpush.bf16.msra.mxu0 %v817
    %835 = vmatmul.bf16.gmra.mxu0 %v825
    %v836 = vpop.f32.mrf.mxu0
    %v837 = vadd.f32 %v799, %v836
    %v838 = vpop.f32.mrf.mxu0
    %839 = vdwg.mxu0
    %v840 = vxor.u32 %v837, 2147483648
    %v841 = vmul.f32 %v840, 1.442695
    %v842 = vpow.pop %v841
    %v843 = vadd.f32 %v842, 1.0
    %v844 = vrcp.pop %v843
    %v845 = vmul.f32 %v843, %v844
    %v846 = vsub.f32 1.0, %v845
    %v847 = vmul.f32 %v844, %v846
    %v848 = vadd.f32 %v844, %v847
    %vm849 = vweird.f32 %v843
    %vm850 = vweird.f32 %v844
    %vm851 = vmor %vm849, %vm850
    %v852 = vsel %vm851, %v844, %v848
    %v853 = vand.u32 2147483647, %v843
    %vm854 = vcmp.eq.f32.partialorder %v853, 8.507059e+37
    %v855 = vand.u32 %v843, 2147483648
    %v856 = vor.u32 1.1754944e-38, %v855
    %v857 = vsel %vm854, %v856, %v852
    %v858 = vmul.f32 1.0, %v857
    %v859 = vtanh.pop %v837
    %861 = vrot.lane.b32.xlu0 %v779, 32
    %v862 = vpop.permute.xlu0 %861
    %v864 = vmul.f32 %v858, %v862
    %866 = vrot.lane.b32.xlu0 %v859, 64
    %v867 = vpop.permute.xlu0 %866
    %v869 = vmul.f32 %v858, %v867
    %871 = vrot.lane.b32.xlu0 %v869, 32
    %v872 = vpop.permute.xlu0 %871
    %v874 = vadd.f32 %v864, %v872
    %v875 = vtanh.pop %v874
    %877 = vrot.lane.b32.xlu0 %v875, 64
    %v878 = vpop.permute.xlu0 %877
    %v880 = vmul.f32 %v858, %v878
    %882 = vrot.lane.b32.xlu0 %v874, 96
    %v883 = vpop.permute.xlu0 %882
    %885 = vst.msk [vmem:[#allocation3] sm:$0xff] %vm73, %v883
    %887 = vrot.lane.b32.xlu0 %v880, 32
    %v888 = vpop.permute.xlu0 %887
    %890 = vst.msk [vmem:[#allocation2] sm:$0xff] %vm73, %v888
    %v891 = vpack.c.bf16 %v880, %v880
    %v892 = vld [vmem:[%s181] sm:$0xff]
    %v893 = vld [vmem:[%s183] sm:$0xff]
    %v894 = vpack.c.bf16 %v892, %v892
    %v896 = vunpack.c.l.b16 %v891
    %v897 = vpack.c.b16 %v896, %v896
    %898 = vrot.lane.b32.xlu0 %v897, 32
    %v899 = vpop.permute.xlu0 %898
    %v901 = vunpack.c.l.b16 %v894
    %v902 = vpack.c.b16 %v901, %v901
    %903 = vrot.lane.b32.xlu0 %v902, 32
    %v904 = vpop.permute.xlu0 %903
    %v907 = vsel %vm73, %v899, %v904
    %v908 = vld [vmem:[%s199] sm:$0xf]
    %v909 = vld [vmem:[%s199 + $0x4] sm:$0xf]
    %v910 = vld [vmem:[%s199 + $0x8] sm:$0xf]
    %v911 = vld [vmem:[%s199 + $0xc] sm:$0xf]
    %v912 = vld [vmem:[%s199 + $0x10] sm:$0xf]
    %v913 = vld [vmem:[%s199 + $0x14] sm:$0xf]
    %v914 = vld [vmem:[%s199 + $0x18] sm:$0xf]
    %v915 = vld [vmem:[%s199 + $0x1c] sm:$0xf]
    %v916 = vld [vmem:[%s208] sm:$0x1]
    %v918 = vperm.slane %v916, 0
    %v928 = vunpack.c.l.b16 %v908
    %v929 = vunpack.c.l.b16 %v909
    %v930 = vunpack.c.l.b16 %v910
    %v931 = vunpack.c.l.b16 %v911
    %v932 = vunpack.c.l.b16 %v912
    %v933 = vunpack.c.l.b16 %v913
    %v934 = vunpack.c.l.b16 %v914
    %v935 = vunpack.c.l.b16 %v915
    %v936 = vpack.c.b16 %v929, %v928
    %v937 = vpack.c.b16 %v931, %v930
    %v938 = vpack.c.b16 %v933, %v932
    %v939 = vpack.c.b16 %v935, %v934
    %v944 = vsel %vm113, %v907, 0
    %946 = vmatpush.bf16.msra.mxu0 0
    %947 = vmatpush.bf16.msra.mxu0 0
    %948 = vmatpush.bf16.msra.mxu0 0
    %949 = vmatpush.bf16.msra.mxu0 0
    %950 = vmatpush.bf16.msra.mxu0 %v939
    %951 = vmatpush.bf16.msra.mxu0 %v938
    %952 = vmatpush.bf16.msra.mxu0 %v937
    %953 = vmatpush.bf16.msra.mxu0 %v936
    %954 = vmatmul.bf16.gmra.mxu0 %v944
    %v955 = vpop.f32.mrf.mxu0
    %v956 = vadd.f32 %v918, %v955
    %v957 = vpop.f32.mrf.mxu0
    %958 = vdwg.mxu0
    %v959 = vxor.u32 %v956, 2147483648
    %v960 = vmul.f32 %v959, 1.442695
    %v961 = vpow.pop %v960
    %v962 = vadd.f32 %v961, 1.0
    %v963 = vrcp.pop %v962
    %v964 = vmul.f32 %v962, %v963
    %v965 = vsub.f32 1.0, %v964
    %v966 = vmul.f32 %v963, %v965
    %v967 = vadd.f32 %v963, %v966
    %vm968 = vweird.f32 %v962
    %vm969 = vweird.f32 %v963
    %vm970 = vmor %vm968, %vm969
    %v971 = vsel %vm970, %v963, %v967
    %v972 = vand.u32 2147483647, %v962
    %vm973 = vcmp.eq.f32.partialorder %v972, 8.507059e+37
    %v974 = vand.u32 %v962, 2147483648
    %v975 = vor.u32 1.1754944e-38, %v974
    %v976 = vsel %vm973, %v975, %v971
    %v977 = vmul.f32 1.0, %v976
    %v978 = vtanh.pop %v956
    %980 = vrot.lane.b32.xlu0 %v893, 32
    %v981 = vpop.permute.xlu0 %980
    %v983 = vmul.f32 %v977, %v981
    %985 = vrot.lane.b32.xlu0 %v978, 64
    %v986 = vpop.permute.xlu0 %985
    %v988 = vmul.f32 %v977, %v986
    %990 = vrot.lane.b32.xlu0 %v988, 32
    %v991 = vpop.permute.xlu0 %990
    %v993 = vadd.f32 %v983, %v991
    %v994 = vtanh.pop %v993
    %996 = vrot.lane.b32.xlu0 %v994, 64
    %v997 = vpop.permute.xlu0 %996
    %v999 = vmul.f32 %v977, %v997
    %1001 = vrot.lane.b32.xlu0 %v993, 96
    %v1002 = vpop.permute.xlu0 %1001
    %1004 = vst.msk [vmem:[%s183] sm:$0xff] %vm73, %v1002
    %1006 = vrot.lane.b32.xlu0 %v999, 32
    %v1007 = vpop.permute.xlu0 %1006
    %1009 = vst.msk [vmem:[%s181] sm:$0xff] %vm73, %v1007
    %s1010 = scalar_lea.vmem [#allocation4], 24
    %1011 = vst.msk [vmem:[%s1010] sm:$0xff] %vm73, %v1007
    %s1012 = scalar_lea.vmem [#allocation6], 16
    %v1013 = vld [vmem:[%s1012] sm:$0xf]
    %v1014 = vld [vmem:[#allocation2] sm:$0xff]
    %v1015 = vld [vmem:[#allocation3] sm:$0xff]
    %v1016 = vpack.c.bf16 %v1014, %v1014
    %v1018 = vunpack.c.l.b16 %v1016
    %v1019 = vpack.c.b16 %v1018, %v1018
    %1020 = vrot.lane.b32.xlu0 %v1019, 32
    %v1021 = vpop.permute.xlu0 %1020
    %v1024 = vsel %vm73, %v1013, %v1021
    %v1025 = vld [vmem:[#allocation9] sm:$0xf]
    %v1026 = vld [vmem:[#allocation9 + $0x4] sm:$0xf]
    %v1027 = vld [vmem:[#allocation9 + $0x8] sm:$0xf]
    %v1028 = vld [vmem:[#allocation9 + $0xc] sm:$0xf]
    %v1029 = vld [vmem:[#allocation9 + $0x10] sm:$0xf]
    %v1030 = vld [vmem:[#allocation9 + $0x14] sm:$0xf]
    %v1031 = vld [vmem:[#allocation9 + $0x18] sm:$0xf]
    %v1032 = vld [vmem:[#allocation9 + $0x1c] sm:$0xf]
    %v1033 = vld [vmem:[%s2] sm:$0x1]
    %v1035 = vperm.slane %v1033, 0
    %v1045 = vunpack.c.l.b16 %v1025
    %v1046 = vunpack.c.l.b16 %v1026
    %v1047 = vunpack.c.l.b16 %v1027
    %v1048 = vunpack.c.l.b16 %v1028
    %v1049 = vunpack.c.l.b16 %v1029
    %v1050 = vunpack.c.l.b16 %v1030
    %v1051 = vunpack.c.l.b16 %v1031
    %v1052 = vunpack.c.l.b16 %v1032
    %v1053 = vpack.c.b16 %v1046, %v1045
    %v1054 = vpack.c.b16 %v1048, %v1047
    %v1055 = vpack.c.b16 %v1050, %v1049
    %v1056 = vpack.c.b16 %v1052, %v1051
    %v1061 = vsel %vm113, %v1024, 0
    %1063 = vmatpush.bf16.msra.mxu0 0
    %1064 = vmatpush.bf16.msra.mxu0 0
    %1065 = vmatpush.bf16.msra.mxu0 0
    %1066 = vmatpush.bf16.msra.mxu0 0
    %1067 = vmatpush.bf16.msra.mxu0 %v1056
    %1068 = vmatpush.bf16.msra.mxu0 %v1055
    %1069 = vmatpush.bf16.msra.mxu0 %v1054
    %1070 = vmatpush.bf16.msra.mxu0 %v1053
    %1071 = vmatmul.bf16.gmra.mxu0 %v1061
    %v1072 = vpop.f32.mrf.mxu0
    %v1073 = vadd.f32 %v1035, %v1072
    %v1074 = vpop.f32.mrf.mxu0
    %1075 = vdwg.mxu0
    %v1076 = vxor.u32 %v1073, 2147483648
    %v1077 = vmul.f32 %v1076, 1.442695
    %v1078 = vpow.pop %v1077
    %v1079 = vadd.f32 %v1078, 1.0
    %v1080 = vrcp.pop %v1079
    %v1081 = vmul.f32 %v1079, %v1080
    %v1082 = vsub.f32 1.0, %v1081
    %v1083 = vmul.f32 %v1080, %v1082
    %v1084 = vadd.f32 %v1080, %v1083
    %vm1085 = vweird.f32 %v1079
    %vm1086 = vweird.f32 %v1080
    %vm1087 = vmor %vm1085, %vm1086
    %v1088 = vsel %vm1087, %v1080, %v1084
    %v1089 = vand.u32 2147483647, %v1079
    %vm1090 = vcmp.eq.f32.partialorder %v1089, 8.507059e+37
    %v1091 = vand.u32 %v1079, 2147483648
    %v1092 = vor.u32 1.1754944e-38, %v1091
    %v1093 = vsel %vm1090, %v1092, %v1088
    %v1094 = vmul.f32 1.0, %v1093
    %v1095 = vtanh.pop %v1073
    %1097 = vrot.lane.b32.xlu0 %v1015, 32
    %v1098 = vpop.permute.xlu0 %1097
    %v1100 = vmul.f32 %v1094, %v1098
    %1102 = vrot.lane.b32.xlu0 %v1095, 64
    %v1103 = vpop.permute.xlu0 %1102
    %v1105 = vmul.f32 %v1094, %v1103
    %1107 = vrot.lane.b32.xlu0 %v1105, 32
    %v1108 = vpop.permute.xlu0 %1107
    %v1110 = vadd.f32 %v1100, %v1108
    %v1111 = vtanh.pop %v1110
    %1113 = vrot.lane.b32.xlu0 %v1111, 64
    %v1114 = vpop.permute.xlu0 %1113
    %v1116 = vmul.f32 %v1094, %v1114
    %1118 = vrot.lane.b32.xlu0 %v1110, 96
    %v1119 = vpop.permute.xlu0 %1118
    %1121 = vst.msk [vmem:[#allocation3] sm:$0xff] %vm73, %v1119
    %1123 = vrot.lane.b32.xlu0 %v1116, 32
    %v1124 = vpop.permute.xlu0 %1123
    %1126 = vst.msk [vmem:[#allocation2] sm:$0xff] %vm73, %v1124
    %v1127 = vpack.c.bf16 %v1116, %v1116
    %v1128 = vld [vmem:[%s181] sm:$0xff]
    %v1129 = vld [vmem:[%s183] sm:$0xff]
    %v1130 = vpack.c.bf16 %v1128, %v1128
    %v1132 = vunpack.c.l.b16 %v1127
    %v1133 = vpack.c.b16 %v1132, %v1132
    %1134 = vrot.lane.b32.xlu0 %v1133, 32
    %v1135 = vpop.permute.xlu0 %1134
    %v1137 = vunpack.c.l.b16 %v1130
    %v1138 = vpack.c.b16 %v1137, %v1137
    %1139 = vrot.lane.b32.xlu0 %v1138, 32
    %v1140 = vpop.permute.xlu0 %1139
    %v1143 = vsel %vm73, %v1135, %v1140
    %v1144 = vld [vmem:[%s199] sm:$0xf]
    %v1145 = vld [vmem:[%s199 + $0x4] sm:$0xf]
    %v1146 = vld [vmem:[%s199 + $0x8] sm:$0xf]
    %v1147 = vld [vmem:[%s199 + $0xc] sm:$0xf]
    %v1148 = vld [vmem:[%s199 + $0x10] sm:$0xf]
    %v1149 = vld [vmem:[%s199 + $0x14] sm:$0xf]
    %v1150 = vld [vmem:[%s199 + $0x18] sm:$0xf]
    %v1151 = vld [vmem:[%s199 + $0x1c] sm:$0xf]
    %v1152 = vld [vmem:[%s208] sm:$0x1]
    %v1154 = vperm.slane %v1152, 0
    %v1164 = vunpack.c.l.b16 %v1144
    %v1165 = vunpack.c.l.b16 %v1145
    %v1166 = vunpack.c.l.b16 %v1146
    %v1167 = vunpack.c.l.b16 %v1147
    %v1168 = vunpack.c.l.b16 %v1148
    %v1169 = vunpack.c.l.b16 %v1149
    %v1170 = vunpack.c.l.b16 %v1150
    %v1171 = vunpack.c.l.b16 %v1151
    %v1172 = vpack.c.b16 %v1165, %v1164
    %v1173 = vpack.c.b16 %v1167, %v1166
    %v1174 = vpack.c.b16 %v1169, %v1168
    %v1175 = vpack.c.b16 %v1171, %v1170
    %v1180 = vsel %vm113, %v1143, 0
    %1182 = vmatpush.bf16.msra.mxu0 0
    %1183 = vmatpush.bf16.msra.mxu0 0
    %1184 = vmatpush.bf16.msra.mxu0 0
    %1185 = vmatpush.bf16.msra.mxu0 0
    %1186 = vmatpush.bf16.msra.mxu0 %v1175
    %1187 = vmatpush.bf16.msra.mxu0 %v1174
    %1188 = vmatpush.bf16.msra.mxu0 %v1173
    %1189 = vmatpush.bf16.msra.mxu0 %v1172
    %1190 = vmatmul.bf16.gmra.mxu0 %v1180
    %v1191 = vpop.f32.mrf.mxu0
    %v1192 = vadd.f32 %v1154, %v1191
    %v1193 = vpop.f32.mrf.mxu0
    %1194 = vdwg.mxu0
    %v1195 = vxor.u32 %v1192, 2147483648
    %v1196 = vmul.f32 %v1195, 1.442695
    %v1197 = vpow.pop %v1196
    %v1198 = vadd.f32 %v1197, 1.0
    %v1199 = vrcp.pop %v1198
    %v1200 = vmul.f32 %v1198, %v1199
    %v1201 = vsub.f32 1.0, %v1200
    %v1202 = vmul.f32 %v1199, %v1201
    %v1203 = vadd.f32 %v1199, %v1202
    %vm1204 = vweird.f32 %v1198
    %vm1205 = vweird.f32 %v1199
    %vm1206 = vmor %vm1204, %vm1205
    %v1207 = vsel %vm1206, %v1199, %v1203
    %v1208 = vand.u32 2147483647, %v1198
    %vm1209 = vcmp.eq.f32.partialorder %v1208, 8.507059e+37
    %v1210 = vand.u32 %v1198, 2147483648
    %v1211 = vor.u32 1.1754944e-38, %v1210
    %v1212 = vsel %vm1209, %v1211, %v1207
    %v1213 = vmul.f32 1.0, %v1212
    %v1214 = vtanh.pop %v1192
    %1216 = vrot.lane.b32.xlu0 %v1129, 32
    %v1217 = vpop.permute.xlu0 %1216
    %v1219 = vmul.f32 %v1213, %v1217
    %1221 = vrot.lane.b32.xlu0 %v1214, 64
    %v1222 = vpop.permute.xlu0 %1221
    %v1224 = vmul.f32 %v1213, %v1222
    %1226 = vrot.lane.b32.xlu0 %v1224, 32
    %v1227 = vpop.permute.xlu0 %1226
    %v1229 = vadd.f32 %v1219, %v1227
    %v1230 = vtanh.pop %v1229
    %1232 = vrot.lane.b32.xlu0 %v1230, 64
    %v1233 = vpop.permute.xlu0 %1232
    %v1235 = vmul.f32 %v1213, %v1233
    %1237 = vrot.lane.b32.xlu0 %v1229, 96
    %v1238 = vpop.permute.xlu0 %1237
    %1240 = vst.msk [vmem:[%s183] sm:$0xff] %vm73, %v1238
    %1242 = vrot.lane.b32.xlu0 %v1235, 32
    %v1243 = vpop.permute.xlu0 %1242
    %1245 = vst.msk [vmem:[%s181] sm:$0xff] %vm73, %v1243
    %s1246 = scalar_lea.vmem [#allocation4], 32
    %1247 = vst.msk [vmem:[%s1246] sm:$0xff] %vm73, %v1243
    %s1248 = scalar_lea.vmem [#allocation6], 20
    %v1249 = vld [vmem:[%s1248] sm:$0xf]
    %v1250 = vld [vmem:[#allocation2] sm:$0xff]
    %v1251 = vld [vmem:[#allocation3] sm:$0xff]
    %v1252 = vpack.c.bf16 %v1250, %v1250
    %v1254 = vunpack.c.l.b16 %v1252
    %v1255 = vpack.c.b16 %v1254, %v1254
    %1256 = vrot.lane.b32.xlu0 %v1255, 32
    %v1257 = vpop.permute.xlu0 %1256
    %v1260 = vsel %vm73, %v1249, %v1257
    %v1261 = vld [vmem:[#allocation9] sm:$0xf]
    %v1262 = vld [vmem:[#allocation9 + $0x4] sm:$0xf]
    %v1263 = vld [vmem:[#allocation9 + $0x8] sm:$0xf]
    %v1264 = vld [vmem:[#allocation9 + $0xc] sm:$0xf]
    %v1265 = vld [vmem:[#allocation9 + $0x10] sm:$0xf]
    %v1266 = vld [vmem:[#allocation9 + $0x14] sm:$0xf]
    %v1267 = vld [vmem:[#allocation9 + $0x18] sm:$0xf]
    %v1268 = vld [vmem:[#allocation9 + $0x1c] sm:$0xf]
    %v1269 = vld [vmem:[%s2] sm:$0x1]
    %v1271 = vperm.slane %v1269, 0
    %v1281 = vunpack.c.l.b16 %v1261
    %v1282 = vunpack.c.l.b16 %v1262
    %v1283 = vunpack.c.l.b16 %v1263
    %v1284 = vunpack.c.l.b16 %v1264
    %v1285 = vunpack.c.l.b16 %v1265
    %v1286 = vunpack.c.l.b16 %v1266
    %v1287 = vunpack.c.l.b16 %v1267
    %v1288 = vunpack.c.l.b16 %v1268
    %v1289 = vpack.c.b16 %v1282, %v1281
    %v1290 = vpack.c.b16 %v1284, %v1283
    %v1291 = vpack.c.b16 %v1286, %v1285
    %v1292 = vpack.c.b16 %v1288, %v1287
    %v1297 = vsel %vm113, %v1260, 0
    %1299 = vmatpush.bf16.msra.mxu0 0
    %1300 = vmatpush.bf16.msra.mxu0 0
    %1301 = vmatpush.bf16.msra.mxu0 0
    %1302 = vmatpush.bf16.msra.mxu0 0
    %1303 = vmatpush.bf16.msra.mxu0 %v1292
    %1304 = vmatpush.bf16.msra.mxu0 %v1291
    %1305 = vmatpush.bf16.msra.mxu0 %v1290
    %1306 = vmatpush.bf16.msra.mxu0 %v1289
    %1307 = vmatmul.bf16.gmra.mxu0 %v1297
    %v1308 = vpop.f32.mrf.mxu0
    %v1309 = vadd.f32 %v1271, %v1308
    %v1310 = vpop.f32.mrf.mxu0
    %1311 = vdwg.mxu0
    %v1312 = vxor.u32 %v1309, 2147483648
    %v1313 = vmul.f32 %v1312, 1.442695
    %v1314 = vpow.pop %v1313
    %v1315 = vadd.f32 %v1314, 1.0
    %v1316 = vrcp.pop %v1315
    %v1317 = vmul.f32 %v1315, %v1316
    %v1318 = vsub.f32 1.0, %v1317
    %v1319 = vmul.f32 %v1316, %v1318
    %v1320 = vadd.f32 %v1316, %v1319
    %vm1321 = vweird.f32 %v1315
    %vm1322 = vweird.f32 %v1316
    %vm1323 = vmor %vm1321, %vm1322
    %v1324 = vsel %vm1323, %v1316, %v1320
    %v1325 = vand.u32 2147483647, %v1315
    %vm1326 = vcmp.eq.f32.partialorder %v1325, 8.507059e+37
    %v1327 = vand.u32 %v1315, 2147483648
    %v1328 = vor.u32 1.1754944e-38, %v1327
    %v1329 = vsel %vm1326, %v1328, %v1324
    %v1330 = vmul.f32 1.0, %v1329
    %v1331 = vtanh.pop %v1309
    %1333 = vrot.lane.b32.xlu0 %v1251, 32
    %v1334 = vpop.permute.xlu0 %1333
    %v1336 = vmul.f32 %v1330, %v1334
    %1338 = vrot.lane.b32.xlu0 %v1331, 64
    %v1339 = vpop.permute.xlu0 %1338
    %v1341 = vmul.f32 %v1330, %v1339
    %1343 = vrot.lane.b32.xlu0 %v1341, 32
    %v1344 = vpop.permute.xlu0 %1343
    %v1346 = vadd.f32 %v1336, %v1344
    %v1347 = vtanh.pop %v1346
    %1349 = vrot.lane.b32.xlu0 %v1347, 64
    %v1350 = vpop.permute.xlu0 %1349
    %v1352 = vmul.f32 %v1330, %v1350
    %1354 = vrot.lane.b32.xlu0 %v1346, 96
    %v1355 = vpop.permute.xlu0 %1354
    %1357 = vst.msk [vmem:[#allocation3] sm:$0xff] %vm73, %v1355
    %1359 = vrot.lane.b32.xlu0 %v1352, 32
    %v1360 = vpop.permute.xlu0 %1359
    %1362 = vst.msk [vmem:[#allocation2] sm:$0xff] %vm73, %v1360
    %v1363 = vpack.c.bf16 %v1352, %v1352
    %v1364 = vld [vmem:[%s181] sm:$0xff]
    %v1365 = vld [vmem:[%s183] sm:$0xff]
    %v1366 = vpack.c.bf16 %v1364, %v1364
    %v1368 = vunpack.c.l.b16 %v1363
    %v1369 = vpack.c.b16 %v1368, %v1368
    %1370 = vrot.lane.b32.xlu0 %v1369, 32
    %v1371 = vpop.permute.xlu0 %1370
    %v1373 = vunpack.c.l.b16 %v1366
    %v1374 = vpack.c.b16 %v1373, %v1373
    %1375 = vrot.lane.b32.xlu0 %v1374, 32
    %v1376 = vpop.permute.xlu0 %1375
    %v1379 = vsel %vm73, %v1371, %v1376
    %v1380 = vld [vmem:[%s199] sm:$0xf]
    %v1381 = vld [vmem:[%s199 + $0x4] sm:$0xf]
    %v1382 = vld [vmem:[%s199 + $0x8] sm:$0xf]
    %v1383 = vld [vmem:[%s199 + $0xc] sm:$0xf]
    %v1384 = vld [vmem:[%s199 + $0x10] sm:$0xf]
    %v1385 = vld [vmem:[%s199 + $0x14] sm:$0xf]
    %v1386 = vld [vmem:[%s199 + $0x18] sm:$0xf]
    %v1387 = vld [vmem:[%s199 + $0x1c] sm:$0xf]
    %v1388 = vld [vmem:[%s208] sm:$0x1]
    %v1390 = vperm.slane %v1388, 0
    %v1400 = vunpack.c.l.b16 %v1380
    %v1401 = vunpack.c.l.b16 %v1381
    %v1402 = vunpack.c.l.b16 %v1382
    %v1403 = vunpack.c.l.b16 %v1383
    %v1404 = vunpack.c.l.b16 %v1384
    %v1405 = vunpack.c.l.b16 %v1385
    %v1406 = vunpack.c.l.b16 %v1386
    %v1407 = vunpack.c.l.b16 %v1387
    %v1408 = vpack.c.b16 %v1401, %v1400
    %v1409 = vpack.c.b16 %v1403, %v1402
    %v1410 = vpack.c.b16 %v1405, %v1404
    %v1411 = vpack.c.b16 %v1407, %v1406
    %v1416 = vsel %vm113, %v1379, 0
    %1418 = vmatpush.bf16.msra.mxu0 0
    %1419 = vmatpush.bf16.msra.mxu0 0
    %1420 = vmatpush.bf16.msra.mxu0 0
    %1421 = vmatpush.bf16.msra.mxu0 0
    %1422 = vmatpush.bf16.msra.mxu0 %v1411
    %1423 = vmatpush.bf16.msra.mxu0 %v1410
    %1424 = vmatpush.bf16.msra.mxu0 %v1409
    %1425 = vmatpush.bf16.msra.mxu0 %v1408
    %1426 = vmatmul.bf16.gmra.mxu0 %v1416
    %v1427 = vpop.f32.mrf.mxu0
    %v1428 = vadd.f32 %v1390, %v1427
    %v1429 = vpop.f32.mrf.mxu0
    %1430 = vdwg.mxu0
    %v1431 = vxor.u32 %v1428, 2147483648
    %v1432 = vmul.f32 %v1431, 1.442695
    %v1433 = vpow.pop %v1432
    %v1434 = vadd.f32 %v1433, 1.0
    %v1435 = vrcp.pop %v1434
    %v1436 = vmul.f32 %v1434, %v1435
    %v1437 = vsub.f32 1.0, %v1436
    %v1438 = vmul.f32 %v1435, %v1437
    %v1439 = vadd.f32 %v1435, %v1438
    %vm1440 = vweird.f32 %v1434
    %vm1441 = vweird.f32 %v1435
    %vm1442 = vmor %vm1440, %vm1441
    %v1443 = vsel %vm1442, %v1435, %v1439
    %v1444 = vand.u32 2147483647, %v1434
    %vm1445 = vcmp.eq.f32.partialorder %v1444, 8.507059e+37
    %v1446 = vand.u32 %v1434, 2147483648
    %v1447 = vor.u32 1.1754944e-38, %v1446
    %v1448 = vsel %vm1445, %v1447, %v1443
    %v1449 = vmul.f32 1.0, %v1448
    %v1450 = vtanh.pop %v1428
    %1452 = vrot.lane.b32.xlu0 %v1365, 32
    %v1453 = vpop.permute.xlu0 %1452
    %v1455 = vmul.f32 %v1449, %v1453
    %1457 = vrot.lane.b32.xlu0 %v1450, 64
    %v1458 = vpop.permute.xlu0 %1457
    %v1460 = vmul.f32 %v1449, %v1458
    %1462 = vrot.lane.b32.xlu0 %v1460, 32
    %v1463 = vpop.permute.xlu0 %1462
    %v1465 = vadd.f32 %v1455, %v1463
    %v1466 = vtanh.pop %v1465
    %1468 = vrot.lane.b32.xlu0 %v1466, 64
    %v1469 = vpop.permute.xlu0 %1468
    %v1471 = vmul.f32 %v1449, %v1469
    %1473 = vrot.lane.b32.xlu0 %v1465, 96
    %v1474 = vpop.permute.xlu0 %1473
    %1476 = vst.msk [vmem:[%s183] sm:$0xff] %vm73, %v1474
    %1478 = vrot.lane.b32.xlu0 %v1471, 32
    %v1479 = vpop.permute.xlu0 %1478
    %1481 = vst.msk [vmem:[%s181] sm:$0xff] %vm73, %v1479
    %s1482 = scalar_lea.vmem [#allocation4], 40
    %1483 = vst.msk [vmem:[%s1482] sm:$0xff] %vm73, %v1479
    %s1484 = scalar_lea.vmem [#allocation6], 24
    %v1485 = vld [vmem:[%s1484] sm:$0xf]
    %v1486 = vld [vmem:[#allocation2] sm:$0xff]
    %v1487 = vld [vmem:[#allocation3] sm:$0xff]
    %v1488 = vpack.c.bf16 %v1486, %v1486
    %v1490 = vunpack.c.l.b16 %v1488
    %v1491 = vpack.c.b16 %v1490, %v1490
    %1492 = vrot.lane.b32.xlu0 %v1491, 32
    %v1493 = vpop.permute.xlu0 %1492
    %v1496 = vsel %vm73, %v1485, %v1493
    %v1497 = vld [vmem:[#allocation9] sm:$0xf]
    %v1498 = vld [vmem:[#allocation9 + $0x4] sm:$0xf]
    %v1499 = vld [vmem:[#allocation9 + $0x8] sm:$0xf]
    %v1500 = vld [vmem:[#allocation9 + $0xc] sm:$0xf]
    %v1501 = vld [vmem:[#allocation9 + $0x10] sm:$0xf]
    %v1502 = vld [vmem:[#allocation9 + $0x14] sm:$0xf]
    %v1503 = vld [vmem:[#allocation9 + $0x18] sm:$0xf]
    %v1504 = vld [vmem:[#allocation9 + $0x1c] sm:$0xf]
    %v1505 = vld [vmem:[%s2] sm:$0x1]
    %v1507 = vperm.slane %v1505, 0
    %v1517 = vunpack.c.l.b16 %v1497
    %v1518 = vunpack.c.l.b16 %v1498
    %v1519 = vunpack.c.l.b16 %v1499
    %v1520 = vunpack.c.l.b16 %v1500
    %v1521 = vunpack.c.l.b16 %v1501
    %v1522 = vunpack.c.l.b16 %v1502
    %v1523 = vunpack.c.l.b16 %v1503
    %v1524 = vunpack.c.l.b16 %v1504
    %v1525 = vpack.c.b16 %v1518, %v1517
    %v1526 = vpack.c.b16 %v1520, %v1519
    %v1527 = vpack.c.b16 %v1522, %v1521
    %v1528 = vpack.c.b16 %v1524, %v1523
    %v1533 = vsel %vm113, %v1496, 0
    %1535 = vmatpush.bf16.msra.mxu0 0
    %1536 = vmatpush.bf16.msra.mxu0 0
    %1537 = vmatpush.bf16.msra.mxu0 0
    %1538 = vmatpush.bf16.msra.mxu0 0
    %1539 = vmatpush.bf16.msra.mxu0 %v1528
    %1540 = vmatpush.bf16.msra.mxu0 %v1527
    %1541 = vmatpush.bf16.msra.mxu0 %v1526
    %1542 = vmatpush.bf16.msra.mxu0 %v1525
    %1543 = vmatmul.bf16.gmra.mxu0 %v1533
    %v1544 = vpop.f32.mrf.mxu0
    %v1545 = vadd.f32 %v1507, %v1544
    %v1546 = vpop.f32.mrf.mxu0
    %1547 = vdwg.mxu0
    %v1548 = vxor.u32 %v1545, 2147483648
    %v1549 = vmul.f32 %v1548, 1.442695
    %v1550 = vpow.pop %v1549
    %v1551 = vadd.f32 %v1550, 1.0
    %v1552 = vrcp.pop %v1551
    %v1553 = vmul.f32 %v1551, %v1552
    %v1554 = vsub.f32 1.0, %v1553
    %v1555 = vmul.f32 %v1552, %v1554
    %v1556 = vadd.f32 %v1552, %v1555
    %vm1557 = vweird.f32 %v1551
    %vm1558 = vweird.f32 %v1552
    %vm1559 = vmor %vm1557, %vm1558
    %v1560 = vsel %vm1559, %v1552, %v1556
    %v1561 = vand.u32 2147483647, %v1551
    %vm1562 = vcmp.eq.f32.partialorder %v1561, 8.507059e+37
    %v1563 = vand.u32 %v1551, 2147483648
    %v1564 = vor.u32 1.1754944e-38, %v1563
    %v1565 = vsel %vm1562, %v1564, %v1560
    %v1566 = vmul.f32 1.0, %v1565
    %v1567 = vtanh.pop %v1545
    %1569 = vrot.lane.b32.xlu0 %v1487, 32
    %v1570 = vpop.permute.xlu0 %1569
    %v1572 = vmul.f32 %v1566, %v1570
    %1574 = vrot.lane.b32.xlu0 %v1567, 64
    %v1575 = vpop.permute.xlu0 %1574
    %v1577 = vmul.f32 %v1566, %v1575
    %1579 = vrot.lane.b32.xlu0 %v1577, 32
    %v1580 = vpop.permute.xlu0 %1579
    %v1582 = vadd.f32 %v1572, %v1580
    %v1583 = vtanh.pop %v1582
    %1585 = vrot.lane.b32.xlu0 %v1583, 64
    %v1586 = vpop.permute.xlu0 %1585
    %v1588 = vmul.f32 %v1566, %v1586
    %1590 = vrot.lane.b32.xlu0 %v1582, 96
    %v1591 = vpop.permute.xlu0 %1590
    %1593 = vst.msk [vmem:[#allocation3] sm:$0xff] %vm73, %v1591
    %1595 = vrot.lane.b32.xlu0 %v1588, 32
    %v1596 = vpop.permute.xlu0 %1595
    %1598 = vst.msk [vmem:[#allocation2] sm:$0xff] %vm73, %v1596
    %v1599 = vpack.c.bf16 %v1588, %v1588
    %v1600 = vld [vmem:[%s181] sm:$0xff]
    %v1601 = vld [vmem:[%s183] sm:$0xff]
    %v1602 = vpack.c.bf16 %v1600, %v1600
    %v1604 = vunpack.c.l.b16 %v1599
    %v1605 = vpack.c.b16 %v1604, %v1604
    %1606 = vrot.lane.b32.xlu0 %v1605, 32
    %v1607 = vpop.permute.xlu0 %1606
    %v1609 = vunpack.c.l.b16 %v1602
    %v1610 = vpack.c.b16 %v1609, %v1609
    %1611 = vrot.lane.b32.xlu0 %v1610, 32
    %v1612 = vpop.permute.xlu0 %1611
    %v1615 = vsel %vm73, %v1607, %v1612
    %v1616 = vld [vmem:[%s199] sm:$0xf]
    %v1617 = vld [vmem:[%s199 + $0x4] sm:$0xf]
    %v1618 = vld [vmem:[%s199 + $0x8] sm:$0xf]
    %v1619 = vld [vmem:[%s199 + $0xc] sm:$0xf]
    %v1620 = vld [vmem:[%s199 + $0x10] sm:$0xf]
    %v1621 = vld [vmem:[%s199 + $0x14] sm:$0xf]
    %v1622 = vld [vmem:[%s199 + $0x18] sm:$0xf]
    %v1623 = vld [vmem:[%s199 + $0x1c] sm:$0xf]
    %v1624 = vld [vmem:[%s208] sm:$0x1]
    %v1626 = vperm.slane %v1624, 0
    %v1636 = vunpack.c.l.b16 %v1616
    %v1637 = vunpack.c.l.b16 %v1617
    %v1638 = vunpack.c.l.b16 %v1618
    %v1639 = vunpack.c.l.b16 %v1619
    %v1640 = vunpack.c.l.b16 %v1620
    %v1641 = vunpack.c.l.b16 %v1621
    %v1642 = vunpack.c.l.b16 %v1622
    %v1643 = vunpack.c.l.b16 %v1623
    %v1644 = vpack.c.b16 %v1637, %v1636
    %v1645 = vpack.c.b16 %v1639, %v1638
    %v1646 = vpack.c.b16 %v1641, %v1640
    %v1647 = vpack.c.b16 %v1643, %v1642
    %v1652 = vsel %vm113, %v1615, 0
    %1654 = vmatpush.bf16.msra.mxu0 0
    %1655 = vmatpush.bf16.msra.mxu0 0
    %1656 = vmatpush.bf16.msra.mxu0 0
    %1657 = vmatpush.bf16.msra.mxu0 0
    %1658 = vmatpush.bf16.msra.mxu0 %v1647
    %1659 = vmatpush.bf16.msra.mxu0 %v1646
    %1660 = vmatpush.bf16.msra.mxu0 %v1645
    %1661 = vmatpush.bf16.msra.mxu0 %v1644
    %1662 = vmatmul.bf16.gmra.mxu0 %v1652
    %v1663 = vpop.f32.mrf.mxu0
    %v1664 = vadd.f32 %v1626, %v1663
    %v1665 = vpop.f32.mrf.mxu0
    %1666 = vdwg.mxu0
    %v1667 = vxor.u32 %v1664, 2147483648
    %v1668 = vmul.f32 %v1667, 1.442695
    %v1669 = vpow.pop %v1668
    %v1670 = vadd.f32 %v1669, 1.0
    %v1671 = vrcp.pop %v1670
    %v1672 = vmul.f32 %v1670, %v1671
    %v1673 = vsub.f32 1.0, %v1672
    %v1674 = vmul.f32 %v1671, %v1673
    %v1675 = vadd.f32 %v1671, %v1674
    %vm1676 = vweird.f32 %v1670
    %vm1677 = vweird.f32 %v1671
    %vm1678 = vmor %vm1676, %vm1677
    %v1679 = vsel %vm1678, %v1671, %v1675
    %v1680 = vand.u32 2147483647, %v1670
    %vm1681 = vcmp.eq.f32.partialorder %v1680, 8.507059e+37
    %v1682 = vand.u32 %v1670, 2147483648
    %v1683 = vor.u32 1.1754944e-38, %v1682
    %v1684 = vsel %vm1681, %v1683, %v1679
    %v1685 = vmul.f32 1.0, %v1684
    %v1686 = vtanh.pop %v1664
    %1688 = vrot.lane.b32.xlu0 %v1601, 32
    %v1689 = vpop.permute.xlu0 %1688
    %v1691 = vmul.f32 %v1685, %v1689
    %1693 = vrot.lane.b32.xlu0 %v1686, 64
    %v1694 = vpop.permute.xlu0 %1693
    %v1696 = vmul.f32 %v1685, %v1694
    %1698 = vrot.lane.b32.xlu0 %v1696, 32
    %v1699 = vpop.permute.xlu0 %1698
    %v1701 = vadd.f32 %v1691, %v1699
    %v1702 = vtanh.pop %v1701
    %1704 = vrot.lane.b32.xlu0 %v1702, 64
    %v1705 = vpop.permute.xlu0 %1704
    %v1707 = vmul.f32 %v1685, %v1705
    %1709 = vrot.lane.b32.xlu0 %v1701, 96
    %v1710 = vpop.permute.xlu0 %1709
    %1712 = vst.msk [vmem:[%s183] sm:$0xff] %vm73, %v1710
    %1714 = vrot.lane.b32.xlu0 %v1707, 32
    %v1715 = vpop.permute.xlu0 %1714
    %1717 = vst.msk [vmem:[%s181] sm:$0xff] %vm73, %v1715
    %s1718 = scalar_lea.vmem [#allocation4], 48
    %1719 = vst.msk [vmem:[%s1718] sm:$0xff] %vm73, %v1715
    %s1720 = scalar_lea.vmem [#allocation6], 28
    %v1721 = vld [vmem:[%s1720] sm:$0xf]
    %v1722 = vld [vmem:[#allocation2] sm:$0xff]
    %v1723 = vld [vmem:[#allocation3] sm:$0xff]
    %v1724 = vpack.c.bf16 %v1722, %v1722
    %v1726 = vunpack.c.l.b16 %v1724
    %v1727 = vpack.c.b16 %v1726, %v1726
    %1728 = vrot.lane.b32.xlu0 %v1727, 32
    %v1729 = vpop.permute.xlu0 %1728
    %v1732 = vsel %vm73, %v1721, %v1729
    %v1733 = vld [vmem:[#allocation9] sm:$0xf]
    %v1734 = vld [vmem:[#allocation9 + $0x4] sm:$0xf]
    %v1735 = vld [vmem:[#allocation9 + $0x8] sm:$0xf]
    %v1736 = vld [vmem:[#allocation9 + $0xc] sm:$0xf]
    %v1737 = vld [vmem:[#allocation9 + $0x10] sm:$0xf]
    %v1738 = vld [vmem:[#allocation9 + $0x14] sm:$0xf]
    %v1739 = vld [vmem:[#allocation9 + $0x18] sm:$0xf]
    %v1740 = vld [vmem:[#allocation9 + $0x1c] sm:$0xf]
    %v1741 = vld [vmem:[%s2] sm:$0x1]
    %v1743 = vperm.slane %v1741, 0
    %v1753 = vunpack.c.l.b16 %v1733
    %v1754 = vunpack.c.l.b16 %v1734
    %v1755 = vunpack.c.l.b16 %v1735
    %v1756 = vunpack.c.l.b16 %v1736
    %v1757 = vunpack.c.l.b16 %v1737
    %v1758 = vunpack.c.l.b16 %v1738
    %v1759 = vunpack.c.l.b16 %v1739
    %v1760 = vunpack.c.l.b16 %v1740
    %v1761 = vpack.c.b16 %v1754, %v1753
    %v1762 = vpack.c.b16 %v1756, %v1755
    %v1763 = vpack.c.b16 %v1758, %v1757
    %v1764 = vpack.c.b16 %v1760, %v1759
    %v1769 = vsel %vm113, %v1732, 0
    %1771 = vmatpush.bf16.msra.mxu0 0
    %1772 = vmatpush.bf16.msra.mxu0 0
    %1773 = vmatpush.bf16.msra.mxu0 0
    %1774 = vmatpush.bf16.msra.mxu0 0
    %1775 = vmatpush.bf16.msra.mxu0 %v1764
    %1776 = vmatpush.bf16.msra.mxu0 %v1763
    %1777 = vmatpush.bf16.msra.mxu0 %v1762
    %1778 = vmatpush.bf16.msra.mxu0 %v1761
    %1779 = vmatmul.bf16.gmra.mxu0 %v1769
    %v1780 = vpop.f32.mrf.mxu0
    %v1781 = vadd.f32 %v1743, %v1780
    %v1782 = vpop.f32.mrf.mxu0
    %1783 = vdwg.mxu0
    %v1784 = vxor.u32 %v1781, 2147483648
    %v1785 = vmul.f32 %v1784, 1.442695
    %v1786 = vpow.pop %v1785
    %v1787 = vadd.f32 %v1786, 1.0
    %v1788 = vrcp.pop %v1787
    %v1789 = vmul.f32 %v1787, %v1788
    %v1790 = vsub.f32 1.0, %v1789
    %v1791 = vmul.f32 %v1788, %v1790
    %v1792 = vadd.f32 %v1788, %v1791
    %vm1793 = vweird.f32 %v1787
    %vm1794 = vweird.f32 %v1788
    %vm1795 = vmor %vm1793, %vm1794
    %v1796 = vsel %vm1795, %v1788, %v1792
    %v1797 = vand.u32 2147483647, %v1787
    %vm1798 = vcmp.eq.f32.partialorder %v1797, 8.507059e+37
    %v1799 = vand.u32 %v1787, 2147483648
    %v1800 = vor.u32 1.1754944e-38, %v1799
    %v1801 = vsel %vm1798, %v1800, %v1796
    %v1802 = vmul.f32 1.0, %v1801
    %v1803 = vtanh.pop %v1781
    %1805 = vrot.lane.b32.xlu0 %v1723, 32
    %v1806 = vpop.permute.xlu0 %1805
    %v1808 = vmul.f32 %v1802, %v1806
    %1810 = vrot.lane.b32.xlu0 %v1803, 64
    %v1811 = vpop.permute.xlu0 %1810
    %v1813 = vmul.f32 %v1802, %v1811
    %1815 = vrot.lane.b32.xlu0 %v1813, 32
    %v1816 = vpop.permute.xlu0 %1815
    %v1818 = vadd.f32 %v1808, %v1816
    %v1819 = vtanh.pop %v1818
    %1821 = vrot.lane.b32.xlu0 %v1819, 64
    %v1822 = vpop.permute.xlu0 %1821
    %v1824 = vmul.f32 %v1802, %v1822
    %1826 = vrot.lane.b32.xlu0 %v1818, 96
    %v1827 = vpop.permute.xlu0 %1826
    %1829 = vst.msk [vmem:[#allocation3] sm:$0xff] %vm73, %v1827
    %1831 = vrot.lane.b32.xlu0 %v1824, 32
    %v1832 = vpop.permute.xlu0 %1831
    %1834 = vst.msk [vmem:[#allocation2] sm:$0xff] %vm73, %v1832
    %v1835 = vpack.c.bf16 %v1824, %v1824
    %v1836 = vld [vmem:[%s181] sm:$0xff]
    %v1837 = vld [vmem:[%s183] sm:$0xff]
    %v1838 = vpack.c.bf16 %v1836, %v1836
    %v1840 = vunpack.c.l.b16 %v1835
    %v1841 = vpack.c.b16 %v1840, %v1840
    %1842 = vrot.lane.b32.xlu0 %v1841, 32
    %v1843 = vpop.permute.xlu0 %1842
    %v1845 = vunpack.c.l.b16 %v1838
    %v1846 = vpack.c.b16 %v1845, %v1845
    %1847 = vrot.lane.b32.xlu0 %v1846, 32
    %v1848 = vpop.permute.xlu0 %1847
    %v1851 = vsel %vm73, %v1843, %v1848
    %v1852 = vld [vmem:[%s199] sm:$0xf]
    %v1853 = vld [vmem:[%s199 + $0x4] sm:$0xf]
    %v1854 = vld [vmem:[%s199 + $0x8] sm:$0xf]
    %v1855 = vld [vmem:[%s199 + $0xc] sm:$0xf]
    %v1856 = vld [vmem:[%s199 + $0x10] sm:$0xf]
    %v1857 = vld [vmem:[%s199 + $0x14] sm:$0xf]
    %v1858 = vld [vmem:[%s199 + $0x18] sm:$0xf]
    %v1859 = vld [vmem:[%s199 + $0x1c] sm:$0xf]
    %v1860 = vld [vmem:[%s208] sm:$0x1]
    %v1862 = vperm.slane %v1860, 0
    %v1872 = vunpack.c.l.b16 %v1852
    %v1873 = vunpack.c.l.b16 %v1853
    %v1874 = vunpack.c.l.b16 %v1854
    %v1875 = vunpack.c.l.b16 %v1855
    %v1876 = vunpack.c.l.b16 %v1856
    %v1877 = vunpack.c.l.b16 %v1857
    %v1878 = vunpack.c.l.b16 %v1858
    %v1879 = vunpack.c.l.b16 %v1859
    %v1880 = vpack.c.b16 %v1873, %v1872
    %v1881 = vpack.c.b16 %v1875, %v1874
    %v1882 = vpack.c.b16 %v1877, %v1876
    %v1883 = vpack.c.b16 %v1879, %v1878
    %v1888 = vsel %vm113, %v1851, 0
    %1890 = vmatpush.bf16.msra.mxu0 0
    %1891 = vmatpush.bf16.msra.mxu0 0
    %1892 = vmatpush.bf16.msra.mxu0 0
    %1893 = vmatpush.bf16.msra.mxu0 0
    %1894 = vmatpush.bf16.msra.mxu0 %v1883
    %1895 = vmatpush.bf16.msra.mxu0 %v1882
    %1896 = vmatpush.bf16.msra.mxu0 %v1881
    %1897 = vmatpush.bf16.msra.mxu0 %v1880
    %1898 = vmatmul.bf16.gmra.mxu0 %v1888
    %v1899 = vpop.f32.mrf.mxu0
    %v1900 = vadd.f32 %v1862, %v1899
    %v1901 = vpop.f32.mrf.mxu0
    %1902 = vdwg.mxu0
    %v1903 = vxor.u32 %v1900, 2147483648
    %v1904 = vmul.f32 %v1903, 1.442695
    %v1905 = vpow.pop %v1904
    %v1906 = vadd.f32 %v1905, 1.0
    %v1907 = vrcp.pop %v1906
    %v1908 = vmul.f32 %v1906, %v1907
    %v1909 = vsub.f32 1.0, %v1908
    %v1910 = vmul.f32 %v1907, %v1909
    %v1911 = vadd.f32 %v1907, %v1910
    %vm1912 = vweird.f32 %v1906
    %vm1913 = vweird.f32 %v1907
    %vm1914 = vmor %vm1912, %vm1913
    %v1915 = vsel %vm1914, %v1907, %v1911
    %v1916 = vand.u32 2147483647, %v1906
    %vm1917 = vcmp.eq.f32.partialorder %v1916, 8.507059e+37
    %v1918 = vand.u32 %v1906, 2147483648
    %v1919 = vor.u32 1.1754944e-38, %v1918
    %v1920 = vsel %vm1917, %v1919, %v1915
    %v1921 = vmul.f32 1.0, %v1920
    %v1922 = vtanh.pop %v1900
    %1924 = vrot.lane.b32.xlu0 %v1837, 32
    %v1925 = vpop.permute.xlu0 %1924
    %v1927 = vmul.f32 %v1921, %v1925
    %1929 = vrot.lane.b32.xlu0 %v1922, 64
    %v1930 = vpop.permute.xlu0 %1929
    %v1932 = vmul.f32 %v1921, %v1930
    %1934 = vrot.lane.b32.xlu0 %v1932, 32
    %v1935 = vpop.permute.xlu0 %1934
    %v1937 = vadd.f32 %v1927, %v1935
    %v1938 = vtanh.pop %v1937
    %1940 = vrot.lane.b32.xlu0 %v1938, 64
    %v1941 = vpop.permute.xlu0 %1940
    %v1943 = vmul.f32 %v1921, %v1941
    %1945 = vrot.lane.b32.xlu0 %v1937, 96
    %v1946 = vpop.permute.xlu0 %1945
    %1948 = vst.msk [vmem:[%s183] sm:$0xff] %vm73, %v1946
    %1950 = vrot.lane.b32.xlu0 %v1943, 32
    %v1951 = vpop.permute.xlu0 %1950
    %1953 = vst.msk [vmem:[%s181] sm:$0xff] %vm73, %v1951
    %s1954 = scalar_lea.vmem [#allocation4], 56
    %1955 = vst.msk [vmem:[%s1954] sm:$0xff] %vm73, %v1951
    %v1956 = vld [vmem:[%s3] sm:$0x1]
    %v1957 = vld [vmem:[#allocation4] sm:$0xff]
    %v1958 = vld [vmem:[#allocation4 + $0x8] sm:$0xff]
    %v1959 = vld [vmem:[#allocation4 + $0x10] sm:$0xff]
    %v1960 = vld [vmem:[#allocation4 + $0x18] sm:$0xff]
    %v1961 = vld [vmem:[#allocation4 + $0x20] sm:$0xff]
    %v1962 = vld [vmem:[#allocation4 + $0x28] sm:$0xff]
    %v1963 = vld [vmem:[#allocation4 + $0x30] sm:$0xff]
    %v1964 = vld [vmem:[#allocation4 + $0x38] sm:$0xff]
    %v1966 = vperm.slane %v1956, 0
    %v1968 = vmul.f32 %v1957, %v1966
    %v1969 = vmul.f32 %v1958, %v1966
    %v1970 = vmul.f32 %v1959, %v1966
    %v1971 = vmul.f32 %v1960, %v1966
    %v1972 = vmul.f32 %v1961, %v1966
    %v1973 = vmul.f32 %v1962, %v1966
    %v1974 = vmul.f32 %v1963, %v1966
    %v1975 = vmul.f32 %v1964, %v1966
    %v1976 = vsel %vm73, %v1968, 0.0
    %1977 = vadd.xlane.f32.xlu0 %v1976
    %v1978 = vpop.xlane.xlu0 %1977
    %v1979 = vsel %vm73, %v1969, 0.0
    %1980 = vadd.xlane.f32.xlu0 %v1979
    %v1981 = vpop.xlane.xlu0 %1980
    %v1982 = vsel %vm73, %v1970, 0.0
    %1983 = vadd.xlane.f32.xlu0 %v1982
    %v1984 = vpop.xlane.xlu0 %1983
    %v1985 = vsel %vm73, %v1971, 0.0
    %1986 = vadd.xlane.f32.xlu0 %v1985
    %v1987 = vpop.xlane.xlu0 %1986
    %v1988 = vsel %vm73, %v1972, 0.0
    %1989 = vadd.xlane.f32.xlu0 %v1988
    %v1990 = vpop.xlane.xlu0 %1989
    %v1991 = vsel %vm73, %v1973, 0.0
    %1992 = vadd.xlane.f32.xlu0 %v1991
    %v1993 = vpop.xlane.xlu0 %1992
    %v1994 = vsel %vm73, %v1974, 0.0
    %1995 = vadd.xlane.f32.xlu0 %v1994
    %v1996 = vpop.xlane.xlu0 %1995
    %v1997 = vsel %vm73, %v1975, 0.0
    %1998 = vadd.xlane.f32.xlu0 %v1997
    %v1999 = vpop.xlane.xlu0 %1998
    %s2000 = sld [smem:[#allocation5]]
    %v2001 = vstv %s2000
    %v2002 = vadd.f32 %v1978, %v2001
    %v2003 = vadd.f32 %v1981, %v2001
    %v2004 = vadd.f32 %v1984, %v2001
    %v2005 = vadd.f32 %v1987, %v2001
    %v2006 = vadd.f32 %v1990, %v2001
    %v2007 = vadd.f32 %v1993, %v2001
    %v2008 = vadd.f32 %v1996, %v2001
    %v2009 = vadd.f32 %v1999, %v2001
    %v2010 = vxor.u32 %v2002, 2147483648
    %v2011 = vxor.u32 %v2003, 2147483648
    %v2012 = vxor.u32 %v2004, 2147483648
    %v2013 = vxor.u32 %v2005, 2147483648
    %v2014 = vxor.u32 %v2006, 2147483648
    %v2015 = vxor.u32 %v2007, 2147483648
    %v2016 = vxor.u32 %v2008, 2147483648
    %v2017 = vxor.u32 %v2009, 2147483648
    %v2018 = vmul.f32 %v2010, 1.442695
    %v2019 = vpow.pop %v2018
    %v2020 = vmul.f32 %v2011, 1.442695
    %v2021 = vpow.pop %v2020
    %v2022 = vmul.f32 %v2012, 1.442695
    %v2023 = vpow.pop %v2022
    %v2024 = vmul.f32 %v2013, 1.442695
    %v2025 = vpow.pop %v2024
    %v2026 = vmul.f32 %v2014, 1.442695
    %v2027 = vpow.pop %v2026
    %v2028 = vmul.f32 %v2015, 1.442695
    %v2029 = vpow.pop %v2028
    %v2030 = vmul.f32 %v2016, 1.442695
    %v2031 = vpow.pop %v2030
    %v2032 = vmul.f32 %v2017, 1.442695
    %v2033 = vpow.pop %v2032
    %v2034 = vadd.f32 %v2019, 1.0
    %v2035 = vadd.f32 %v2021, 1.0
    %v2036 = vadd.f32 %v2023, 1.0
    %v2037 = vadd.f32 %v2025, 1.0
    %v2038 = vadd.f32 %v2027, 1.0
    %v2039 = vadd.f32 %v2029, 1.0
    %v2040 = vadd.f32 %v2031, 1.0
    %v2041 = vadd.f32 %v2033, 1.0
    %v2042 = vrcp.pop %v2034
    %v2043 = vmul.f32 %v2034, %v2042
    %v2044 = vsub.f32 1.0, %v2043
    %v2045 = vmul.f32 %v2042, %v2044
    %v2046 = vadd.f32 %v2042, %v2045
    %vm2047 = vweird.f32 %v2034
    %vm2048 = vweird.f32 %v2042
    %vm2049 = vmor %vm2047, %vm2048
    %v2050 = vsel %vm2049, %v2042, %v2046
    %v2051 = vand.u32 2147483647, %v2034
    %vm2052 = vcmp.eq.f32.partialorder %v2051, 8.507059e+37
    %v2053 = vand.u32 %v2034, 2147483648
    %v2054 = vor.u32 1.1754944e-38, %v2053
    %v2055 = vsel %vm2052, %v2054, %v2050
    %v2056 = vmul.f32 1.0, %v2055
    %v2057 = vrcp.pop %v2035
    %v2058 = vmul.f32 %v2035, %v2057
    %v2059 = vsub.f32 1.0, %v2058
    %v2060 = vmul.f32 %v2057, %v2059
    %v2061 = vadd.f32 %v2057, %v2060
    %vm2062 = vweird.f32 %v2035
    %vm2063 = vweird.f32 %v2057
    %vm2064 = vmor %vm2062, %vm2063
    %v2065 = vsel %vm2064, %v2057, %v2061
    %v2066 = vand.u32 2147483647, %v2035
    %vm2067 = vcmp.eq.f32.partialorder %v2066, 8.507059e+37
    %v2068 = vand.u32 %v2035, 2147483648
    %v2069 = vor.u32 1.1754944e-38, %v2068
    %v2070 = vsel %vm2067, %v2069, %v2065
    %v2071 = vmul.f32 1.0, %v2070
    %v2072 = vrcp.pop %v2036
    %v2073 = vmul.f32 %v2036, %v2072
    %v2074 = vsub.f32 1.0, %v2073
    %v2075 = vmul.f32 %v2072, %v2074
    %v2076 = vadd.f32 %v2072, %v2075
    %vm2077 = vweird.f32 %v2036
    %vm2078 = vweird.f32 %v2072
    %vm2079 = vmor %vm2077, %vm2078
    %v2080 = vsel %vm2079, %v2072, %v2076
    %v2081 = vand.u32 2147483647, %v2036
    %vm2082 = vcmp.eq.f32.partialorder %v2081, 8.507059e+37
    %v2083 = vand.u32 %v2036, 2147483648
    %v2084 = vor.u32 1.1754944e-38, %v2083
    %v2085 = vsel %vm2082, %v2084, %v2080
    %v2086 = vmul.f32 1.0, %v2085
    %v2087 = vrcp.pop %v2037
    %v2088 = vmul.f32 %v2037, %v2087
    %v2089 = vsub.f32 1.0, %v2088
    %v2090 = vmul.f32 %v2087, %v2089
    %v2091 = vadd.f32 %v2087, %v2090
    %vm2092 = vweird.f32 %v2037
    %vm2093 = vweird.f32 %v2087
    %vm2094 = vmor %vm2092, %vm2093
    %v2095 = vsel %vm2094, %v2087, %v2091
    %v2096 = vand.u32 2147483647, %v2037
    %vm2097 = vcmp.eq.f32.partialorder %v2096, 8.507059e+37
    %v2098 = vand.u32 %v2037, 2147483648
    %v2099 = vor.u32 1.1754944e-38, %v2098
    %v2100 = vsel %vm2097, %v2099, %v2095
    %v2101 = vmul.f32 1.0, %v2100
    %v2102 = vrcp.pop %v2038
    %v2103 = vmul.f32 %v2038, %v2102
    %v2104 = vsub.f32 1.0, %v2103
    %v2105 = vmul.f32 %v2102, %v2104
    %v2106 = vadd.f32 %v2102, %v2105
    %vm2107 = vweird.f32 %v2038
    %vm2108 = vweird.f32 %v2102
    %vm2109 = vmor %vm2107, %vm2108
    %v2110 = vsel %vm2109, %v2102, %v2106
    %v2111 = vand.u32 2147483647, %v2038
    %vm2112 = vcmp.eq.f32.partialorder %v2111, 8.507059e+37
    %v2113 = vand.u32 %v2038, 2147483648
    %v2114 = vor.u32 1.1754944e-38, %v2113
    %v2115 = vsel %vm2112, %v2114, %v2110
    %v2116 = vmul.f32 1.0, %v2115
    %v2117 = vrcp.pop %v2039
    %v2118 = vmul.f32 %v2039, %v2117
    %v2119 = vsub.f32 1.0, %v2118
    %v2120 = vmul.f32 %v2117, %v2119
    %v2121 = vadd.f32 %v2117, %v2120
    %vm2122 = vweird.f32 %v2039
    %vm2123 = vweird.f32 %v2117
    %vm2124 = vmor %vm2122, %vm2123
    %v2125 = vsel %vm2124, %v2117, %v2121
    %v2126 = vand.u32 2147483647, %v2039
    %vm2127 = vcmp.eq.f32.partialorder %v2126, 8.507059e+37
    %v2128 = vand.u32 %v2039, 2147483648
    %v2129 = vor.u32 1.1754944e-38, %v2128
    %v2130 = vsel %vm2127, %v2129, %v2125
    %v2131 = vmul.f32 1.0, %v2130
    %v2132 = vrcp.pop %v2040
    %v2133 = vmul.f32 %v2040, %v2132
    %v2134 = vsub.f32 1.0, %v2133
    %v2135 = vmul.f32 %v2132, %v2134
    %v2136 = vadd.f32 %v2132, %v2135
    %vm2137 = vweird.f32 %v2040
    %vm2138 = vweird.f32 %v2132
    %vm2139 = vmor %vm2137, %vm2138
    %v2140 = vsel %vm2139, %v2132, %v2136
    %v2141 = vand.u32 2147483647, %v2040
    %vm2142 = vcmp.eq.f32.partialorder %v2141, 8.507059e+37
    %v2143 = vand.u32 %v2040, 2147483648
    %v2144 = vor.u32 1.1754944e-38, %v2143
    %v2145 = vsel %vm2142, %v2144, %v2140
    %v2146 = vmul.f32 1.0, %v2145
    %v2147 = vrcp.pop %v2041
    %v2148 = vmul.f32 %v2041, %v2147
    %v2149 = vsub.f32 1.0, %v2148
    %v2150 = vmul.f32 %v2147, %v2149
    %v2151 = vadd.f32 %v2147, %v2150
    %vm2152 = vweird.f32 %v2041
    %vm2153 = vweird.f32 %v2147
    %vm2154 = vmor %vm2152, %vm2153
    %v2155 = vsel %vm2154, %v2147, %v2151
    %v2156 = vand.u32 2147483647, %v2041
    %vm2157 = vcmp.eq.f32.partialorder %v2156, 8.507059e+37
    %v2158 = vand.u32 %v2041, 2147483648
    %v2159 = vor.u32 1.1754944e-38, %v2158
    %v2160 = vsel %vm2157, %v2159, %v2155
    %v2161 = vmul.f32 1.0, %v2160
    %v2170 = vlaneseq
    %v2171 = vand.u32 %v2170, 127
    %v2172 = vperm.slane %v2056, %v2171
    %v2173 = vperm.slane %v2071, %v2171
    %v2174 = vperm.slane %v2086, %v2171
    %v2175 = vperm.slane %v2101, %v2171
    %v2176 = vperm.slane %v2116, %v2171
    %v2177 = vperm.slane %v2131, %v2171
    %v2178 = vperm.slane %v2146, %v2171
    %v2179 = vperm.slane %v2161, %v2171
    %vm2180 = vcmask 1041409
    %v2181 = vsel %vm2180, %v2173, %v2172
    %vm2182 = vcmask 1042434
    %v2183 = vsel %vm2182, %v2174, %v2181
    %vm2184 = vcmask 1043459
    %v2185 = vsel %vm2184, %v2175, %v2183
    %vm2186 = vcmask 1044484
    %v2187 = vsel %vm2186, %v2176, %v2185
    %vm2188 = vcmask 1045509
    %v2189 = vsel %vm2188, %v2177, %v2187
    %vm2190 = vcmask 1046534
    %v2191 = vsel %vm2190, %v2178, %v2189
    %vm2192 = vcmask 1047559
    %v2193 = vsel %vm2192, %v2179, %v2191
    %vm2195 = vcmask 64512
    %2196 = vst.msk [vmem:[#allocation11] sm:$0xff] %vm2195, %v2193
    // Predicated region
    $region34: #{tpu_custom_call.1} parent=1 // pred_check
      _
    $region35: #{tpu_custom_call.1} parent=1 // pred_check_branch
      %2198 = sbr.rel (0) target = $region37
    $region36: #{tpu_custom_call.1} parent=1 // pred_region
      %2200 = vsyncadd [#allocation8], 0
      %s2202 = sshll.u32 [#allocation11], 4
      %s2203 = int_to_ptr.vmem [resolvable:$true] %s2202
      %s2204 = sshll.u32 %s5, 4
      %s2205 = int_to_ptr.hbm [resolvable:$true] %s2204
      %2207 = dma.vmem_to_hbm [thread:$0]  %s2203, 128, %s2205, [#allocation8]
    $region37: #{tpu_custom_call.1} parent=1 // pred_fallthru
      _
    // Predicated region
    $region38: #{tpu_custom_call.1} parent=1 // pred_check
      _
    $region39: #{tpu_custom_call.1} parent=1 // pred_check_branch
      %2209 = sbr.rel (0) target = $region41
    $region40: #{tpu_custom_call.1} parent=1 // pred_region
      %2211 = dma.done [#allocation8], 128
    $region41: #{tpu_custom_call.1} parent=1 // pred_fallthru
      _
    %2212 = vsyncpa [#allocation7], 1
    %2213 = vsyncpa [#allocation10], 1
    %2214 = vsyncpa [#allocation8], 1

</llo_original>
